<compile_context>
chip_gen: v5e
topology: v5e:2x2
jax: 0.10.0
libtpu: 0.0.40
codegen_flags: <defaults>
</compile_context>

<pallas_src>
import math

import jax
import jax.numpy as jnp
from jax import lax
from jax.experimental import pallas as pl
from jax.experimental.pallas import tpu as pltpu  # noqa: F401  (kept for TPU-specific tuning hooks)

# ----- model hyperparameters (small shapes consistent with the module) -----
VOCAB = 300        # input_size
OUT = 8            # output_size
MAX_SEQ = 100      # max_seq_len
HIDDEN = 32        # hidden_size (small demo value)
HEADS = 4          # num_heads
LAYERS = 2         # num_layers
FFN = 4 * HIDDEN   # dim_feedforward = hidden * 4
HEAD_DIM = HIDDEN // HEADS
LN_EPS = 1e-5

BATCH = 2
SEQ = 8


# ---------------------------------------------------------------------------
# Fused Pallas kernel: all encoder layers + final classifier in one launch
# ---------------------------------------------------------------------------
def fused_transformer_kernel(x_ref, wqh_ref, wkh_ref, wvh_ref,
                             bqh_ref, bkh_ref, bvh_ref,
                             woh_ref, bo_ref, g1_ref, be1_ref,
                             w1_ref, b1_ref, w2_ref, b2_ref,
                             g2_ref, be2_ref, fcw_ref, fcb_ref,
                             o_ref):
    """Whole TransformerModel forward for one (B*S, H) activation block.

    Weight layouts (prepared once outside the kernel):
      wqh/wkh/wvh : (L, HEADS, H, dH)   per-head input projections (x @ W)
      bqh/bkh/bvh : (L, HEADS, 1, dH)
      woh         : (L, HEADS, dH, H)   per-head slice of the output projection
      bo,g1,be1,b2,g2,be2 : (L, 1, H);  w1 : (L, H, FFN); b1 : (L, 1, FFN); w2 : (L, FFN, H)
      fcw : (H, OUT); fcb : (1, OUT)
    """
    x = x_ref[...]                                                   # (B*S, H)
    scale = 1.0 / math.sqrt(HEAD_DIM)

    def layer_norm(y, g, b):
        mu = jnp.mean(y, axis=-1, keepdims=True)
        var = jnp.mean((y - mu) ** 2, axis=-1, keepdims=True)
        return (y - mu) * lax.rsqrt(var + LN_EPS) * g + b

    for l in range(LAYERS):                                          # static unroll
        wqh, wkh, wvh = wqh_ref[l], wkh_ref[l], wvh_ref[l]           # (HEADS, H, dH)
        bqh, bkh, bvh = bqh_ref[l], bkh_ref[l], bvh_ref[l]           # (HEADS, 1, dH)
        woh = woh_ref[l]                                             # (HEADS, dH, H)

        attn_rows = []
        for b in range(BATCH):                                       # static unroll (B=2)
            xb = x[b * SEQ:(b + 1) * SEQ, :]                         # (S, H), aligned slice
            xbh = jnp.broadcast_to(xb, (HEADS, SEQ, HIDDEN))         # (HEADS, S, H)

            # head-batched projections: one 3-D dot_general each (no lane slicing)
            q = jnp.einsum('hsk,hkd->hsd', xbh, wqh,
                           preferred_element_type=jnp.float32) + bqh  # (HEADS, S, dH)
            k = jnp.einsum('hsk,hkd->hsd', xbh, wkh,
                           preferred_element_type=jnp.float32) + bkh
            v = jnp.einsum('hsk,hkd->hsd', xbh, wvh,
                           preferred_element_type=jnp.float32) + bvh

            s = jnp.einsum('hqd,hkd->hqk', q * scale, k,
                           preferred_element_type=jnp.float32)        # (HEADS, S, S)
            s = s - jnp.max(s, axis=-1, keepdims=True)
            p = jnp.exp(s)
            p = p / jnp.sum(p, axis=-1, keepdims=True)

            oh = jnp.einsum('hqk,hkd->hqd', p, v,
                            preferred_element_type=jnp.float32)       # (HEADS, S, dH)
            # fold the output projection per head and reduce over heads
            # (concat_h(oh) @ Wo.T  ==  sum_h oh[h] @ Wo.T[h*dH:(h+1)*dH, :])
            ob = jnp.einsum('hsd,hdk->hsk', oh, woh,
                            preferred_element_type=jnp.float32)       # (HEADS, S, H)
            attn_rows.append(jnp.sum(ob, axis=0) + bo_ref[l])         # (S, H)

        attn = jnp.concatenate(attn_rows, axis=0)                     # (B*S, H)

        # residual + LayerNorm 1
        y = layer_norm(x + attn, g1_ref[l], be1_ref[l])
        # feed-forward (Linear -> ReLU -> Linear) on the full (B*S, ...) block
        f = jnp.dot(y, w1_ref[l], preferred_element_type=jnp.float32) + b1_ref[l]
        f = jnp.maximum(f, 0.0)
        f = jnp.dot(f, w2_ref[l], preferred_element_type=jnp.float32) + b2_ref[l]
        # residual + LayerNorm 2
        x = layer_norm(y + f, g2_ref[l], be2_ref[l])

    # fused final classifier: only the last sequence position of each batch element
    last = jnp.concatenate(
        [x[(b + 1) * SEQ - 1:(b + 1) * SEQ, :] for b in range(BATCH)], axis=0)  # (B, H)
    o_ref[...] = jnp.dot(last, fcw_ref[...],
                         preferred_element_type=jnp.float32) + fcb_ref[...]


# ---------------------------------------------------------------------------
# One-time weight restructuring (hoisted out of the forward pass)
# ---------------------------------------------------------------------------
def prepare_pallas_params(params):
    H, dH = HIDDEN, HEAD_DIM
    L = params['layers']

    def head_in_w(w_out_in):          # torch (out,in) -> (HEADS, H, dH); q_h = x @ w.T[:, h]
        return w_out_in.T.reshape(H, HEADS, dH).transpose(1, 0, 2)

    def head_in_b(b_vec):             # (H,) -> (HEADS, 1, dH)
        return b_vec.reshape(HEADS, 1, dH)

    return dict(
        emb=params['emb'],
        pos=params['pos'],
        wqh=jnp.stack([head_in_w(l['in_proj_w'][:H]) for l in L]),
        wkh=jnp.stack([head_in_w(l['in_proj_w'][H:2 * H]) for l in L]),
        wvh=jnp.stack([head_in_w(l['in_proj_w'][2 * H:]) for l in L]),
        bqh=jnp.stack([head_in_b(l['in_proj_b'][:H]) for l in L]),
        bkh=jnp.stack([head_in_b(l['in_proj_b'][H:2 * H]) for l in L]),
        bvh=jnp.stack([head_in_b(l['in_proj_b'][2 * H:]) for l in L]),
        woh=jnp.stack([l['out_proj_w'].T.reshape(HEADS, dH, H) for l in L]),
        bo=jnp.stack([l['out_proj_b'].reshape(1, H) for l in L]),
        g1=jnp.stack([l['ln1_g'].reshape(1, H) for l in L]),
        be1=jnp.stack([l['ln1_b'].reshape(1, H) for l in L]),
        w1=jnp.stack([l['lin1_w'].T for l in L]),
        b1=jnp.stack([l['lin1_b'].reshape(1, FFN) for l in L]),
        w2=jnp.stack([l['lin2_w'].T for l in L]),
        b2=jnp.stack([l['lin2_b'].reshape(1, H) for l in L]),
        g2=jnp.stack([l['ln2_g'].reshape(1, H) for l in L]),
        be2=jnp.stack([l['ln2_b'].reshape(1, H) for l in L]),
        fcw=params['fc_w'].T,
        fcb=params['fc_b'].reshape(1, OUT),
    )


# ---------------------------------------------------------------------------
# Forward: one tiny XLA gather + ONE fused pallas_call
# ---------------------------------------------------------------------------
@jax.jit
def forward_pallas(tokens, prep):
    B, S = tokens.shape
    # Embedding gather + positional-encoding add stay as one tiny XLA op
    # (data-dependent gather) feeding the fused kernel.
    # TODO(synk): could be folded into the kernel via scalar-prefetch row gather.
    x = (prep['emb'][tokens] + prep['pos'][:S]).reshape(B * S, HIDDEN).astype(jnp.float32)

    return pl.pallas_call(
        fused_transformer_kernel,
        out_shape=jax.ShapeDtypeStruct((B, OUT), jnp.float32),
    )(x, prep['wqh'], prep['wkh'], prep['wvh'],
      prep['bqh'], prep['bkh'], prep['bvh'],
      prep['woh'], prep['bo'], prep['g1'], prep['be1'],
      prep['w1'], prep['b1'], prep['w2'], prep['b2'],
      prep['g2'], prep['be2'], prep['fcw'], prep['fcb'])


# ---------------------------------------------------------------------------
# Pure-JAX reference (mirrors PyTorch forward, eval-mode)
# ---------------------------------------------------------------------------
def forward_reference(tokens, params):
    B, S = tokens.shape
    H = HIDDEN
    x = params['emb'][tokens] + params['pos'][:S]

    def ln(y, g, b):
        mu = y.mean(-1, keepdims=True)
        var = ((y - mu) ** 2).mean(-1, keepdims=True)
        return (y - mu) / jnp.sqrt(var + LN_EPS) * g + b

    for layer in params['layers']:
        wq, wk, wv = jnp.split(layer['in_proj_w'], 3, axis=0)
        bq, bk, bv = jnp.split(layer['in_proj_b'], 3)
        q = x @ wq.T + bq
        k = x @ wk.T + bk
        v = x @ wv.T + bv

        def heads(t):
            return t.reshape(B, S, HEADS, HEAD_DIM).transpose(0, 2, 1, 3)

        qh, kh, vh = heads(q), heads(k), heads(v)
        s = jnp.einsum('bhqd,bhkd->bhqk', qh, kh) / math.sqrt(HEAD_DIM)
        p = jax.nn.softmax(s, axis=-1)
        attn = jnp.einsum('bhqk,bhkd->bhqd', p, vh)
        attn = attn.transpose(0, 2, 1, 3).reshape(B, S, H)
        attn = attn @ layer['out_proj_w'].T + layer['out_proj_b']

        x = ln(x + attn, layer['ln1_g'], layer['ln1_b'])
        f = jax.nn.relu(x @ layer['lin1_w'].T + layer['lin1_b'])
        f = f @ layer['lin2_w'].T + layer['lin2_b']
        x = ln(x + f, layer['ln2_g'], layer['ln2_b'])

    return x[:, -1, :] @ params['fc_w'].T + params['fc_b']


# ---------------------------------------------------------------------------
# Deterministic parameter init (shapes follow the PyTorch module's __init__)
# ---------------------------------------------------------------------------
def init_params(key):
    keys = jax.random.split(key, 4 + LAYERS)

    def rnd(k, shape, scale=0.1):
        return (scale * jax.random.normal(k, shape)).astype(jnp.float32)

    params = {
        'emb': rnd(keys[0], (VOCAB, HIDDEN)),
        # nn.Parameter(torch.zeros(max_seq_len, hidden)): same shape, random init
        # so the add is exercised meaningfully.
        'pos': rnd(keys[1], (MAX_SEQ, HIDDEN)),
        'fc_w': rnd(keys[2], (OUT, HIDDEN)),     # PyTorch Linear weight (out, in)
        'fc_b': rnd(keys[3], (OUT,)),
        'layers': [],
    }
    for l in range(LAYERS):
        lk = jax.random.split(keys[4 + l], 12)
        params['layers'].append(dict(
            in_proj_w=rnd(lk[0], (3 * HIDDEN, HIDDEN)),
            in_proj_b=rnd(lk[1], (3 * HIDDEN,)),
            out_proj_w=rnd(lk[2], (HIDDEN, HIDDEN)),
            out_proj_b=rnd(lk[3], (HIDDEN,)),
            lin1_w=rnd(lk[4], (FFN, HIDDEN)),
            lin1_b=rnd(lk[5], (FFN,)),
            lin2_w=rnd(lk[6], (HIDDEN, FFN)),
            lin2_b=rnd(lk[7], (HIDDEN,)),
            ln1_g=(1.0 + rnd(lk[8], (HIDDEN,), 0.05)),
            ln1_b=rnd(lk[9], (HIDDEN,), 0.05),
            ln2_g=(1.0 + rnd(lk[10], (HIDDEN,), 0.05)),
            ln2_b=rnd(lk[11], (HIDDEN,), 0.05),
        ))
    return params


if __name__ == "__main__":
    key = jax.random.PRNGKey(0)
    pkey, tkey = jax.random.split(key)
    params = init_params(pkey)
    prep = prepare_pallas_params(params)   # one-time layout prep, outside the hot path
    # x: integer token ids, shape (batch, seq)
    tokens = jax.random.randint(tkey, (BATCH, SEQ), 0, VOCAB, dtype=jnp.int32)

    out = forward_pallas(tokens, prep)
    out = jax.block_until_ready(out)

    # high-precision reference (the kernel itself runs at default MXU precision)
    with jax.default_matmul_precision("highest"):
        ref = forward_reference(tokens, params)

    assert out.shape == (BATCH, OUT), out.shape
    assert jnp.allclose(out, ref, atol=2e-2, rtol=2e-2), (out, ref)
    print("KERNEL_OK")
</pallas_src>

<mosaic_0001>
module attributes {stable_mosaic.version = 11 : i64} {
  func.func @fused_transformer_kernel(%arg0: memref<16x32xf32, #tpu.memory_space<vmem>>, %arg1: memref<2x4x32x8xf32, #tpu.memory_space<vmem>>, %arg2: memref<2x4x32x8xf32, #tpu.memory_space<vmem>>, %arg3: memref<2x4x32x8xf32, #tpu.memory_space<vmem>>, %arg4: memref<2x4x1x8xf32, #tpu.memory_space<vmem>>, %arg5: memref<2x4x1x8xf32, #tpu.memory_space<vmem>>, %arg6: memref<2x4x1x8xf32, #tpu.memory_space<vmem>>, %arg7: memref<2x4x8x32xf32, #tpu.memory_space<vmem>>, %arg8: memref<2x1x32xf32, #tpu.memory_space<vmem>>, %arg9: memref<2x1x32xf32, #tpu.memory_space<vmem>>, %arg10: memref<2x1x32xf32, #tpu.memory_space<vmem>>, %arg11: memref<2x32x128xf32, #tpu.memory_space<vmem>>, %arg12: memref<2x1x128xf32, #tpu.memory_space<vmem>>, %arg13: memref<2x128x32xf32, #tpu.memory_space<vmem>>, %arg14: memref<2x1x32xf32, #tpu.memory_space<vmem>>, %arg15: memref<2x1x32xf32, #tpu.memory_space<vmem>>, %arg16: memref<2x1x32xf32, #tpu.memory_space<vmem>>, %arg17: memref<32x8xf32, #tpu.memory_space<vmem>>, %arg18: memref<1x8xf32, #tpu.memory_space<vmem>>, %arg19: memref<2x8xf32, #tpu.memory_space<vmem>>) attributes {dimension_semantics = [], scalar_prefetch = 0 : i64, scratch_operands = 0 : i64, tpu.core_type = #tpu.core_type<tc>} {
    %c0 = arith.constant 0 : index
    %c0_0 = arith.constant 0 : index
    %0 = vector.load %arg0[%c0, %c0_0] : memref<16x32xf32, #tpu.memory_space<vmem>>, vector<16x32xf32>
    %c0_1 = arith.constant 0 : index
    %c0_2 = arith.constant 0 : index
    %c0_3 = arith.constant 0 : index
    %c0_4 = arith.constant 0 : index
    %1 = vector.load %arg1[%c0_1, %c0_2, %c0_3, %c0_4] : memref<2x4x32x8xf32, #tpu.memory_space<vmem>>, vector<1x4x32x8xf32>
    %2 = vector.shape_cast %1 : vector<1x4x32x8xf32> to vector<4x32x8xf32>
    %c0_5 = arith.constant 0 : index
    %c0_6 = arith.constant 0 : index
    %c0_7 = arith.constant 0 : index
    %c0_8 = arith.constant 0 : index
    %3 = vector.load %arg2[%c0_5, %c0_6, %c0_7, %c0_8] : memref<2x4x32x8xf32, #tpu.memory_space<vmem>>, vector<1x4x32x8xf32>
    %4 = vector.shape_cast %3 : vector<1x4x32x8xf32> to vector<4x32x8xf32>
    %c0_9 = arith.constant 0 : index
    %c0_10 = arith.constant 0 : index
    %c0_11 = arith.constant 0 : index
    %c0_12 = arith.constant 0 : index
    %5 = vector.load %arg3[%c0_9, %c0_10, %c0_11, %c0_12] : memref<2x4x32x8xf32, #tpu.memory_space<vmem>>, vector<1x4x32x8xf32>
    %6 = vector.shape_cast %5 : vector<1x4x32x8xf32> to vector<4x32x8xf32>
    %c0_13 = arith.constant 0 : index
    %c0_14 = arith.constant 0 : index
    %c0_15 = arith.constant 0 : index
    %c0_16 = arith.constant 0 : index
    %7 = vector.load %arg4[%c0_13, %c0_14, %c0_15, %c0_16] : memref<2x4x1x8xf32, #tpu.memory_space<vmem>>, vector<1x4x1x8xf32>
    %8 = vector.shape_cast %7 : vector<1x4x1x8xf32> to vector<4x1x8xf32>
    %c0_17 = arith.constant 0 : index
    %c0_18 = arith.constant 0 : index
    %c0_19 = arith.constant 0 : index
    %c0_20 = arith.constant 0 : index
    %9 = vector.load %arg5[%c0_17, %c0_18, %c0_19, %c0_20] : memref<2x4x1x8xf32, #tpu.memory_space<vmem>>, vector<1x4x1x8xf32>
    %10 = vector.shape_cast %9 : vector<1x4x1x8xf32> to vector<4x1x8xf32>
    %c0_21 = arith.constant 0 : index
    %c0_22 = arith.constant 0 : index
    %c0_23 = arith.constant 0 : index
    %c0_24 = arith.constant 0 : index
    %11 = vector.load %arg6[%c0_21, %c0_22, %c0_23, %c0_24] : memref<2x4x1x8xf32, #tpu.memory_space<vmem>>, vector<1x4x1x8xf32>
    %12 = vector.shape_cast %11 : vector<1x4x1x8xf32> to vector<4x1x8xf32>
    %c0_25 = arith.constant 0 : index
    %c0_26 = arith.constant 0 : index
    %c0_27 = arith.constant 0 : index
    %c0_28 = arith.constant 0 : index
    %13 = vector.load %arg7[%c0_25, %c0_26, %c0_27, %c0_28] : memref<2x4x8x32xf32, #tpu.memory_space<vmem>>, vector<1x4x8x32xf32>
    %14 = vector.shape_cast %13 : vector<1x4x8x32xf32> to vector<4x8x32xf32>
    %15 = vector.extract_strided_slice %0 {offsets = [0, 0], sizes = [8, 32], strides = [1, 1]} : vector<16x32xf32> to vector<8x32xf32>
    %16 = vector.shape_cast %15 : vector<8x32xf32> to vector<1x8x32xf32>
    %17 = vector.broadcast %16 : vector<1x8x32xf32> to vector<4x8x32xf32>
    "tpu.trace_start"() <{level = 10 : i32, message = "hsk,hkd->hsd"}> : () -> ()
    %cst = arith.constant dense<0.000000e+00> : vector<4x8x8xf32>
    %18 = tpu.matmul %17, %2, %cst {dimension_numbers = #tpu.dot_dimension_numbers<[2], [1], [1], [2], [0, 0, 0, 1, 1, 2], [0], [0]>} : vector<4x8x32xf32>, vector<4x32x8xf32>, vector<4x8x8xf32> -> vector<4x8x8xf32>
    "tpu.trace_stop"() : () -> ()
    %19 = vector.broadcast %8 : vector<4x1x8xf32> to vector<4x8x8xf32>
    %20 = arith.addf %18, %19 : vector<4x8x8xf32>
    "tpu.trace_start"() <{level = 10 : i32, message = "hsk,hkd->hsd"}> : () -> ()
    %cst_29 = arith.constant dense<0.000000e+00> : vector<4x8x8xf32>
    %21 = tpu.matmul %17, %4, %cst_29 {dimension_numbers = #tpu.dot_dimension_numbers<[2], [1], [1], [2], [0, 0, 0, 1, 1, 2], [0], [0]>} : vector<4x8x32xf32>, vector<4x32x8xf32>, vector<4x8x8xf32> -> vector<4x8x8xf32>
    "tpu.trace_stop"() : () -> ()
    %22 = vector.broadcast %10 : vector<4x1x8xf32> to vector<4x8x8xf32>
    %23 = arith.addf %21, %22 : vector<4x8x8xf32>
    "tpu.trace_start"() <{level = 10 : i32, message = "hsk,hkd->hsd"}> : () -> ()
    %cst_30 = arith.constant dense<0.000000e+00> : vector<4x8x8xf32>
    %24 = tpu.matmul %17, %6, %cst_30 {dimension_numbers = #tpu.dot_dimension_numbers<[2], [1], [1], [2], [0, 0, 0, 1, 1, 2], [0], [0]>} : vector<4x8x32xf32>, vector<4x32x8xf32>, vector<4x8x8xf32> -> vector<4x8x8xf32>
    "tpu.trace_stop"() : () -> ()
    %25 = vector.broadcast %12 : vector<4x1x8xf32> to vector<4x8x8xf32>
    %26 = arith.addf %24, %25 : vector<4x8x8xf32>
    %cst_31 = arith.constant 0.353553385 : f32
    %27 = vector.broadcast %cst_31 : f32 to vector<4x8x8xf32>
    %28 = arith.mulf %20, %27 : vector<4x8x8xf32>
    "tpu.trace_start"() <{level = 10 : i32, message = "hqd,hkd->hqk"}> : () -> ()
    %cst_32 = arith.constant dense<0.000000e+00> : vector<4x8x8xf32>
    %29 = tpu.matmul %28, %23, %cst_32 {dimension_numbers = #tpu.dot_dimension_numbers<[2], [2], [1], [1], [0, 0, 0, 1, 1, 1], [0], [0]>} : vector<4x8x8xf32>, vector<4x8x8xf32>, vector<4x8x8xf32> -> vector<4x8x8xf32>
    "tpu.trace_stop"() : () -> ()
    %cst_33 = arith.constant dense<0xFF800000> : vector<4x8xf32>
    %30 = vector.multi_reduction <maximumf>, %29, %cst_33 [2] : vector<4x8x8xf32> to vector<4x8xf32>
    %31 = vector.shape_cast %30 : vector<4x8xf32> to vector<4x8x1xf32>
    %32 = vector.broadcast %31 : vector<4x8x1xf32> to vector<4x8x8xf32>
    %33 = arith.subf %29, %32 : vector<4x8x8xf32>
    %34 = math.exp %33 : vector<4x8x8xf32>
    %cst_34 = arith.constant dense<0.000000e+00> : vector<4x8xf32>
    %35 = vector.multi_reduction <add>, %34, %cst_34 [2] : vector<4x8x8xf32> to vector<4x8xf32>
    %36 = vector.shape_cast %35 : vector<4x8xf32> to vector<4x8x1xf32>
    %37 = vector.broadcast %36 : vector<4x8x1xf32> to vector<4x8x8xf32>
    %38 = arith.divf %34, %37 : vector<4x8x8xf32>
    "tpu.trace_start"() <{level = 10 : i32, message = "hqk,hkd->hqd"}> : () -> ()
    %cst_35 = arith.constant dense<0.000000e+00> : vector<4x8x8xf32>
    %39 = tpu.matmul %38, %26, %cst_35 {dimension_numbers = #tpu.dot_dimension_numbers<[2], [1], [1], [2], [0, 0, 0, 1, 1, 2], [0], [0]>} : vector<4x8x8xf32>, vector<4x8x8xf32>, vector<4x8x8xf32> -> vector<4x8x8xf32>
    "tpu.trace_stop"() : () -> ()
    "tpu.trace_start"() <{level = 10 : i32, message = "hsd,hdk->hsk"}> : () -> ()
    %cst_36 = arith.constant dense<0.000000e+00> : vector<4x8x32xf32>
    %40 = tpu.matmul %39, %14, %cst_36 {dimension_numbers = #tpu.dot_dimension_numbers<[2], [1], [1], [2], [0, 0, 0, 1, 1, 2], [0], [0]>} : vector<4x8x8xf32>, vector<4x8x32xf32>, vector<4x8x32xf32> -> vector<4x8x32xf32>
    "tpu.trace_stop"() : () -> ()
    %cst_37 = arith.constant dense<0.000000e+00> : vector<8x32xf32>
    %41 = vector.multi_reduction <add>, %40, %cst_37 [0] : vector<4x8x32xf32> to vector<8x32xf32>
    %c0_38 = arith.constant 0 : index
    %c0_39 = arith.constant 0 : index
    %c0_40 = arith.constant 0 : index
    %42 = vector.load %arg8[%c0_38, %c0_39, %c0_40] : memref<2x1x32xf32, #tpu.memory_space<vmem>>, vector<1x1x32xf32>
    %43 = vector.shape_cast %42 : vector<1x1x32xf32> to vector<1x32xf32>
    %44 = vector.broadcast %43 : vector<1x32xf32> to vector<8x32xf32>
    %45 = arith.addf %41, %44 : vector<8x32xf32>
    %46 = vector.extract_strided_slice %0 {offsets = [8, 0], sizes = [8, 32], strides = [1, 1]} : vector<16x32xf32> to vector<8x32xf32>
    %47 = vector.shape_cast %46 : vector<8x32xf32> to vector<1x8x32xf32>
    %48 = vector.broadcast %47 : vector<1x8x32xf32> to vector<4x8x32xf32>
    "tpu.trace_start"() <{level = 10 : i32, message = "hsk,hkd->hsd"}> : () -> ()
    %cst_41 = arith.constant dense<0.000000e+00> : vector<4x8x8xf32>
    %49 = tpu.matmul %48, %2, %cst_41 {dimension_numbers = #tpu.dot_dimension_numbers<[2], [1], [1], [2], [0, 0, 0, 1, 1, 2], [0], [0]>} : vector<4x8x32xf32>, vector<4x32x8xf32>, vector<4x8x8xf32> -> vector<4x8x8xf32>
    "tpu.trace_stop"() : () -> ()
    %50 = vector.broadcast %8 : vector<4x1x8xf32> to vector<4x8x8xf32>
    %51 = arith.addf %49, %50 : vector<4x8x8xf32>
    "tpu.trace_start"() <{level = 10 : i32, message = "hsk,hkd->hsd"}> : () -> ()
    %cst_42 = arith.constant dense<0.000000e+00> : vector<4x8x8xf32>
    %52 = tpu.matmul %48, %4, %cst_42 {dimension_numbers = #tpu.dot_dimension_numbers<[2], [1], [1], [2], [0, 0, 0, 1, 1, 2], [0], [0]>} : vector<4x8x32xf32>, vector<4x32x8xf32>, vector<4x8x8xf32> -> vector<4x8x8xf32>
    "tpu.trace_stop"() : () -> ()
    %53 = vector.broadcast %10 : vector<4x1x8xf32> to vector<4x8x8xf32>
    %54 = arith.addf %52, %53 : vector<4x8x8xf32>
    "tpu.trace_start"() <{level = 10 : i32, message = "hsk,hkd->hsd"}> : () -> ()
    %cst_43 = arith.constant dense<0.000000e+00> : vector<4x8x8xf32>
    %55 = tpu.matmul %48, %6, %cst_43 {dimension_numbers = #tpu.dot_dimension_numbers<[2], [1], [1], [2], [0, 0, 0, 1, 1, 2], [0], [0]>} : vector<4x8x32xf32>, vector<4x32x8xf32>, vector<4x8x8xf32> -> vector<4x8x8xf32>
    "tpu.trace_stop"() : () -> ()
    %56 = vector.broadcast %12 : vector<4x1x8xf32> to vector<4x8x8xf32>
    %57 = arith.addf %55, %56 : vector<4x8x8xf32>
    %cst_44 = arith.constant 0.353553385 : f32
    %58 = vector.broadcast %cst_44 : f32 to vector<4x8x8xf32>
    %59 = arith.mulf %51, %58 : vector<4x8x8xf32>
    "tpu.trace_start"() <{level = 10 : i32, message = "hqd,hkd->hqk"}> : () -> ()
    %cst_45 = arith.constant dense<0.000000e+00> : vector<4x8x8xf32>
    %60 = tpu.matmul %59, %54, %cst_45 {dimension_numbers = #tpu.dot_dimension_numbers<[2], [2], [1], [1], [0, 0, 0, 1, 1, 1], [0], [0]>} : vector<4x8x8xf32>, vector<4x8x8xf32>, vector<4x8x8xf32> -> vector<4x8x8xf32>
    "tpu.trace_stop"() : () -> ()
    %cst_46 = arith.constant dense<0xFF800000> : vector<4x8xf32>
    %61 = vector.multi_reduction <maximumf>, %60, %cst_46 [2] : vector<4x8x8xf32> to vector<4x8xf32>
    %62 = vector.shape_cast %61 : vector<4x8xf32> to vector<4x8x1xf32>
    %63 = vector.broadcast %62 : vector<4x8x1xf32> to vector<4x8x8xf32>
    %64 = arith.subf %60, %63 : vector<4x8x8xf32>
    %65 = math.exp %64 : vector<4x8x8xf32>
    %cst_47 = arith.constant dense<0.000000e+00> : vector<4x8xf32>
    %66 = vector.multi_reduction <add>, %65, %cst_47 [2] : vector<4x8x8xf32> to vector<4x8xf32>
    %67 = vector.shape_cast %66 : vector<4x8xf32> to vector<4x8x1xf32>
    %68 = vector.broadcast %67 : vector<4x8x1xf32> to vector<4x8x8xf32>
    %69 = arith.divf %65, %68 : vector<4x8x8xf32>
    "tpu.trace_start"() <{level = 10 : i32, message = "hqk,hkd->hqd"}> : () -> ()
    %cst_48 = arith.constant dense<0.000000e+00> : vector<4x8x8xf32>
    %70 = tpu.matmul %69, %57, %cst_48 {dimension_numbers = #tpu.dot_dimension_numbers<[2], [1], [1], [2], [0, 0, 0, 1, 1, 2], [0], [0]>} : vector<4x8x8xf32>, vector<4x8x8xf32>, vector<4x8x8xf32> -> vector<4x8x8xf32>
    "tpu.trace_stop"() : () -> ()
    "tpu.trace_start"() <{level = 10 : i32, message = "hsd,hdk->hsk"}> : () -> ()
    %cst_49 = arith.constant dense<0.000000e+00> : vector<4x8x32xf32>
    %71 = tpu.matmul %70, %14, %cst_49 {dimension_numbers = #tpu.dot_dimension_numbers<[2], [1], [1], [2], [0, 0, 0, 1, 1, 2], [0], [0]>} : vector<4x8x8xf32>, vector<4x8x32xf32>, vector<4x8x32xf32> -> vector<4x8x32xf32>
    "tpu.trace_stop"() : () -> ()
    %cst_50 = arith.constant dense<0.000000e+00> : vector<8x32xf32>
    %72 = vector.multi_reduction <add>, %71, %cst_50 [0] : vector<4x8x32xf32> to vector<8x32xf32>
    %c0_51 = arith.constant 0 : index
    %c0_52 = arith.constant 0 : index
    %c0_53 = arith.constant 0 : index
    %73 = vector.load %arg8[%c0_51, %c0_52, %c0_53] : memref<2x1x32xf32, #tpu.memory_space<vmem>>, vector<1x1x32xf32>
    %74 = vector.shape_cast %73 : vector<1x1x32xf32> to vector<1x32xf32>
    %75 = vector.broadcast %74 : vector<1x32xf32> to vector<8x32xf32>
    %76 = arith.addf %72, %75 : vector<8x32xf32>
    %77 = tpu.concatenate %45, %76 in 0 : vector<8x32xf32>, vector<8x32xf32> -> vector<16x32xf32>
    %78 = arith.addf %0, %77 : vector<16x32xf32>
    %c0_54 = arith.constant 0 : index
    %c0_55 = arith.constant 0 : index
    %c0_56 = arith.constant 0 : index
    %79 = vector.load %arg9[%c0_54, %c0_55, %c0_56] : memref<2x1x32xf32, #tpu.memory_space<vmem>>, vector<1x1x32xf32>
    %80 = vector.shape_cast %79 : vector<1x1x32xf32> to vector<1x32xf32>
    %c0_57 = arith.constant 0 : index
    %c0_58 = arith.constant 0 : index
    %c0_59 = arith.constant 0 : index
    %81 = vector.load %arg10[%c0_57, %c0_58, %c0_59] : memref<2x1x32xf32, #tpu.memory_space<vmem>>, vector<1x1x32xf32>
    %82 = vector.shape_cast %81 : vector<1x1x32xf32> to vector<1x32xf32>
    %cst_60 = arith.constant dense<0.000000e+00> : vector<16xf32>
    %83 = vector.multi_reduction <add>, %78, %cst_60 [1] : vector<16x32xf32> to vector<16xf32>
    %84 = vector.shape_cast %83 : vector<16xf32> to vector<16x1xf32>
    %cst_61 = arith.constant 3.200000e+01 : f32
    %85 = vector.broadcast %cst_61 : f32 to vector<16x1xf32>
    %86 = arith.divf %84, %85 : vector<16x1xf32>
    %87 = vector.broadcast %86 : vector<16x1xf32> to vector<16x32xf32>
    %88 = arith.subf %78, %87 : vector<16x32xf32>
    %89 = arith.mulf %88, %88 : vector<16x32xf32>
    %cst_62 = arith.constant dense<0.000000e+00> : vector<16xf32>
    %90 = vector.multi_reduction <add>, %89, %cst_62 [1] : vector<16x32xf32> to vector<16xf32>
    %91 = vector.shape_cast %90 : vector<16xf32> to vector<16x1xf32>
    %cst_63 = arith.constant 3.200000e+01 : f32
    %92 = vector.broadcast %cst_63 : f32 to vector<16x1xf32>
    %93 = arith.divf %91, %92 : vector<16x1xf32>
    %94 = vector.broadcast %86 : vector<16x1xf32> to vector<16x32xf32>
    %95 = arith.subf %78, %94 : vector<16x32xf32>
    %cst_64 = arith.constant 9.99999974E-6 : f32
    %96 = vector.broadcast %cst_64 : f32 to vector<16x1xf32>
    %97 = arith.addf %93, %96 : vector<16x1xf32>
    %98 = math.rsqrt %97 : vector<16x1xf32>
    %99 = vector.broadcast %98 : vector<16x1xf32> to vector<16x32xf32>
    %100 = arith.mulf %95, %99 : vector<16x32xf32>
    %101 = vector.broadcast %80 : vector<1x32xf32> to vector<16x32xf32>
    %102 = arith.mulf %100, %101 : vector<16x32xf32>
    %103 = vector.broadcast %82 : vector<1x32xf32> to vector<16x32xf32>
    %104 = arith.addf %102, %103 : vector<16x32xf32>
    %c0_65 = arith.constant 0 : index
    %c0_66 = arith.constant 0 : index
    %c0_67 = arith.constant 0 : index
    %105 = vector.load %arg11[%c0_65, %c0_66, %c0_67] : memref<2x32x128xf32, #tpu.memory_space<vmem>>, vector<1x32x128xf32>
    %106 = vector.shape_cast %105 : vector<1x32x128xf32> to vector<32x128xf32>
    %cst_68 = arith.constant dense<0.000000e+00> : vector<16x128xf32>
    %107 = tpu.matmul %104, %106, %cst_68 {dimension_numbers = #tpu.dot_dimension_numbers<[1], [0], [0], [1], [0, 0, 1, 1], [], []>} : vector<16x32xf32>, vector<32x128xf32>, vector<16x128xf32> -> vector<16x128xf32>
    %c0_69 = arith.constant 0 : index
    %c0_70 = arith.constant 0 : index
    %c0_71 = arith.constant 0 : index
    %108 = vector.load %arg12[%c0_69, %c0_70, %c0_71] : memref<2x1x128xf32, #tpu.memory_space<vmem>>, vector<1x1x128xf32>
    %109 = vector.shape_cast %108 : vector<1x1x128xf32> to vector<1x128xf32>
    %110 = vector.broadcast %109 : vector<1x128xf32> to vector<16x128xf32>
    %111 = arith.addf %107, %110 : vector<16x128xf32>
    %cst_72 = arith.constant 0.000000e+00 : f32
    %112 = vector.broadcast %cst_72 : f32 to vector<16x128xf32>
    %113 = arith.maximumf %111, %112 : vector<16x128xf32>
    %c0_73 = arith.constant 0 : index
    %c0_74 = arith.constant 0 : index
    %c0_75 = arith.constant 0 : index
    %114 = vector.load %arg13[%c0_73, %c0_74, %c0_75] : memref<2x128x32xf32, #tpu.memory_space<vmem>>, vector<1x128x32xf32>
    %115 = vector.shape_cast %114 : vector<1x128x32xf32> to vector<128x32xf32>
    %cst_76 = arith.constant dense<0.000000e+00> : vector<16x32xf32>
    %116 = tpu.matmul %113, %115, %cst_76 {dimension_numbers = #tpu.dot_dimension_numbers<[1], [0], [0], [1], [0, 0, 1, 1], [], []>} : vector<16x128xf32>, vector<128x32xf32>, vector<16x32xf32> -> vector<16x32xf32>
    %c0_77 = arith.constant 0 : index
    %c0_78 = arith.constant 0 : index
    %c0_79 = arith.constant 0 : index
    %117 = vector.load %arg14[%c0_77, %c0_78, %c0_79] : memref<2x1x32xf32, #tpu.memory_space<vmem>>, vector<1x1x32xf32>
    %118 = vector.shape_cast %117 : vector<1x1x32xf32> to vector<1x32xf32>
    %119 = vector.broadcast %118 : vector<1x32xf32> to vector<16x32xf32>
    %120 = arith.addf %116, %119 : vector<16x32xf32>
    %121 = arith.addf %104, %120 : vector<16x32xf32>
    %c0_80 = arith.constant 0 : index
    %c0_81 = arith.constant 0 : index
    %c0_82 = arith.constant 0 : index
    %122 = vector.load %arg15[%c0_80, %c0_81, %c0_82] : memref<2x1x32xf32, #tpu.memory_space<vmem>>, vector<1x1x32xf32>
    %123 = vector.shape_cast %122 : vector<1x1x32xf32> to vector<1x32xf32>
    %c0_83 = arith.constant 0 : index
    %c0_84 = arith.constant 0 : index
    %c0_85 = arith.constant 0 : index
    %124 = vector.load %arg16[%c0_83, %c0_84, %c0_85] : memref<2x1x32xf32, #tpu.memory_space<vmem>>, vector<1x1x32xf32>
    %125 = vector.shape_cast %124 : vector<1x1x32xf32> to vector<1x32xf32>
    %cst_86 = arith.constant dense<0.000000e+00> : vector<16xf32>
    %126 = vector.multi_reduction <add>, %121, %cst_86 [1] : vector<16x32xf32> to vector<16xf32>
    %127 = vector.shape_cast %126 : vector<16xf32> to vector<16x1xf32>
    %cst_87 = arith.constant 3.200000e+01 : f32
    %128 = vector.broadcast %cst_87 : f32 to vector<16x1xf32>
    %129 = arith.divf %127, %128 : vector<16x1xf32>
    %130 = vector.broadcast %129 : vector<16x1xf32> to vector<16x32xf32>
    %131 = arith.subf %121, %130 : vector<16x32xf32>
    %132 = arith.mulf %131, %131 : vector<16x32xf32>
    %cst_88 = arith.constant dense<0.000000e+00> : vector<16xf32>
    %133 = vector.multi_reduction <add>, %132, %cst_88 [1] : vector<16x32xf32> to vector<16xf32>
    %134 = vector.shape_cast %133 : vector<16xf32> to vector<16x1xf32>
    %cst_89 = arith.constant 3.200000e+01 : f32
    %135 = vector.broadcast %cst_89 : f32 to vector<16x1xf32>
    %136 = arith.divf %134, %135 : vector<16x1xf32>
    %137 = vector.broadcast %129 : vector<16x1xf32> to vector<16x32xf32>
    %138 = arith.subf %121, %137 : vector<16x32xf32>
    %cst_90 = arith.constant 9.99999974E-6 : f32
    %139 = vector.broadcast %cst_90 : f32 to vector<16x1xf32>
    %140 = arith.addf %136, %139 : vector<16x1xf32>
    %141 = math.rsqrt %140 : vector<16x1xf32>
    %142 = vector.broadcast %141 : vector<16x1xf32> to vector<16x32xf32>
    %143 = arith.mulf %138, %142 : vector<16x32xf32>
    %144 = vector.broadcast %123 : vector<1x32xf32> to vector<16x32xf32>
    %145 = arith.mulf %143, %144 : vector<16x32xf32>
    %146 = vector.broadcast %125 : vector<1x32xf32> to vector<16x32xf32>
    %147 = arith.addf %145, %146 : vector<16x32xf32>
    %c1 = arith.constant 1 : index
    %c0_91 = arith.constant 0 : index
    %c0_92 = arith.constant 0 : index
    %c0_93 = arith.constant 0 : index
    %148 = vector.load %arg1[%c1, %c0_91, %c0_92, %c0_93] : memref<2x4x32x8xf32, #tpu.memory_space<vmem>>, vector<1x4x32x8xf32>
    %149 = vector.shape_cast %148 : vector<1x4x32x8xf32> to vector<4x32x8xf32>
    %c1_94 = arith.constant 1 : index
    %c0_95 = arith.constant 0 : index
    %c0_96 = arith.constant 0 : index
    %c0_97 = arith.constant 0 : index
    %150 = vector.load %arg2[%c1_94, %c0_95, %c0_96, %c0_97] : memref<2x4x32x8xf32, #tpu.memory_space<vmem>>, vector<1x4x32x8xf32>
    %151 = vector.shape_cast %150 : vector<1x4x32x8xf32> to vector<4x32x8xf32>
    %c1_98 = arith.constant 1 : index
    %c0_99 = arith.constant 0 : index
    %c0_100 = arith.constant 0 : index
    %c0_101 = arith.constant 0 : index
    %152 = vector.load %arg3[%c1_98, %c0_99, %c0_100, %c0_101] : memref<2x4x32x8xf32, #tpu.memory_space<vmem>>, vector<1x4x32x8xf32>
    %153 = vector.shape_cast %152 : vector<1x4x32x8xf32> to vector<4x32x8xf32>
    %c1_102 = arith.constant 1 : index
    %c0_103 = arith.constant 0 : index
    %c0_104 = arith.constant 0 : index
    %c0_105 = arith.constant 0 : index
    %154 = vector.load %arg4[%c1_102, %c0_103, %c0_104, %c0_105] : memref<2x4x1x8xf32, #tpu.memory_space<vmem>>, vector<1x4x1x8xf32>
    %155 = vector.shape_cast %154 : vector<1x4x1x8xf32> to vector<4x1x8xf32>
    %c1_106 = arith.constant 1 : index
    %c0_107 = arith.constant 0 : index
    %c0_108 = arith.constant 0 : index
    %c0_109 = arith.constant 0 : index
    %156 = vector.load %arg5[%c1_106, %c0_107, %c0_108, %c0_109] : memref<2x4x1x8xf32, #tpu.memory_space<vmem>>, vector<1x4x1x8xf32>
    %157 = vector.shape_cast %156 : vector<1x4x1x8xf32> to vector<4x1x8xf32>
    %c1_110 = arith.constant 1 : index
    %c0_111 = arith.constant 0 : index
    %c0_112 = arith.constant 0 : index
    %c0_113 = arith.constant 0 : index
    %158 = vector.load %arg6[%c1_110, %c0_111, %c0_112, %c0_113] : memref<2x4x1x8xf32, #tpu.memory_space<vmem>>, vector<1x4x1x8xf32>
    %159 = vector.shape_cast %158 : vector<1x4x1x8xf32> to vector<4x1x8xf32>
    %c1_114 = arith.constant 1 : index
    %c0_115 = arith.constant 0 : index
    %c0_116 = arith.constant 0 : index
    %c0_117 = arith.constant 0 : index
    %160 = vector.load %arg7[%c1_114, %c0_115, %c0_116, %c0_117] : memref<2x4x8x32xf32, #tpu.memory_space<vmem>>, vector<1x4x8x32xf32>
    %161 = vector.shape_cast %160 : vector<1x4x8x32xf32> to vector<4x8x32xf32>
    %162 = vector.extract_strided_slice %147 {offsets = [0, 0], sizes = [8, 32], strides = [1, 1]} : vector<16x32xf32> to vector<8x32xf32>
    %163 = vector.shape_cast %162 : vector<8x32xf32> to vector<1x8x32xf32>
    %164 = vector.broadcast %163 : vector<1x8x32xf32> to vector<4x8x32xf32>
    "tpu.trace_start"() <{level = 10 : i32, message = "hsk,hkd->hsd"}> : () -> ()
    %cst_118 = arith.constant dense<0.000000e+00> : vector<4x8x8xf32>
    %165 = tpu.matmul %164, %149, %cst_118 {dimension_numbers = #tpu.dot_dimension_numbers<[2], [1], [1], [2], [0, 0, 0, 1, 1, 2], [0], [0]>} : vector<4x8x32xf32>, vector<4x32x8xf32>, vector<4x8x8xf32> -> vector<4x8x8xf32>
    "tpu.trace_stop"() : () -> ()
    %166 = vector.broadcast %155 : vector<4x1x8xf32> to vector<4x8x8xf32>
    %167 = arith.addf %165, %166 : vector<4x8x8xf32>
    "tpu.trace_start"() <{level = 10 : i32, message = "hsk,hkd->hsd"}> : () -> ()
    %cst_119 = arith.constant dense<0.000000e+00> : vector<4x8x8xf32>
    %168 = tpu.matmul %164, %151, %cst_119 {dimension_numbers = #tpu.dot_dimension_numbers<[2], [1], [1], [2], [0, 0, 0, 1, 1, 2], [0], [0]>} : vector<4x8x32xf32>, vector<4x32x8xf32>, vector<4x8x8xf32> -> vector<4x8x8xf32>
    "tpu.trace_stop"() : () -> ()
    %169 = vector.broadcast %157 : vector<4x1x8xf32> to vector<4x8x8xf32>
    %170 = arith.addf %168, %169 : vector<4x8x8xf32>
    "tpu.trace_start"() <{level = 10 : i32, message = "hsk,hkd->hsd"}> : () -> ()
    %cst_120 = arith.constant dense<0.000000e+00> : vector<4x8x8xf32>
    %171 = tpu.matmul %164, %153, %cst_120 {dimension_numbers = #tpu.dot_dimension_numbers<[2], [1], [1], [2], [0, 0, 0, 1, 1, 2], [0], [0]>} : vector<4x8x32xf32>, vector<4x32x8xf32>, vector<4x8x8xf32> -> vector<4x8x8xf32>
    "tpu.trace_stop"() : () -> ()
    %172 = vector.broadcast %159 : vector<4x1x8xf32> to vector<4x8x8xf32>
    %173 = arith.addf %171, %172 : vector<4x8x8xf32>
    %cst_121 = arith.constant 0.353553385 : f32
    %174 = vector.broadcast %cst_121 : f32 to vector<4x8x8xf32>
    %175 = arith.mulf %167, %174 : vector<4x8x8xf32>
    "tpu.trace_start"() <{level = 10 : i32, message = "hqd,hkd->hqk"}> : () -> ()
    %cst_122 = arith.constant dense<0.000000e+00> : vector<4x8x8xf32>
    %176 = tpu.matmul %175, %170, %cst_122 {dimension_numbers = #tpu.dot_dimension_numbers<[2], [2], [1], [1], [0, 0, 0, 1, 1, 1], [0], [0]>} : vector<4x8x8xf32>, vector<4x8x8xf32>, vector<4x8x8xf32> -> vector<4x8x8xf32>
    "tpu.trace_stop"() : () -> ()
    %cst_123 = arith.constant dense<0xFF800000> : vector<4x8xf32>
    %177 = vector.multi_reduction <maximumf>, %176, %cst_123 [2] : vector<4x8x8xf32> to vector<4x8xf32>
    %178 = vector.shape_cast %177 : vector<4x8xf32> to vector<4x8x1xf32>
    %179 = vector.broadcast %178 : vector<4x8x1xf32> to vector<4x8x8xf32>
    %180 = arith.subf %176, %179 : vector<4x8x8xf32>
    %181 = math.exp %180 : vector<4x8x8xf32>
    %cst_124 = arith.constant dense<0.000000e+00> : vector<4x8xf32>
    %182 = vector.multi_reduction <add>, %181, %cst_124 [2] : vector<4x8x8xf32> to vector<4x8xf32>
    %183 = vector.shape_cast %182 : vector<4x8xf32> to vector<4x8x1xf32>
    %184 = vector.broadcast %183 : vector<4x8x1xf32> to vector<4x8x8xf32>
    %185 = arith.divf %181, %184 : vector<4x8x8xf32>
    "tpu.trace_start"() <{level = 10 : i32, message = "hqk,hkd->hqd"}> : () -> ()
    %cst_125 = arith.constant dense<0.000000e+00> : vector<4x8x8xf32>
    %186 = tpu.matmul %185, %173, %cst_125 {dimension_numbers = #tpu.dot_dimension_numbers<[2], [1], [1], [2], [0, 0, 0, 1, 1, 2], [0], [0]>} : vector<4x8x8xf32>, vector<4x8x8xf32>, vector<4x8x8xf32> -> vector<4x8x8xf32>
    "tpu.trace_stop"() : () -> ()
    "tpu.trace_start"() <{level = 10 : i32, message = "hsd,hdk->hsk"}> : () -> ()
    %cst_126 = arith.constant dense<0.000000e+00> : vector<4x8x32xf32>
    %187 = tpu.matmul %186, %161, %cst_126 {dimension_numbers = #tpu.dot_dimension_numbers<[2], [1], [1], [2], [0, 0, 0, 1, 1, 2], [0], [0]>} : vector<4x8x8xf32>, vector<4x8x32xf32>, vector<4x8x32xf32> -> vector<4x8x32xf32>
    "tpu.trace_stop"() : () -> ()
    %cst_127 = arith.constant dense<0.000000e+00> : vector<8x32xf32>
    %188 = vector.multi_reduction <add>, %187, %cst_127 [0] : vector<4x8x32xf32> to vector<8x32xf32>
    %c1_128 = arith.constant 1 : index
    %c0_129 = arith.constant 0 : index
    %c0_130 = arith.constant 0 : index
    %189 = vector.load %arg8[%c1_128, %c0_129, %c0_130] : memref<2x1x32xf32, #tpu.memory_space<vmem>>, vector<1x1x32xf32>
    %190 = vector.shape_cast %189 : vector<1x1x32xf32> to vector<1x32xf32>
    %191 = vector.broadcast %190 : vector<1x32xf32> to vector<8x32xf32>
    %192 = arith.addf %188, %191 : vector<8x32xf32>
    %193 = vector.extract_strided_slice %147 {offsets = [8, 0], sizes = [8, 32], strides = [1, 1]} : vector<16x32xf32> to vector<8x32xf32>
    %194 = vector.shape_cast %193 : vector<8x32xf32> to vector<1x8x32xf32>
    %195 = vector.broadcast %194 : vector<1x8x32xf32> to vector<4x8x32xf32>
    "tpu.trace_start"() <{level = 10 : i32, message = "hsk,hkd->hsd"}> : () -> ()
    %cst_131 = arith.constant dense<0.000000e+00> : vector<4x8x8xf32>
    %196 = tpu.matmul %195, %149, %cst_131 {dimension_numbers = #tpu.dot_dimension_numbers<[2], [1], [1], [2], [0, 0, 0, 1, 1, 2], [0], [0]>} : vector<4x8x32xf32>, vector<4x32x8xf32>, vector<4x8x8xf32> -> vector<4x8x8xf32>
    "tpu.trace_stop"() : () -> ()
    %197 = vector.broadcast %155 : vector<4x1x8xf32> to vector<4x8x8xf32>
    %198 = arith.addf %196, %197 : vector<4x8x8xf32>
    "tpu.trace_start"() <{level = 10 : i32, message = "hsk,hkd->hsd"}> : () -> ()
    %cst_132 = arith.constant dense<0.000000e+00> : vector<4x8x8xf32>
    %199 = tpu.matmul %195, %151, %cst_132 {dimension_numbers = #tpu.dot_dimension_numbers<[2], [1], [1], [2], [0, 0, 0, 1, 1, 2], [0], [0]>} : vector<4x8x32xf32>, vector<4x32x8xf32>, vector<4x8x8xf32> -> vector<4x8x8xf32>
    "tpu.trace_stop"() : () -> ()
    %200 = vector.broadcast %157 : vector<4x1x8xf32> to vector<4x8x8xf32>
    %201 = arith.addf %199, %200 : vector<4x8x8xf32>
    "tpu.trace_start"() <{level = 10 : i32, message = "hsk,hkd->hsd"}> : () -> ()
    %cst_133 = arith.constant dense<0.000000e+00> : vector<4x8x8xf32>
    %202 = tpu.matmul %195, %153, %cst_133 {dimension_numbers = #tpu.dot_dimension_numbers<[2], [1], [1], [2], [0, 0, 0, 1, 1, 2], [0], [0]>} : vector<4x8x32xf32>, vector<4x32x8xf32>, vector<4x8x8xf32> -> vector<4x8x8xf32>
    "tpu.trace_stop"() : () -> ()
    %203 = vector.broadcast %159 : vector<4x1x8xf32> to vector<4x8x8xf32>
    %204 = arith.addf %202, %203 : vector<4x8x8xf32>
    %cst_134 = arith.constant 0.353553385 : f32
    %205 = vector.broadcast %cst_134 : f32 to vector<4x8x8xf32>
    %206 = arith.mulf %198, %205 : vector<4x8x8xf32>
    "tpu.trace_start"() <{level = 10 : i32, message = "hqd,hkd->hqk"}> : () -> ()
    %cst_135 = arith.constant dense<0.000000e+00> : vector<4x8x8xf32>
    %207 = tpu.matmul %206, %201, %cst_135 {dimension_numbers = #tpu.dot_dimension_numbers<[2], [2], [1], [1], [0, 0, 0, 1, 1, 1], [0], [0]>} : vector<4x8x8xf32>, vector<4x8x8xf32>, vector<4x8x8xf32> -> vector<4x8x8xf32>
    "tpu.trace_stop"() : () -> ()
    %cst_136 = arith.constant dense<0xFF800000> : vector<4x8xf32>
    %208 = vector.multi_reduction <maximumf>, %207, %cst_136 [2] : vector<4x8x8xf32> to vector<4x8xf32>
    %209 = vector.shape_cast %208 : vector<4x8xf32> to vector<4x8x1xf32>
    %210 = vector.broadcast %209 : vector<4x8x1xf32> to vector<4x8x8xf32>
    %211 = arith.subf %207, %210 : vector<4x8x8xf32>
    %212 = math.exp %211 : vector<4x8x8xf32>
    %cst_137 = arith.constant dense<0.000000e+00> : vector<4x8xf32>
    %213 = vector.multi_reduction <add>, %212, %cst_137 [2] : vector<4x8x8xf32> to vector<4x8xf32>
    %214 = vector.shape_cast %213 : vector<4x8xf32> to vector<4x8x1xf32>
    %215 = vector.broadcast %214 : vector<4x8x1xf32> to vector<4x8x8xf32>
    %216 = arith.divf %212, %215 : vector<4x8x8xf32>
    "tpu.trace_start"() <{level = 10 : i32, message = "hqk,hkd->hqd"}> : () -> ()
    %cst_138 = arith.constant dense<0.000000e+00> : vector<4x8x8xf32>
    %217 = tpu.matmul %216, %204, %cst_138 {dimension_numbers = #tpu.dot_dimension_numbers<[2], [1], [1], [2], [0, 0, 0, 1, 1, 2], [0], [0]>} : vector<4x8x8xf32>, vector<4x8x8xf32>, vector<4x8x8xf32> -> vector<4x8x8xf32>
    "tpu.trace_stop"() : () -> ()
    "tpu.trace_start"() <{level = 10 : i32, message = "hsd,hdk->hsk"}> : () -> ()
    %cst_139 = arith.constant dense<0.000000e+00> : vector<4x8x32xf32>
    %218 = tpu.matmul %217, %161, %cst_139 {dimension_numbers = #tpu.dot_dimension_numbers<[2], [1], [1], [2], [0, 0, 0, 1, 1, 2], [0], [0]>} : vector<4x8x8xf32>, vector<4x8x32xf32>, vector<4x8x32xf32> -> vector<4x8x32xf32>
    "tpu.trace_stop"() : () -> ()
    %cst_140 = arith.constant dense<0.000000e+00> : vector<8x32xf32>
    %219 = vector.multi_reduction <add>, %218, %cst_140 [0] : vector<4x8x32xf32> to vector<8x32xf32>
    %c1_141 = arith.constant 1 : index
    %c0_142 = arith.constant 0 : index
    %c0_143 = arith.constant 0 : index
    %220 = vector.load %arg8[%c1_141, %c0_142, %c0_143] : memref<2x1x32xf32, #tpu.memory_space<vmem>>, vector<1x1x32xf32>
    %221 = vector.shape_cast %220 : vector<1x1x32xf32> to vector<1x32xf32>
    %222 = vector.broadcast %221 : vector<1x32xf32> to vector<8x32xf32>
    %223 = arith.addf %219, %222 : vector<8x32xf32>
    %224 = tpu.concatenate %192, %223 in 0 : vector<8x32xf32>, vector<8x32xf32> -> vector<16x32xf32>
    %225 = arith.addf %147, %224 : vector<16x32xf32>
    %c1_144 = arith.constant 1 : index
    %c0_145 = arith.constant 0 : index
    %c0_146 = arith.constant 0 : index
    %226 = vector.load %arg9[%c1_144, %c0_145, %c0_146] : memref<2x1x32xf32, #tpu.memory_space<vmem>>, vector<1x1x32xf32>
    %227 = vector.shape_cast %226 : vector<1x1x32xf32> to vector<1x32xf32>
    %c1_147 = arith.constant 1 : index
    %c0_148 = arith.constant 0 : index
    %c0_149 = arith.constant 0 : index
    %228 = vector.load %arg10[%c1_147, %c0_148, %c0_149] : memref<2x1x32xf32, #tpu.memory_space<vmem>>, vector<1x1x32xf32>
    %229 = vector.shape_cast %228 : vector<1x1x32xf32> to vector<1x32xf32>
    %cst_150 = arith.constant dense<0.000000e+00> : vector<16xf32>
    %230 = vector.multi_reduction <add>, %225, %cst_150 [1] : vector<16x32xf32> to vector<16xf32>
    %231 = vector.shape_cast %230 : vector<16xf32> to vector<16x1xf32>
    %cst_151 = arith.constant 3.200000e+01 : f32
    %232 = vector.broadcast %cst_151 : f32 to vector<16x1xf32>
    %233 = arith.divf %231, %232 : vector<16x1xf32>
    %234 = vector.broadcast %233 : vector<16x1xf32> to vector<16x32xf32>
    %235 = arith.subf %225, %234 : vector<16x32xf32>
    %236 = arith.mulf %235, %235 : vector<16x32xf32>
    %cst_152 = arith.constant dense<0.000000e+00> : vector<16xf32>
    %237 = vector.multi_reduction <add>, %236, %cst_152 [1] : vector<16x32xf32> to vector<16xf32>
    %238 = vector.shape_cast %237 : vector<16xf32> to vector<16x1xf32>
    %cst_153 = arith.constant 3.200000e+01 : f32
    %239 = vector.broadcast %cst_153 : f32 to vector<16x1xf32>
    %240 = arith.divf %238, %239 : vector<16x1xf32>
    %241 = vector.broadcast %233 : vector<16x1xf32> to vector<16x32xf32>
    %242 = arith.subf %225, %241 : vector<16x32xf32>
    %cst_154 = arith.constant 9.99999974E-6 : f32
    %243 = vector.broadcast %cst_154 : f32 to vector<16x1xf32>
    %244 = arith.addf %240, %243 : vector<16x1xf32>
    %245 = math.rsqrt %244 : vector<16x1xf32>
    %246 = vector.broadcast %245 : vector<16x1xf32> to vector<16x32xf32>
    %247 = arith.mulf %242, %246 : vector<16x32xf32>
    %248 = vector.broadcast %227 : vector<1x32xf32> to vector<16x32xf32>
    %249 = arith.mulf %247, %248 : vector<16x32xf32>
    %250 = vector.broadcast %229 : vector<1x32xf32> to vector<16x32xf32>
    %251 = arith.addf %249, %250 : vector<16x32xf32>
    %c1_155 = arith.constant 1 : index
    %c0_156 = arith.constant 0 : index
    %c0_157 = arith.constant 0 : index
    %252 = vector.load %arg11[%c1_155, %c0_156, %c0_157] : memref<2x32x128xf32, #tpu.memory_space<vmem>>, vector<1x32x128xf32>
    %253 = vector.shape_cast %252 : vector<1x32x128xf32> to vector<32x128xf32>
    %cst_158 = arith.constant dense<0.000000e+00> : vector<16x128xf32>
    %254 = tpu.matmul %251, %253, %cst_158 {dimension_numbers = #tpu.dot_dimension_numbers<[1], [0], [0], [1], [0, 0, 1, 1], [], []>} : vector<16x32xf32>, vector<32x128xf32>, vector<16x128xf32> -> vector<16x128xf32>
    %c1_159 = arith.constant 1 : index
    %c0_160 = arith.constant 0 : index
    %c0_161 = arith.constant 0 : index
    %255 = vector.load %arg12[%c1_159, %c0_160, %c0_161] : memref<2x1x128xf32, #tpu.memory_space<vmem>>, vector<1x1x128xf32>
    %256 = vector.shape_cast %255 : vector<1x1x128xf32> to vector<1x128xf32>
    %257 = vector.broadcast %256 : vector<1x128xf32> to vector<16x128xf32>
    %258 = arith.addf %254, %257 : vector<16x128xf32>
    %cst_162 = arith.constant 0.000000e+00 : f32
    %259 = vector.broadcast %cst_162 : f32 to vector<16x128xf32>
    %260 = arith.maximumf %258, %259 : vector<16x128xf32>
    %c1_163 = arith.constant 1 : index
    %c0_164 = arith.constant 0 : index
    %c0_165 = arith.constant 0 : index
    %261 = vector.load %arg13[%c1_163, %c0_164, %c0_165] : memref<2x128x32xf32, #tpu.memory_space<vmem>>, vector<1x128x32xf32>
    %262 = vector.shape_cast %261 : vector<1x128x32xf32> to vector<128x32xf32>
    %cst_166 = arith.constant dense<0.000000e+00> : vector<16x32xf32>
    %263 = tpu.matmul %260, %262, %cst_166 {dimension_numbers = #tpu.dot_dimension_numbers<[1], [0], [0], [1], [0, 0, 1, 1], [], []>} : vector<16x128xf32>, vector<128x32xf32>, vector<16x32xf32> -> vector<16x32xf32>
    %c1_167 = arith.constant 1 : index
    %c0_168 = arith.constant 0 : index
    %c0_169 = arith.constant 0 : index
    %264 = vector.load %arg14[%c1_167, %c0_168, %c0_169] : memref<2x1x32xf32, #tpu.memory_space<vmem>>, vector<1x1x32xf32>
    %265 = vector.shape_cast %264 : vector<1x1x32xf32> to vector<1x32xf32>
    %266 = vector.broadcast %265 : vector<1x32xf32> to vector<16x32xf32>
    %267 = arith.addf %263, %266 : vector<16x32xf32>
    %268 = arith.addf %251, %267 : vector<16x32xf32>
    %c1_170 = arith.constant 1 : index
    %c0_171 = arith.constant 0 : index
    %c0_172 = arith.constant 0 : index
    %269 = vector.load %arg15[%c1_170, %c0_171, %c0_172] : memref<2x1x32xf32, #tpu.memory_space<vmem>>, vector<1x1x32xf32>
    %270 = vector.shape_cast %269 : vector<1x1x32xf32> to vector<1x32xf32>
    %c1_173 = arith.constant 1 : index
    %c0_174 = arith.constant 0 : index
    %c0_175 = arith.constant 0 : index
    %271 = vector.load %arg16[%c1_173, %c0_174, %c0_175] : memref<2x1x32xf32, #tpu.memory_space<vmem>>, vector<1x1x32xf32>
    %272 = vector.shape_cast %271 : vector<1x1x32xf32> to vector<1x32xf32>
    %cst_176 = arith.constant dense<0.000000e+00> : vector<16xf32>
    %273 = vector.multi_reduction <add>, %268, %cst_176 [1] : vector<16x32xf32> to vector<16xf32>
    %274 = vector.shape_cast %273 : vector<16xf32> to vector<16x1xf32>
    %cst_177 = arith.constant 3.200000e+01 : f32
    %275 = vector.broadcast %cst_177 : f32 to vector<16x1xf32>
    %276 = arith.divf %274, %275 : vector<16x1xf32>
    %277 = vector.broadcast %276 : vector<16x1xf32> to vector<16x32xf32>
    %278 = arith.subf %268, %277 : vector<16x32xf32>
    %279 = arith.mulf %278, %278 : vector<16x32xf32>
    %cst_178 = arith.constant dense<0.000000e+00> : vector<16xf32>
    %280 = vector.multi_reduction <add>, %279, %cst_178 [1] : vector<16x32xf32> to vector<16xf32>
    %281 = vector.shape_cast %280 : vector<16xf32> to vector<16x1xf32>
    %cst_179 = arith.constant 3.200000e+01 : f32
    %282 = vector.broadcast %cst_179 : f32 to vector<16x1xf32>
    %283 = arith.divf %281, %282 : vector<16x1xf32>
    %284 = vector.broadcast %276 : vector<16x1xf32> to vector<16x32xf32>
    %285 = arith.subf %268, %284 : vector<16x32xf32>
    %cst_180 = arith.constant 9.99999974E-6 : f32
    %286 = vector.broadcast %cst_180 : f32 to vector<16x1xf32>
    %287 = arith.addf %283, %286 : vector<16x1xf32>
    %288 = math.rsqrt %287 : vector<16x1xf32>
    %289 = vector.broadcast %288 : vector<16x1xf32> to vector<16x32xf32>
    %290 = arith.mulf %285, %289 : vector<16x32xf32>
    %291 = vector.broadcast %270 : vector<1x32xf32> to vector<16x32xf32>
    %292 = arith.mulf %290, %291 : vector<16x32xf32>
    %293 = vector.broadcast %272 : vector<1x32xf32> to vector<16x32xf32>
    %294 = arith.addf %292, %293 : vector<16x32xf32>
    %295 = vector.extract_strided_slice %294 {offsets = [7, 0], sizes = [1, 32], strides = [1, 1]} : vector<16x32xf32> to vector<1x32xf32>
    %296 = vector.extract_strided_slice %294 {offsets = [15, 0], sizes = [1, 32], strides = [1, 1]} : vector<16x32xf32> to vector<1x32xf32>
    %297 = tpu.concatenate %295, %296 in 0 : vector<1x32xf32>, vector<1x32xf32> -> vector<2x32xf32>
    %c0_181 = arith.constant 0 : index
    %c0_182 = arith.constant 0 : index
    %298 = vector.load %arg17[%c0_181, %c0_182] : memref<32x8xf32, #tpu.memory_space<vmem>>, vector<32x8xf32>
    %cst_183 = arith.constant dense<0.000000e+00> : vector<2x8xf32>
    %299 = tpu.matmul %297, %298, %cst_183 {dimension_numbers = #tpu.dot_dimension_numbers<[1], [0], [0], [1], [0, 0, 1, 1], [], []>} : vector<2x32xf32>, vector<32x8xf32>, vector<2x8xf32> -> vector<2x8xf32>
    %c0_184 = arith.constant 0 : index
    %c0_185 = arith.constant 0 : index
    %300 = vector.load %arg18[%c0_184, %c0_185] : memref<1x8xf32, #tpu.memory_space<vmem>>, vector<1x8xf32>
    %301 = vector.broadcast %300 : vector<1x8xf32> to vector<2x8xf32>
    %302 = arith.addf %299, %301 : vector<2x8xf32>
    %c0_186 = arith.constant 0 : index
    %c0_187 = arith.constant 0 : index
    %303 = vector.load %arg19[%c0_186, %c0_187] : memref<2x8xf32, #tpu.memory_space<vmem>>, vector<2x8xf32>
    tpu.vector_store %arg19[%c0_186, %c0_187], %302 {strides = array<i32>} : memref<2x8xf32, #tpu.memory_space<vmem>>, vector<2x8xf32>,
    return
  }
}

</mosaic_0001>

<llo_original>
// kernel: forward_pallas.1
$region0: #{forward_pallas.1}
  #allocation0 [shape = 'u32[]', space=smem, size = 0x4, offset = 0x4, fixed_abs, tag = 'smem constant byte address 0x4 - core index']
  #allocation1 [shape = 'u32[72,128]{1,0:T(1,128)}', space=vmem, size = 0x9000, scoped, tag = 'internal scratch']
  %s0 = inlined_call_operand.vmem [shape: f32[16,32], index: 0, kind: input, shape index: {}]
  %s1 = inlined_call_operand.vmem [shape: f32[2,4,32,8], index: 1, kind: input, shape index: {}]
  %s2 = inlined_call_operand.vmem [shape: f32[2,4,32,8], index: 2, kind: input, shape index: {}]
  %s3 = inlined_call_operand.vmem [shape: f32[2,4,32,8], index: 3, kind: input, shape index: {}]
  %s4 = inlined_call_operand.vmem [shape: f32[2,4,1,8], index: 4, kind: input, shape index: {}]
  %s5 = inlined_call_operand.vmem [shape: f32[2,4,1,8], index: 5, kind: input, shape index: {}]
  %s6 = inlined_call_operand.vmem [shape: f32[2,4,1,8], index: 6, kind: input, shape index: {}]
  %s7 = inlined_call_operand.vmem [shape: f32[2,4,8,32], index: 7, kind: input, shape index: {}]
  %s8 = inlined_call_operand.vmem [shape: f32[2,1,32], index: 8, kind: input, shape index: {}]
  %s9 = inlined_call_operand.vmem [shape: f32[2,1,32], index: 9, kind: input, shape index: {}]
  %s10 = inlined_call_operand.vmem [shape: f32[2,1,32], index: 10, kind: input, shape index: {}]
  %s11 = inlined_call_operand.vmem [shape: f32[2,32,128], index: 11, kind: input, shape index: {}]
  %s12 = inlined_call_operand.vmem [shape: f32[2,1,128], index: 12, kind: input, shape index: {}]
  %s13 = inlined_call_operand.vmem [shape: f32[2,128,32], index: 13, kind: input, shape index: {}]
  %s14 = inlined_call_operand.vmem [shape: f32[2,1,32], index: 14, kind: input, shape index: {}]
  %s15 = inlined_call_operand.vmem [shape: f32[2,1,32], index: 15, kind: input, shape index: {}]
  %s16 = inlined_call_operand.vmem [shape: f32[2,1,32], index: 16, kind: input, shape index: {}]
  %s17 = inlined_call_operand.vmem [shape: f32[32,8], index: 17, kind: input, shape index: {}]
  %s18 = inlined_call_operand.vmem [shape: f32[1,8], index: 18, kind: input, shape index: {}]
  %s19 = inlined_call_operand.hbm [shape: f32[2,8], index: 19, kind: output, shape index: {}]
  %s20 = sld [smem:[#allocation0]]
  $region86: #{forward_pallas.1} parent=0
    _
  %s22 = ssub.s32 1, %s20
  %s23 = scalar_select 0, %s22, %s20
  $region1: #{forward_pallas.1} parent=0
    #allocation2 [shape = 'u8[1024]{0}', space=vmem, size = 0x400, scoped, tag = 'output window, operand 0, single buffered']
    #allocation3 [shape = 's32[1]{0}', space=sflag, size = 0x4, scoped, tag = 'scoped memory for forward_pallas.1']
    %24 = vsyncpa [#allocation3], 0
    // Predicated region
    $region2: #{forward_pallas.1} parent=1 // pred_check
      _
    $region3: #{forward_pallas.1} parent=1 // pred_check_branch
      %26 = sbr.rel (0) target = $region5
    $region4: #{forward_pallas.1} parent=1 // pred_region
      _
    $region5: #{forward_pallas.1} parent=1 // pred_fallthru
      _
    // Predicated region
    $region6: #{forward_pallas.1} parent=1 // pred_check
      _
    $region7: #{forward_pallas.1} parent=1 // pred_check_branch
      %28 = sbr.rel (0) target = $region9
    $region8: #{forward_pallas.1} parent=1 // pred_region
      _
    $region9: #{forward_pallas.1} parent=1 // pred_fallthru
      _
    // Predicated region
    $region10: #{forward_pallas.1} parent=1 // pred_check
      _
    $region11: #{forward_pallas.1} parent=1 // pred_check_branch
      %30 = sbr.rel (0) target = $region13
    $region12: #{forward_pallas.1} parent=1 // pred_region
      _
    $region13: #{forward_pallas.1} parent=1 // pred_fallthru
      _
    // Predicated region
    $region14: #{forward_pallas.1} parent=1 // pred_check
      _
    $region15: #{forward_pallas.1} parent=1 // pred_check_branch
      %32 = sbr.rel (0) target = $region17
    $region16: #{forward_pallas.1} parent=1 // pred_region
      _
    $region17: #{forward_pallas.1} parent=1 // pred_fallthru
      _
    // Predicated region
    $region18: #{forward_pallas.1} parent=1 // pred_check
      _
    $region19: #{forward_pallas.1} parent=1 // pred_check_branch
      %34 = sbr.rel (0) target = $region21
    $region20: #{forward_pallas.1} parent=1 // pred_region
      _
    $region21: #{forward_pallas.1} parent=1 // pred_fallthru
      _
    // Predicated region
    $region22: #{forward_pallas.1} parent=1 // pred_check
      _
    $region23: #{forward_pallas.1} parent=1 // pred_check_branch
      %36 = sbr.rel (0) target = $region25
    $region24: #{forward_pallas.1} parent=1 // pred_region
      _
    $region25: #{forward_pallas.1} parent=1 // pred_fallthru
      _
    // Predicated region
    $region26: #{forward_pallas.1} parent=1 // pred_check
      _
    $region27: #{forward_pallas.1} parent=1 // pred_check_branch
      %38 = sbr.rel (0) target = $region29
    $region28: #{forward_pallas.1} parent=1 // pred_region
      _
    $region29: #{forward_pallas.1} parent=1 // pred_fallthru
      _
    // Predicated region
    $region30: #{forward_pallas.1} parent=1 // pred_check
      _
    $region31: #{forward_pallas.1} parent=1 // pred_check_branch
      %40 = sbr.rel (0) target = $region33
    $region32: #{forward_pallas.1} parent=1 // pred_region
      _
    $region33: #{forward_pallas.1} parent=1 // pred_fallthru
      _
    // Predicated region
    $region34: #{forward_pallas.1} parent=1 // pred_check
      _
    $region35: #{forward_pallas.1} parent=1 // pred_check_branch
      %42 = sbr.rel (0) target = $region37
    $region36: #{forward_pallas.1} parent=1 // pred_region
      _
    $region37: #{forward_pallas.1} parent=1 // pred_fallthru
      _
    // Predicated region
    $region38: #{forward_pallas.1} parent=1 // pred_check
      _
    $region39: #{forward_pallas.1} parent=1 // pred_check_branch
      %44 = sbr.rel (0) target = $region41
    $region40: #{forward_pallas.1} parent=1 // pred_region
      _
    $region41: #{forward_pallas.1} parent=1 // pred_fallthru
      _
    // Predicated region
    $region42: #{forward_pallas.1} parent=1 // pred_check
      _
    $region43: #{forward_pallas.1} parent=1 // pred_check_branch
      %46 = sbr.rel (0) target = $region45
    $region44: #{forward_pallas.1} parent=1 // pred_region
      _
    $region45: #{forward_pallas.1} parent=1 // pred_fallthru
      _
    // Predicated region
    $region46: #{forward_pallas.1} parent=1 // pred_check
      _
    $region47: #{forward_pallas.1} parent=1 // pred_check_branch
      %48 = sbr.rel (0) target = $region49
    $region48: #{forward_pallas.1} parent=1 // pred_region
      _
    $region49: #{forward_pallas.1} parent=1 // pred_fallthru
      _
    // Predicated region
    $region50: #{forward_pallas.1} parent=1 // pred_check
      _
    $region51: #{forward_pallas.1} parent=1 // pred_check_branch
      %50 = sbr.rel (0) target = $region53
    $region52: #{forward_pallas.1} parent=1 // pred_region
      _
    $region53: #{forward_pallas.1} parent=1 // pred_fallthru
      _
    // Predicated region
    $region54: #{forward_pallas.1} parent=1 // pred_check
      _
    $region55: #{forward_pallas.1} parent=1 // pred_check_branch
      %52 = sbr.rel (0) target = $region57
    $region56: #{forward_pallas.1} parent=1 // pred_region
      _
    $region57: #{forward_pallas.1} parent=1 // pred_fallthru
      _
    // Predicated region
    $region58: #{forward_pallas.1} parent=1 // pred_check
      _
    $region59: #{forward_pallas.1} parent=1 // pred_check_branch
      %54 = sbr.rel (0) target = $region61
    $region60: #{forward_pallas.1} parent=1 // pred_region
      _
    $region61: #{forward_pallas.1} parent=1 // pred_fallthru
      _
    // Predicated region
    $region62: #{forward_pallas.1} parent=1 // pred_check
      _
    $region63: #{forward_pallas.1} parent=1 // pred_check_branch
      %56 = sbr.rel (0) target = $region65
    $region64: #{forward_pallas.1} parent=1 // pred_region
      _
    $region65: #{forward_pallas.1} parent=1 // pred_fallthru
      _
    // Predicated region
    $region66: #{forward_pallas.1} parent=1 // pred_check
      _
    $region67: #{forward_pallas.1} parent=1 // pred_check_branch
      %58 = sbr.rel (0) target = $region69
    $region68: #{forward_pallas.1} parent=1 // pred_region
      _
    $region69: #{forward_pallas.1} parent=1 // pred_fallthru
      _
    // Predicated region
    $region70: #{forward_pallas.1} parent=1 // pred_check
      _
    $region71: #{forward_pallas.1} parent=1 // pred_check_branch
      %60 = sbr.rel (0) target = $region73
    $region72: #{forward_pallas.1} parent=1 // pred_region
      _
    $region73: #{forward_pallas.1} parent=1 // pred_fallthru
      _
    // Predicated region
    $region74: #{forward_pallas.1} parent=1 // pred_check
      _
    $region75: #{forward_pallas.1} parent=1 // pred_check_branch
      %62 = sbr.rel (0) target = $region77
    $region76: #{forward_pallas.1} parent=1 // pred_region
      _
    $region77: #{forward_pallas.1} parent=1 // pred_fallthru
      _
    %v63 = vld [vmem:[%s0] sm:$0xff]
    %v64 = vld [vmem:[%s0 + $0x8] sm:$0xff]
    %v65 = vld [vmem:[%s1] sm:$0xff]
    %v66 = vld [vmem:[%s1 + $0x8] sm:$0xff]
    %v67 = vld [vmem:[%s1 + $0x10] sm:$0xff]
    %v68 = vld [vmem:[%s1 + $0x18] sm:$0xff]
    %v69 = vld [vmem:[%s1 + $0x20] sm:$0xff]
    %v70 = vld [vmem:[%s1 + $0x28] sm:$0xff]
    %v71 = vld [vmem:[%s1 + $0x30] sm:$0xff]
    %v72 = vld [vmem:[%s1 + $0x38] sm:$0xff]
    %v73 = vld [vmem:[%s1 + $0x40] sm:$0xff]
    %v74 = vld [vmem:[%s1 + $0x48] sm:$0xff]
    %v75 = vld [vmem:[%s1 + $0x50] sm:$0xff]
    %v76 = vld [vmem:[%s1 + $0x58] sm:$0xff]
    %v77 = vld [vmem:[%s1 + $0x60] sm:$0xff]
    %v78 = vld [vmem:[%s1 + $0x68] sm:$0xff]
    %v79 = vld [vmem:[%s1 + $0x70] sm:$0xff]
    %v80 = vld [vmem:[%s1 + $0x78] sm:$0xff]
    %v81 = vld [vmem:[%s2] sm:$0xff]
    %v82 = vld [vmem:[%s2 + $0x8] sm:$0xff]
    %v83 = vld [vmem:[%s2 + $0x10] sm:$0xff]
    %v84 = vld [vmem:[%s2 + $0x18] sm:$0xff]
    %v85 = vld [vmem:[%s2 + $0x20] sm:$0xff]
    %v86 = vld [vmem:[%s2 + $0x28] sm:$0xff]
    %v87 = vld [vmem:[%s2 + $0x30] sm:$0xff]
    %v88 = vld [vmem:[%s2 + $0x38] sm:$0xff]
    %v89 = vld [vmem:[%s2 + $0x40] sm:$0xff]
    %v90 = vld [vmem:[%s2 + $0x48] sm:$0xff]
    %v91 = vld [vmem:[%s2 + $0x50] sm:$0xff]
    %v92 = vld [vmem:[%s2 + $0x58] sm:$0xff]
    %v93 = vld [vmem:[%s2 + $0x60] sm:$0xff]
    %v94 = vld [vmem:[%s2 + $0x68] sm:$0xff]
    %v95 = vld [vmem:[%s2 + $0x70] sm:$0xff]
    %v96 = vld [vmem:[%s2 + $0x78] sm:$0xff]
    %v97 = vld [vmem:[%s3] sm:$0xff]
    %v98 = vld [vmem:[%s3 + $0x8] sm:$0xff]
    %v99 = vld [vmem:[%s3 + $0x10] sm:$0xff]
    %v100 = vld [vmem:[%s3 + $0x18] sm:$0xff]
    %v101 = vld [vmem:[%s3 + $0x20] sm:$0xff]
    %v102 = vld [vmem:[%s3 + $0x28] sm:$0xff]
    %v103 = vld [vmem:[%s3 + $0x30] sm:$0xff]
    %v104 = vld [vmem:[%s3 + $0x38] sm:$0xff]
    %v105 = vld [vmem:[%s3 + $0x40] sm:$0xff]
    %v106 = vld [vmem:[%s3 + $0x48] sm:$0xff]
    %v107 = vld [vmem:[%s3 + $0x50] sm:$0xff]
    %v108 = vld [vmem:[%s3 + $0x58] sm:$0xff]
    %v109 = vld [vmem:[%s3 + $0x60] sm:$0xff]
    %v110 = vld [vmem:[%s3 + $0x68] sm:$0xff]
    %v111 = vld [vmem:[%s3 + $0x70] sm:$0xff]
    %v112 = vld [vmem:[%s3 + $0x78] sm:$0xff]
    %v113 = vld [vmem:[%s4] sm:$0x1]
    %v114 = vld [vmem:[%s4 + $0x1] sm:$0x1]
    %v115 = vld [vmem:[%s4 + $0x2] sm:$0x1]
    %v116 = vld [vmem:[%s4 + $0x3] sm:$0x1]
    %v117 = vld [vmem:[%s5] sm:$0x1]
    %v118 = vld [vmem:[%s5 + $0x1] sm:$0x1]
    %v119 = vld [vmem:[%s5 + $0x2] sm:$0x1]
    %v120 = vld [vmem:[%s5 + $0x3] sm:$0x1]
    %v121 = vld [vmem:[%s6] sm:$0x1]
    %v122 = vld [vmem:[%s6 + $0x1] sm:$0x1]
    %v123 = vld [vmem:[%s6 + $0x2] sm:$0x1]
    %v124 = vld [vmem:[%s6 + $0x3] sm:$0x1]
    %v125 = vld [vmem:[%s7] sm:$0xff]
    %v126 = vld [vmem:[%s7 + $0x8] sm:$0xff]
    %v127 = vld [vmem:[%s7 + $0x10] sm:$0xff]
    %v128 = vld [vmem:[%s7 + $0x18] sm:$0xff]
    %v133 = vperm.slane %v113, 0
    %v134 = vperm.slane %v114, 0
    %v135 = vperm.slane %v115, 0
    %v136 = vperm.slane %v116, 0
    %vm141 = vcmask 261120
    %v143 = vsel %vm141, %v63, 0
    %145 = vmatpush.msra.mxu0 0.0
    %146 = vmatpush.msra.mxu0 0.0
    %147 = vmatpush.msra.mxu0 0.0
    %148 = vmatpush.msra.mxu0 0.0
    %149 = vmatpush.msra.mxu0 0.0
    %150 = vmatpush.msra.mxu0 0.0
    %151 = vmatpush.msra.mxu0 0.0
    %152 = vmatpush.msra.mxu0 0.0
    %153 = vmatpush.msra.mxu0 0.0
    %154 = vmatpush.msra.mxu0 0.0
    %155 = vmatpush.msra.mxu0 0.0
    %156 = vmatpush.msra.mxu0 0.0
    %157 = vmatpush.msra.mxu0 %v68
    %158 = vmatpush.msra.mxu0 %v67
    %159 = vmatpush.msra.mxu0 %v66
    %160 = vmatpush.msra.mxu0 %v65
    %161 = vmatmul.f32.gmra.mxu0 %v143
    %v162 = vpop.f32.mrf.mxu0
    %v163 = vadd.f32 %v133, %v162
    %164 = vdwg.mxu0
    %165 = vmatpush.msra.mxu0 0.0
    %166 = vmatpush.msra.mxu0 0.0
    %167 = vmatpush.msra.mxu0 0.0
    %168 = vmatpush.msra.mxu0 0.0
    %169 = vmatpush.msra.mxu0 0.0
    %170 = vmatpush.msra.mxu0 0.0
    %171 = vmatpush.msra.mxu0 0.0
    %172 = vmatpush.msra.mxu0 0.0
    %173 = vmatpush.msra.mxu0 0.0
    %174 = vmatpush.msra.mxu0 0.0
    %175 = vmatpush.msra.mxu0 0.0
    %176 = vmatpush.msra.mxu0 0.0
    %177 = vmatpush.msra.mxu0 %v72
    %178 = vmatpush.msra.mxu0 %v71
    %179 = vmatpush.msra.mxu0 %v70
    %180 = vmatpush.msra.mxu0 %v69
    %181 = vmatmul.f32.gmra.mxu0 %v143
    %v182 = vpop.f32.mrf.mxu0
    %v183 = vadd.f32 %v134, %v182
    %184 = vdwg.mxu0
    %185 = vmatpush.msra.mxu0 0.0
    %186 = vmatpush.msra.mxu0 0.0
    %187 = vmatpush.msra.mxu0 0.0
    %188 = vmatpush.msra.mxu0 0.0
    %189 = vmatpush.msra.mxu0 0.0
    %190 = vmatpush.msra.mxu0 0.0
    %191 = vmatpush.msra.mxu0 0.0
    %192 = vmatpush.msra.mxu0 0.0
    %193 = vmatpush.msra.mxu0 0.0
    %194 = vmatpush.msra.mxu0 0.0
    %195 = vmatpush.msra.mxu0 0.0
    %196 = vmatpush.msra.mxu0 0.0
    %197 = vmatpush.msra.mxu0 %v76
    %198 = vmatpush.msra.mxu0 %v75
    %199 = vmatpush.msra.mxu0 %v74
    %200 = vmatpush.msra.mxu0 %v73
    %201 = vmatmul.f32.gmra.mxu0 %v143
    %v202 = vpop.f32.mrf.mxu0
    %v203 = vadd.f32 %v135, %v202
    %204 = vdwg.mxu0
    %205 = vmatpush.msra.mxu0 0.0
    %206 = vmatpush.msra.mxu0 0.0
    %207 = vmatpush.msra.mxu0 0.0
    %208 = vmatpush.msra.mxu0 0.0
    %209 = vmatpush.msra.mxu0 0.0
    %210 = vmatpush.msra.mxu0 0.0
    %211 = vmatpush.msra.mxu0 0.0
    %212 = vmatpush.msra.mxu0 0.0
    %213 = vmatpush.msra.mxu0 0.0
    %214 = vmatpush.msra.mxu0 0.0
    %215 = vmatpush.msra.mxu0 0.0
    %216 = vmatpush.msra.mxu0 0.0
    %217 = vmatpush.msra.mxu0 %v80
    %218 = vmatpush.msra.mxu0 %v79
    %219 = vmatpush.msra.mxu0 %v78
    %220 = vmatpush.msra.mxu0 %v77
    %221 = vmatmul.f32.gmra.mxu0 %v143
    %v222 = vpop.f32.mrf.mxu0
    %v223 = vadd.f32 %v136, %v222
    %224 = vdwg.mxu0
    %v229 = vperm.slane %v117, 0
    %v230 = vperm.slane %v118, 0
    %v231 = vperm.slane %v119, 0
    %v232 = vperm.slane %v120, 0
    %237 = vmatpush.msra.mxu0 0.0
    %238 = vmatpush.msra.mxu0 0.0
    %239 = vmatpush.msra.mxu0 0.0
    %240 = vmatpush.msra.mxu0 0.0
    %241 = vmatpush.msra.mxu0 0.0
    %242 = vmatpush.msra.mxu0 0.0
    %243 = vmatpush.msra.mxu0 0.0
    %244 = vmatpush.msra.mxu0 0.0
    %245 = vmatpush.msra.mxu0 0.0
    %246 = vmatpush.msra.mxu0 0.0
    %247 = vmatpush.msra.mxu0 0.0
    %248 = vmatpush.msra.mxu0 0.0
    %249 = vmatpush.msra.mxu0 %v84
    %250 = vmatpush.msra.mxu0 %v83
    %251 = vmatpush.msra.mxu0 %v82
    %252 = vmatpush.msra.mxu0 %v81
    %253 = vmatmul.f32.gmra.mxu0 %v143
    %v254 = vpop.f32.mrf.mxu0
    %v255 = vadd.f32 %v229, %v254
    %256 = vdwg.mxu0
    %257 = vmatpush.msra.mxu0 0.0
    %258 = vmatpush.msra.mxu0 0.0
    %259 = vmatpush.msra.mxu0 0.0
    %260 = vmatpush.msra.mxu0 0.0
    %261 = vmatpush.msra.mxu0 0.0
    %262 = vmatpush.msra.mxu0 0.0
    %263 = vmatpush.msra.mxu0 0.0
    %264 = vmatpush.msra.mxu0 0.0
    %265 = vmatpush.msra.mxu0 0.0
    %266 = vmatpush.msra.mxu0 0.0
    %267 = vmatpush.msra.mxu0 0.0
    %268 = vmatpush.msra.mxu0 0.0
    %269 = vmatpush.msra.mxu0 %v88
    %270 = vmatpush.msra.mxu0 %v87
    %271 = vmatpush.msra.mxu0 %v86
    %272 = vmatpush.msra.mxu0 %v85
    %273 = vmatmul.f32.gmra.mxu0 %v143
    %v274 = vpop.f32.mrf.mxu0
    %v275 = vadd.f32 %v230, %v274
    %276 = vdwg.mxu0
    %277 = vmatpush.msra.mxu0 0.0
    %278 = vmatpush.msra.mxu0 0.0
    %279 = vmatpush.msra.mxu0 0.0
    %280 = vmatpush.msra.mxu0 0.0
    %281 = vmatpush.msra.mxu0 0.0
    %282 = vmatpush.msra.mxu0 0.0
    %283 = vmatpush.msra.mxu0 0.0
    %284 = vmatpush.msra.mxu0 0.0
    %285 = vmatpush.msra.mxu0 0.0
    %286 = vmatpush.msra.mxu0 0.0
    %287 = vmatpush.msra.mxu0 0.0
    %288 = vmatpush.msra.mxu0 0.0
    %289 = vmatpush.msra.mxu0 %v92
    %290 = vmatpush.msra.mxu0 %v91
    %291 = vmatpush.msra.mxu0 %v90
    %292 = vmatpush.msra.mxu0 %v89
    %293 = vmatmul.f32.gmra.mxu0 %v143
    %v294 = vpop.f32.mrf.mxu0
    %v295 = vadd.f32 %v231, %v294
    %296 = vdwg.mxu0
    %297 = vmatpush.msra.mxu0 0.0
    %298 = vmatpush.msra.mxu0 0.0
    %299 = vmatpush.msra.mxu0 0.0
    %300 = vmatpush.msra.mxu0 0.0
    %301 = vmatpush.msra.mxu0 0.0
    %302 = vmatpush.msra.mxu0 0.0
    %303 = vmatpush.msra.mxu0 0.0
    %304 = vmatpush.msra.mxu0 0.0
    %305 = vmatpush.msra.mxu0 0.0
    %306 = vmatpush.msra.mxu0 0.0
    %307 = vmatpush.msra.mxu0 0.0
    %308 = vmatpush.msra.mxu0 0.0
    %309 = vmatpush.msra.mxu0 %v96
    %310 = vmatpush.msra.mxu0 %v95
    %311 = vmatpush.msra.mxu0 %v94
    %312 = vmatpush.msra.mxu0 %v93
    %313 = vmatmul.f32.gmra.mxu0 %v143
    %v314 = vpop.f32.mrf.mxu0
    %v315 = vadd.f32 %v232, %v314
    %316 = vdwg.mxu0
    %v321 = vperm.slane %v121, 0
    %v322 = vperm.slane %v122, 0
    %v323 = vperm.slane %v123, 0
    %v324 = vperm.slane %v124, 0
    %329 = vmatpush.msra.mxu0 0.0
    %330 = vmatpush.msra.mxu0 0.0
    %331 = vmatpush.msra.mxu0 0.0
    %332 = vmatpush.msra.mxu0 0.0
    %333 = vmatpush.msra.mxu0 0.0
    %334 = vmatpush.msra.mxu0 0.0
    %335 = vmatpush.msra.mxu0 0.0
    %336 = vmatpush.msra.mxu0 0.0
    %337 = vmatpush.msra.mxu0 0.0
    %338 = vmatpush.msra.mxu0 0.0
    %339 = vmatpush.msra.mxu0 0.0
    %340 = vmatpush.msra.mxu0 0.0
    %341 = vmatpush.msra.mxu0 %v100
    %342 = vmatpush.msra.mxu0 %v99
    %343 = vmatpush.msra.mxu0 %v98
    %344 = vmatpush.msra.mxu0 %v97
    %345 = vmatmul.f32.gmra.mxu0 %v143
    %v346 = vpop.f32.mrf.mxu0
    %v347 = vadd.f32 %v321, %v346
    %348 = vdwg.mxu0
    %349 = vmatpush.msra.mxu0 0.0
    %350 = vmatpush.msra.mxu0 0.0
    %351 = vmatpush.msra.mxu0 0.0
    %352 = vmatpush.msra.mxu0 0.0
    %353 = vmatpush.msra.mxu0 0.0
    %354 = vmatpush.msra.mxu0 0.0
    %355 = vmatpush.msra.mxu0 0.0
    %356 = vmatpush.msra.mxu0 0.0
    %357 = vmatpush.msra.mxu0 0.0
    %358 = vmatpush.msra.mxu0 0.0
    %359 = vmatpush.msra.mxu0 0.0
    %360 = vmatpush.msra.mxu0 0.0
    %361 = vmatpush.msra.mxu0 %v104
    %362 = vmatpush.msra.mxu0 %v103
    %363 = vmatpush.msra.mxu0 %v102
    %364 = vmatpush.msra.mxu0 %v101
    %365 = vmatmul.f32.gmra.mxu0 %v143
    %v366 = vpop.f32.mrf.mxu0
    %v367 = vadd.f32 %v322, %v366
    %368 = vdwg.mxu0
    %369 = vmatpush.msra.mxu0 0.0
    %370 = vmatpush.msra.mxu0 0.0
    %371 = vmatpush.msra.mxu0 0.0
    %372 = vmatpush.msra.mxu0 0.0
    %373 = vmatpush.msra.mxu0 0.0
    %374 = vmatpush.msra.mxu0 0.0
    %375 = vmatpush.msra.mxu0 0.0
    %376 = vmatpush.msra.mxu0 0.0
    %377 = vmatpush.msra.mxu0 0.0
    %378 = vmatpush.msra.mxu0 0.0
    %379 = vmatpush.msra.mxu0 0.0
    %380 = vmatpush.msra.mxu0 0.0
    %381 = vmatpush.msra.mxu0 %v108
    %382 = vmatpush.msra.mxu0 %v107
    %383 = vmatpush.msra.mxu0 %v106
    %384 = vmatpush.msra.mxu0 %v105
    %385 = vmatmul.f32.gmra.mxu0 %v143
    %v386 = vpop.f32.mrf.mxu0
    %v387 = vadd.f32 %v323, %v386
    %388 = vdwg.mxu0
    %389 = vmatpush.msra.mxu0 0.0
    %390 = vmatpush.msra.mxu0 0.0
    %391 = vmatpush.msra.mxu0 0.0
    %392 = vmatpush.msra.mxu0 0.0
    %393 = vmatpush.msra.mxu0 0.0
    %394 = vmatpush.msra.mxu0 0.0
    %395 = vmatpush.msra.mxu0 0.0
    %396 = vmatpush.msra.mxu0 0.0
    %397 = vmatpush.msra.mxu0 0.0
    %398 = vmatpush.msra.mxu0 0.0
    %399 = vmatpush.msra.mxu0 0.0
    %400 = vmatpush.msra.mxu0 0.0
    %401 = vmatpush.msra.mxu0 %v112
    %402 = vmatpush.msra.mxu0 %v111
    %403 = vmatpush.msra.mxu0 %v110
    %404 = vmatpush.msra.mxu0 %v109
    %405 = vmatmul.f32.gmra.mxu0 %v143
    %v406 = vpop.f32.mrf.mxu0
    %v407 = vadd.f32 %v324, %v406
    %408 = vdwg.mxu0
    %v409 = vmul.f32 %v163, 0.35355338
    %v410 = vmul.f32 %v183, 0.35355338
    %v411 = vmul.f32 %v203, 0.35355338
    %v412 = vmul.f32 %v223, 0.35355338
    %vm413 = vcmask 64512
    %v415 = vsel %vm413, %v409, 0
    %v418 = vsel %vm413, %v255, 0
    %420 = vmatpush.xpose.msra.mxu0 0.0
    %421 = vmatpush.xpose.msra.mxu0 0.0
    %422 = vmatpush.xpose.msra.mxu0 0.0
    %423 = vmatpush.xpose.msra.mxu0 0.0
    %424 = vmatpush.xpose.msra.mxu0 0.0
    %425 = vmatpush.xpose.msra.mxu0 0.0
    %426 = vmatpush.xpose.msra.mxu0 0.0
    %427 = vmatpush.xpose.msra.mxu0 0.0
    %428 = vmatpush.xpose.msra.mxu0 0.0
    %429 = vmatpush.xpose.msra.mxu0 0.0
    %430 = vmatpush.xpose.msra.mxu0 0.0
    %431 = vmatpush.xpose.msra.mxu0 0.0
    %432 = vmatpush.xpose.msra.mxu0 0.0
    %433 = vmatpush.xpose.msra.mxu0 0.0
    %434 = vmatpush.xpose.msra.mxu0 0.0
    %435 = vmatpush.xpose.msra.mxu0 %v418
    %436 = vmatmul.f32.gmra.mxu0 %v415
    %v437 = vpop.f32.mrf.mxu0
    %v438 = vadd.f32 0.0, %v437
    %439 = vdwg.mxu0
    %v441 = vsel %vm413, %v410, 0
    %v444 = vsel %vm413, %v275, 0
    %446 = vmatpush.xpose.msra.mxu0 0.0
    %447 = vmatpush.xpose.msra.mxu0 0.0
    %448 = vmatpush.xpose.msra.mxu0 0.0
    %449 = vmatpush.xpose.msra.mxu0 0.0
    %450 = vmatpush.xpose.msra.mxu0 0.0
    %451 = vmatpush.xpose.msra.mxu0 0.0
    %452 = vmatpush.xpose.msra.mxu0 0.0
    %453 = vmatpush.xpose.msra.mxu0 0.0
    %454 = vmatpush.xpose.msra.mxu0 0.0
    %455 = vmatpush.xpose.msra.mxu0 0.0
    %456 = vmatpush.xpose.msra.mxu0 0.0
    %457 = vmatpush.xpose.msra.mxu0 0.0
    %458 = vmatpush.xpose.msra.mxu0 0.0
    %459 = vmatpush.xpose.msra.mxu0 0.0
    %460 = vmatpush.xpose.msra.mxu0 0.0
    %461 = vmatpush.xpose.msra.mxu0 %v444
    %462 = vmatmul.f32.gmra.mxu0 %v441
    %v463 = vpop.f32.mrf.mxu0
    %v464 = vadd.f32 0.0, %v463
    %465 = vdwg.mxu0
    %v467 = vsel %vm413, %v411, 0
    %v470 = vsel %vm413, %v295, 0
    %472 = vmatpush.xpose.msra.mxu0 0.0
    %473 = vmatpush.xpose.msra.mxu0 0.0
    %474 = vmatpush.xpose.msra.mxu0 0.0
    %475 = vmatpush.xpose.msra.mxu0 0.0
    %476 = vmatpush.xpose.msra.mxu0 0.0
    %477 = vmatpush.xpose.msra.mxu0 0.0
    %478 = vmatpush.xpose.msra.mxu0 0.0
    %479 = vmatpush.xpose.msra.mxu0 0.0
    %480 = vmatpush.xpose.msra.mxu0 0.0
    %481 = vmatpush.xpose.msra.mxu0 0.0
    %482 = vmatpush.xpose.msra.mxu0 0.0
    %483 = vmatpush.xpose.msra.mxu0 0.0
    %484 = vmatpush.xpose.msra.mxu0 0.0
    %485 = vmatpush.xpose.msra.mxu0 0.0
    %486 = vmatpush.xpose.msra.mxu0 0.0
    %487 = vmatpush.xpose.msra.mxu0 %v470
    %488 = vmatmul.f32.gmra.mxu0 %v467
    %v489 = vpop.f32.mrf.mxu0
    %v490 = vadd.f32 0.0, %v489
    %491 = vdwg.mxu0
    %v493 = vsel %vm413, %v412, 0
    %v496 = vsel %vm413, %v315, 0
    %498 = vmatpush.xpose.msra.mxu0 0.0
    %499 = vmatpush.xpose.msra.mxu0 0.0
    %500 = vmatpush.xpose.msra.mxu0 0.0
    %501 = vmatpush.xpose.msra.mxu0 0.0
    %502 = vmatpush.xpose.msra.mxu0 0.0
    %503 = vmatpush.xpose.msra.mxu0 0.0
    %504 = vmatpush.xpose.msra.mxu0 0.0
    %505 = vmatpush.xpose.msra.mxu0 0.0
    %506 = vmatpush.xpose.msra.mxu0 0.0
    %507 = vmatpush.xpose.msra.mxu0 0.0
    %508 = vmatpush.xpose.msra.mxu0 0.0
    %509 = vmatpush.xpose.msra.mxu0 0.0
    %510 = vmatpush.xpose.msra.mxu0 0.0
    %511 = vmatpush.xpose.msra.mxu0 0.0
    %512 = vmatpush.xpose.msra.mxu0 0.0
    %513 = vmatpush.xpose.msra.mxu0 %v496
    %514 = vmatmul.f32.gmra.mxu0 %v493
    %v515 = vpop.f32.mrf.mxu0
    %v516 = vadd.f32 0.0, %v515
    %517 = vdwg.mxu0
    %v518 = vsel %vm413, %v438, -inf
    %519 = vmax.xlane.f32.xlu0 %v518
    %v520 = vpop.xlane.xlu0 %519
    %v521 = vsel %vm413, %v464, -inf
    %522 = vmax.xlane.f32.xlu0 %v521
    %v523 = vpop.xlane.xlu0 %522
    %v524 = vsel %vm413, %v490, -inf
    %525 = vmax.xlane.f32.xlu0 %v524
    %v526 = vpop.xlane.xlu0 %525
    %v527 = vsel %vm413, %v516, -inf
    %528 = vmax.xlane.f32.xlu0 %v527
    %v529 = vpop.xlane.xlu0 %528
    %v530 = vsub.f32 %v438, %v520
    %v531 = vsub.f32 %v464, %v523
    %v532 = vsub.f32 %v490, %v526
    %v533 = vsub.f32 %v516, %v529
    %v534 = vmul.f32 %v530, 1.442695
    %v535 = vpow.pop %v534
    %v536 = vmul.f32 %v531, 1.442695
    %v537 = vpow.pop %v536
    %v538 = vmul.f32 %v532, 1.442695
    %v539 = vpow.pop %v538
    %v540 = vmul.f32 %v533, 1.442695
    %v541 = vpow.pop %v540
    %v542 = vsel %vm413, %v535, 0.0
    %543 = vadd.xlane.f32.xlu0 %v542
    %v544 = vpop.xlane.xlu0 %543
    %v545 = vsel %vm413, %v537, 0.0
    %546 = vadd.xlane.f32.xlu0 %v545
    %v547 = vpop.xlane.xlu0 %546
    %v548 = vsel %vm413, %v539, 0.0
    %549 = vadd.xlane.f32.xlu0 %v548
    %v550 = vpop.xlane.xlu0 %549
    %v551 = vsel %vm413, %v541, 0.0
    %552 = vadd.xlane.f32.xlu0 %v551
    %v553 = vpop.xlane.xlu0 %552
    %v554 = vrcp.pop %v544
    %v555 = vmul.f32 %v544, %v554
    %v556 = vsub.f32 1.0, %v555
    %v557 = vmul.f32 %v554, %v556
    %v558 = vadd.f32 %v554, %v557
    %vm559 = vweird.f32 %v544
    %vm560 = vweird.f32 %v554
    %vm561 = vmor %vm559, %vm560
    %v562 = vsel %vm561, %v554, %v558
    %v563 = vand.u32 2147483647, %v544
    %vm564 = vcmp.eq.f32.partialorder %v563, 8.507059e+37
    %v565 = vand.u32 %v544, 2147483648
    %v566 = vor.u32 1.1754944e-38, %v565
    %v567 = vsel %vm564, %v566, %v562
    %v568 = vmul.f32 %v535, %v567
    %v569 = vrcp.pop %v547
    %v570 = vmul.f32 %v547, %v569
    %v571 = vsub.f32 1.0, %v570
    %v572 = vmul.f32 %v569, %v571
    %v573 = vadd.f32 %v569, %v572
    %vm574 = vweird.f32 %v547
    %vm575 = vweird.f32 %v569
    %vm576 = vmor %vm574, %vm575
    %v577 = vsel %vm576, %v569, %v573
    %v578 = vand.u32 2147483647, %v547
    %vm579 = vcmp.eq.f32.partialorder %v578, 8.507059e+37
    %v580 = vand.u32 %v547, 2147483648
    %v581 = vor.u32 1.1754944e-38, %v580
    %v582 = vsel %vm579, %v581, %v577
    %v583 = vmul.f32 %v537, %v582
    %v584 = vrcp.pop %v550
    %v585 = vmul.f32 %v550, %v584
    %v586 = vsub.f32 1.0, %v585
    %v587 = vmul.f32 %v584, %v586
    %v588 = vadd.f32 %v584, %v587
    %vm589 = vweird.f32 %v550
    %vm590 = vweird.f32 %v584
    %vm591 = vmor %vm589, %vm590
    %v592 = vsel %vm591, %v584, %v588
    %v593 = vand.u32 2147483647, %v550
    %vm594 = vcmp.eq.f32.partialorder %v593, 8.507059e+37
    %v595 = vand.u32 %v550, 2147483648
    %v596 = vor.u32 1.1754944e-38, %v595
    %v597 = vsel %vm594, %v596, %v592
    %v598 = vmul.f32 %v539, %v597
    %v599 = vrcp.pop %v553
    %v600 = vmul.f32 %v553, %v599
    %v601 = vsub.f32 1.0, %v600
    %v602 = vmul.f32 %v599, %v601
    %v603 = vadd.f32 %v599, %v602
    %vm604 = vweird.f32 %v553
    %vm605 = vweird.f32 %v599
    %vm606 = vmor %vm604, %vm605
    %v607 = vsel %vm606, %v599, %v603
    %v608 = vand.u32 2147483647, %v553
    %vm609 = vcmp.eq.f32.partialorder %v608, 8.507059e+37
    %v610 = vand.u32 %v553, 2147483648
    %v611 = vor.u32 1.1754944e-38, %v610
    %v612 = vsel %vm609, %v611, %v607
    %v613 = vmul.f32 %v541, %v612
    %v615 = vsel %vm413, %v568, 0
    %617 = vmatpush.msra.mxu0 0.0
    %618 = vmatpush.msra.mxu0 0.0
    %619 = vmatpush.msra.mxu0 0.0
    %620 = vmatpush.msra.mxu0 0.0
    %621 = vmatpush.msra.mxu0 0.0
    %622 = vmatpush.msra.mxu0 0.0
    %623 = vmatpush.msra.mxu0 0.0
    %624 = vmatpush.msra.mxu0 0.0
    %625 = vmatpush.msra.mxu0 0.0
    %626 = vmatpush.msra.mxu0 0.0
    %627 = vmatpush.msra.mxu0 0.0
    %628 = vmatpush.msra.mxu0 0.0
    %629 = vmatpush.msra.mxu0 0.0
    %630 = vmatpush.msra.mxu0 0.0
    %631 = vmatpush.msra.mxu0 0.0
    %632 = vmatpush.msra.mxu0 %v347
    %633 = vmatmul.f32.gmra.mxu0 %v615
    %v634 = vpop.f32.mrf.mxu0
    %v635 = vadd.f32 0.0, %v634
    %636 = vdwg.mxu0
    %v638 = vsel %vm413, %v583, 0
    %640 = vmatpush.msra.mxu0 0.0
    %641 = vmatpush.msra.mxu0 0.0
    %642 = vmatpush.msra.mxu0 0.0
    %643 = vmatpush.msra.mxu0 0.0
    %644 = vmatpush.msra.mxu0 0.0
    %645 = vmatpush.msra.mxu0 0.0
    %646 = vmatpush.msra.mxu0 0.0
    %647 = vmatpush.msra.mxu0 0.0
    %648 = vmatpush.msra.mxu0 0.0
    %649 = vmatpush.msra.mxu0 0.0
    %650 = vmatpush.msra.mxu0 0.0
    %651 = vmatpush.msra.mxu0 0.0
    %652 = vmatpush.msra.mxu0 0.0
    %653 = vmatpush.msra.mxu0 0.0
    %654 = vmatpush.msra.mxu0 0.0
    %655 = vmatpush.msra.mxu0 %v367
    %656 = vmatmul.f32.gmra.mxu0 %v638
    %v657 = vpop.f32.mrf.mxu0
    %v658 = vadd.f32 0.0, %v657
    %659 = vdwg.mxu0
    %v661 = vsel %vm413, %v598, 0
    %663 = vmatpush.msra.mxu0 0.0
    %664 = vmatpush.msra.mxu0 0.0
    %665 = vmatpush.msra.mxu0 0.0
    %666 = vmatpush.msra.mxu0 0.0
    %667 = vmatpush.msra.mxu0 0.0
    %668 = vmatpush.msra.mxu0 0.0
    %669 = vmatpush.msra.mxu0 0.0
    %670 = vmatpush.msra.mxu0 0.0
    %671 = vmatpush.msra.mxu0 0.0
    %672 = vmatpush.msra.mxu0 0.0
    %673 = vmatpush.msra.mxu0 0.0
    %674 = vmatpush.msra.mxu0 0.0
    %675 = vmatpush.msra.mxu0 0.0
    %676 = vmatpush.msra.mxu0 0.0
    %677 = vmatpush.msra.mxu0 0.0
    %678 = vmatpush.msra.mxu0 %v387
    %679 = vmatmul.f32.gmra.mxu0 %v661
    %v680 = vpop.f32.mrf.mxu0
    %v681 = vadd.f32 0.0, %v680
    %682 = vdwg.mxu0
    %v684 = vsel %vm413, %v613, 0
    %686 = vmatpush.msra.mxu0 0.0
    %687 = vmatpush.msra.mxu0 0.0
    %688 = vmatpush.msra.mxu0 0.0
    %689 = vmatpush.msra.mxu0 0.0
    %690 = vmatpush.msra.mxu0 0.0
    %691 = vmatpush.msra.mxu0 0.0
    %692 = vmatpush.msra.mxu0 0.0
    %693 = vmatpush.msra.mxu0 0.0
    %694 = vmatpush.msra.mxu0 0.0
    %695 = vmatpush.msra.mxu0 0.0
    %696 = vmatpush.msra.mxu0 0.0
    %697 = vmatpush.msra.mxu0 0.0
    %698 = vmatpush.msra.mxu0 0.0
    %699 = vmatpush.msra.mxu0 0.0
    %700 = vmatpush.msra.mxu0 0.0
    %701 = vmatpush.msra.mxu0 %v407
    %702 = vmatmul.f32.gmra.mxu0 %v684
    %v703 = vpop.f32.mrf.mxu0
    %v704 = vadd.f32 0.0, %v703
    %705 = vdwg.mxu0
    %v707 = vsel %vm413, %v635, 0
    %709 = vmatpush.msra.mxu0 0.0
    %710 = vmatpush.msra.mxu0 0.0
    %711 = vmatpush.msra.mxu0 0.0
    %712 = vmatpush.msra.mxu0 0.0
    %713 = vmatpush.msra.mxu0 0.0
    %714 = vmatpush.msra.mxu0 0.0
    %715 = vmatpush.msra.mxu0 0.0
    %716 = vmatpush.msra.mxu0 0.0
    %717 = vmatpush.msra.mxu0 0.0
    %718 = vmatpush.msra.mxu0 0.0
    %719 = vmatpush.msra.mxu0 0.0
    %720 = vmatpush.msra.mxu0 0.0
    %721 = vmatpush.msra.mxu0 0.0
    %722 = vmatpush.msra.mxu0 0.0
    %723 = vmatpush.msra.mxu0 0.0
    %724 = vmatpush.msra.mxu0 %v125
    %725 = vmatmul.f32.gmra.mxu0 %v707
    %v726 = vpop.f32.mrf.mxu0
    %v727 = vadd.f32 0.0, %v726
    %728 = vdwg.mxu0
    %v730 = vsel %vm413, %v658, 0
    %732 = vmatpush.msra.mxu0 0.0
    %733 = vmatpush.msra.mxu0 0.0
    %734 = vmatpush.msra.mxu0 0.0
    %735 = vmatpush.msra.mxu0 0.0
    %736 = vmatpush.msra.mxu0 0.0
    %737 = vmatpush.msra.mxu0 0.0
    %738 = vmatpush.msra.mxu0 0.0
    %739 = vmatpush.msra.mxu0 0.0
    %740 = vmatpush.msra.mxu0 0.0
    %741 = vmatpush.msra.mxu0 0.0
    %742 = vmatpush.msra.mxu0 0.0
    %743 = vmatpush.msra.mxu0 0.0
    %744 = vmatpush.msra.mxu0 0.0
    %745 = vmatpush.msra.mxu0 0.0
    %746 = vmatpush.msra.mxu0 0.0
    %747 = vmatpush.msra.mxu0 %v126
    %748 = vmatmul.f32.gmra.mxu0 %v730
    %v749 = vpop.f32.mrf.mxu0
    %v750 = vadd.f32 0.0, %v749
    %751 = vdwg.mxu0
    %v753 = vsel %vm413, %v681, 0
    %755 = vmatpush.msra.mxu0 0.0
    %756 = vmatpush.msra.mxu0 0.0
    %757 = vmatpush.msra.mxu0 0.0
    %758 = vmatpush.msra.mxu0 0.0
    %759 = vmatpush.msra.mxu0 0.0
    %760 = vmatpush.msra.mxu0 0.0
    %761 = vmatpush.msra.mxu0 0.0
    %762 = vmatpush.msra.mxu0 0.0
    %763 = vmatpush.msra.mxu0 0.0
    %764 = vmatpush.msra.mxu0 0.0
    %765 = vmatpush.msra.mxu0 0.0
    %766 = vmatpush.msra.mxu0 0.0
    %767 = vmatpush.msra.mxu0 0.0
    %768 = vmatpush.msra.mxu0 0.0
    %769 = vmatpush.msra.mxu0 0.0
    %770 = vmatpush.msra.mxu0 %v127
    %771 = vmatmul.f32.gmra.mxu0 %v753
    %v772 = vpop.f32.mrf.mxu0
    %v773 = vadd.f32 0.0, %v772
    %774 = vdwg.mxu0
    %v776 = vsel %vm413, %v704, 0
    %778 = vmatpush.msra.mxu0 0.0
    %779 = vmatpush.msra.mxu0 0.0
    %780 = vmatpush.msra.mxu0 0.0
    %781 = vmatpush.msra.mxu0 0.0
    %782 = vmatpush.msra.mxu0 0.0
    %783 = vmatpush.msra.mxu0 0.0
    %784 = vmatpush.msra.mxu0 0.0
    %785 = vmatpush.msra.mxu0 0.0
    %786 = vmatpush.msra.mxu0 0.0
    %787 = vmatpush.msra.mxu0 0.0
    %788 = vmatpush.msra.mxu0 0.0
    %789 = vmatpush.msra.mxu0 0.0
    %790 = vmatpush.msra.mxu0 0.0
    %791 = vmatpush.msra.mxu0 0.0
    %792 = vmatpush.msra.mxu0 0.0
    %793 = vmatpush.msra.mxu0 %v128
    %794 = vmatmul.f32.gmra.mxu0 %v776
    %v795 = vpop.f32.mrf.mxu0
    %v796 = vadd.f32 0.0, %v795
    %797 = vdwg.mxu0
    %v798 = vsel %vm141, %v727, 0.0
    %v799 = vsel %vm141, %v750, 0.0
    %v800 = vadd.f32 %v798, %v799
    %v801 = vsel %vm141, %v773, 0.0
    %v802 = vadd.f32 %v800, %v801
    %v803 = vsel %vm141, %v796, 0.0
    %v804 = vadd.f32 %v802, %v803
    %v805 = vld [vmem:[%s8] sm:$0x1]
    %v807 = vperm.slane %v805, 0
    %v809 = vadd.f32 %v804, %v807
    %v811 = vsel %vm141, %v64, 0
    %813 = vmatpush.msra.mxu0 0.0
    %814 = vmatpush.msra.mxu0 0.0
    %815 = vmatpush.msra.mxu0 0.0
    %816 = vmatpush.msra.mxu0 0.0
    %817 = vmatpush.msra.mxu0 0.0
    %818 = vmatpush.msra.mxu0 0.0
    %819 = vmatpush.msra.mxu0 0.0
    %820 = vmatpush.msra.mxu0 0.0
    %821 = vmatpush.msra.mxu0 0.0
    %822 = vmatpush.msra.mxu0 0.0
    %823 = vmatpush.msra.mxu0 0.0
    %824 = vmatpush.msra.mxu0 0.0
    %825 = vmatpush.msra.mxu0 %v68
    %826 = vmatpush.msra.mxu0 %v67
    %827 = vmatpush.msra.mxu0 %v66
    %828 = vmatpush.msra.mxu0 %v65
    %829 = vmatmul.f32.gmra.mxu0 %v811
    %v830 = vpop.f32.mrf.mxu0
    %v831 = vadd.f32 %v133, %v830
    %832 = vdwg.mxu0
    %833 = vmatpush.msra.mxu0 0.0
    %834 = vmatpush.msra.mxu0 0.0
    %835 = vmatpush.msra.mxu0 0.0
    %836 = vmatpush.msra.mxu0 0.0
    %837 = vmatpush.msra.mxu0 0.0
    %838 = vmatpush.msra.mxu0 0.0
    %839 = vmatpush.msra.mxu0 0.0
    %840 = vmatpush.msra.mxu0 0.0
    %841 = vmatpush.msra.mxu0 0.0
    %842 = vmatpush.msra.mxu0 0.0
    %843 = vmatpush.msra.mxu0 0.0
    %844 = vmatpush.msra.mxu0 0.0
    %845 = vmatpush.msra.mxu0 %v72
    %846 = vmatpush.msra.mxu0 %v71
    %847 = vmatpush.msra.mxu0 %v70
    %848 = vmatpush.msra.mxu0 %v69
    %849 = vmatmul.f32.gmra.mxu0 %v811
    %v850 = vpop.f32.mrf.mxu0
    %v851 = vadd.f32 %v134, %v850
    %852 = vdwg.mxu0
    %853 = vmatpush.msra.mxu0 0.0
    %854 = vmatpush.msra.mxu0 0.0
    %855 = vmatpush.msra.mxu0 0.0
    %856 = vmatpush.msra.mxu0 0.0
    %857 = vmatpush.msra.mxu0 0.0
    %858 = vmatpush.msra.mxu0 0.0
    %859 = vmatpush.msra.mxu0 0.0
    %860 = vmatpush.msra.mxu0 0.0
    %861 = vmatpush.msra.mxu0 0.0
    %862 = vmatpush.msra.mxu0 0.0
    %863 = vmatpush.msra.mxu0 0.0
    %864 = vmatpush.msra.mxu0 0.0
    %865 = vmatpush.msra.mxu0 %v76
    %866 = vmatpush.msra.mxu0 %v75
    %867 = vmatpush.msra.mxu0 %v74
    %868 = vmatpush.msra.mxu0 %v73
    %869 = vmatmul.f32.gmra.mxu0 %v811
    %v870 = vpop.f32.mrf.mxu0
    %v871 = vadd.f32 %v135, %v870
    %872 = vdwg.mxu0
    %873 = vmatpush.msra.mxu0 0.0
    %874 = vmatpush.msra.mxu0 0.0
    %875 = vmatpush.msra.mxu0 0.0
    %876 = vmatpush.msra.mxu0 0.0
    %877 = vmatpush.msra.mxu0 0.0
    %878 = vmatpush.msra.mxu0 0.0
    %879 = vmatpush.msra.mxu0 0.0
    %880 = vmatpush.msra.mxu0 0.0
    %881 = vmatpush.msra.mxu0 0.0
    %882 = vmatpush.msra.mxu0 0.0
    %883 = vmatpush.msra.mxu0 0.0
    %884 = vmatpush.msra.mxu0 0.0
    %885 = vmatpush.msra.mxu0 %v80
    %886 = vmatpush.msra.mxu0 %v79
    %887 = vmatpush.msra.mxu0 %v78
    %888 = vmatpush.msra.mxu0 %v77
    %889 = vmatmul.f32.gmra.mxu0 %v811
    %v890 = vpop.f32.mrf.mxu0
    %v891 = vadd.f32 %v136, %v890
    %892 = vdwg.mxu0
    %893 = vmatpush.msra.mxu0 0.0
    %894 = vmatpush.msra.mxu0 0.0
    %895 = vmatpush.msra.mxu0 0.0
    %896 = vmatpush.msra.mxu0 0.0
    %897 = vmatpush.msra.mxu0 0.0
    %898 = vmatpush.msra.mxu0 0.0
    %899 = vmatpush.msra.mxu0 0.0
    %900 = vmatpush.msra.mxu0 0.0
    %901 = vmatpush.msra.mxu0 0.0
    %902 = vmatpush.msra.mxu0 0.0
    %903 = vmatpush.msra.mxu0 0.0
    %904 = vmatpush.msra.mxu0 0.0
    %905 = vmatpush.msra.mxu0 %v84
    %906 = vmatpush.msra.mxu0 %v83
    %907 = vmatpush.msra.mxu0 %v82
    %908 = vmatpush.msra.mxu0 %v81
    %909 = vmatmul.f32.gmra.mxu0 %v811
    %v910 = vpop.f32.mrf.mxu0
    %v911 = vadd.f32 %v229, %v910
    %912 = vdwg.mxu0
    %913 = vmatpush.msra.mxu0 0.0
    %914 = vmatpush.msra.mxu0 0.0
    %915 = vmatpush.msra.mxu0 0.0
    %916 = vmatpush.msra.mxu0 0.0
    %917 = vmatpush.msra.mxu0 0.0
    %918 = vmatpush.msra.mxu0 0.0
    %919 = vmatpush.msra.mxu0 0.0
    %920 = vmatpush.msra.mxu0 0.0
    %921 = vmatpush.msra.mxu0 0.0
    %922 = vmatpush.msra.mxu0 0.0
    %923 = vmatpush.msra.mxu0 0.0
    %924 = vmatpush.msra.mxu0 0.0
    %925 = vmatpush.msra.mxu0 %v88
    %926 = vmatpush.msra.mxu0 %v87
    %927 = vmatpush.msra.mxu0 %v86
    %928 = vmatpush.msra.mxu0 %v85
    %929 = vmatmul.f32.gmra.mxu0 %v811
    %v930 = vpop.f32.mrf.mxu0
    %v931 = vadd.f32 %v230, %v930
    %932 = vdwg.mxu0
    %933 = vmatpush.msra.mxu0 0.0
    %934 = vmatpush.msra.mxu0 0.0
    %935 = vmatpush.msra.mxu0 0.0
    %936 = vmatpush.msra.mxu0 0.0
    %937 = vmatpush.msra.mxu0 0.0
    %938 = vmatpush.msra.mxu0 0.0
    %939 = vmatpush.msra.mxu0 0.0
    %940 = vmatpush.msra.mxu0 0.0
    %941 = vmatpush.msra.mxu0 0.0
    %942 = vmatpush.msra.mxu0 0.0
    %943 = vmatpush.msra.mxu0 0.0
    %944 = vmatpush.msra.mxu0 0.0
    %945 = vmatpush.msra.mxu0 %v92
    %946 = vmatpush.msra.mxu0 %v91
    %947 = vmatpush.msra.mxu0 %v90
    %948 = vmatpush.msra.mxu0 %v89
    %949 = vmatmul.f32.gmra.mxu0 %v811
    %v950 = vpop.f32.mrf.mxu0
    %v951 = vadd.f32 %v231, %v950
    %952 = vdwg.mxu0
    %953 = vmatpush.msra.mxu0 0.0
    %954 = vmatpush.msra.mxu0 0.0
    %955 = vmatpush.msra.mxu0 0.0
    %956 = vmatpush.msra.mxu0 0.0
    %957 = vmatpush.msra.mxu0 0.0
    %958 = vmatpush.msra.mxu0 0.0
    %959 = vmatpush.msra.mxu0 0.0
    %960 = vmatpush.msra.mxu0 0.0
    %961 = vmatpush.msra.mxu0 0.0
    %962 = vmatpush.msra.mxu0 0.0
    %963 = vmatpush.msra.mxu0 0.0
    %964 = vmatpush.msra.mxu0 0.0
    %965 = vmatpush.msra.mxu0 %v96
    %966 = vmatpush.msra.mxu0 %v95
    %967 = vmatpush.msra.mxu0 %v94
    %968 = vmatpush.msra.mxu0 %v93
    %969 = vmatmul.f32.gmra.mxu0 %v811
    %v970 = vpop.f32.mrf.mxu0
    %v971 = vadd.f32 %v232, %v970
    %972 = vdwg.mxu0
    %973 = vmatpush.msra.mxu0 0.0
    %974 = vmatpush.msra.mxu0 0.0
    %975 = vmatpush.msra.mxu0 0.0
    %976 = vmatpush.msra.mxu0 0.0
    %977 = vmatpush.msra.mxu0 0.0
    %978 = vmatpush.msra.mxu0 0.0
    %979 = vmatpush.msra.mxu0 0.0
    %980 = vmatpush.msra.mxu0 0.0
    %981 = vmatpush.msra.mxu0 0.0
    %982 = vmatpush.msra.mxu0 0.0
    %983 = vmatpush.msra.mxu0 0.0
    %984 = vmatpush.msra.mxu0 0.0
    %985 = vmatpush.msra.mxu0 %v100
    %986 = vmatpush.msra.mxu0 %v99
    %987 = vmatpush.msra.mxu0 %v98
    %988 = vmatpush.msra.mxu0 %v97
    %989 = vmatmul.f32.gmra.mxu0 %v811
    %v990 = vpop.f32.mrf.mxu0
    %v991 = vadd.f32 %v321, %v990
    %992 = vdwg.mxu0
    %993 = vmatpush.msra.mxu0 0.0
    %994 = vmatpush.msra.mxu0 0.0
    %995 = vmatpush.msra.mxu0 0.0
    %996 = vmatpush.msra.mxu0 0.0
    %997 = vmatpush.msra.mxu0 0.0
    %998 = vmatpush.msra.mxu0 0.0
    %999 = vmatpush.msra.mxu0 0.0
    %1000 = vmatpush.msra.mxu0 0.0
    %1001 = vmatpush.msra.mxu0 0.0
    %1002 = vmatpush.msra.mxu0 0.0
    %1003 = vmatpush.msra.mxu0 0.0
    %1004 = vmatpush.msra.mxu0 0.0
    %1005 = vmatpush.msra.mxu0 %v104
    %1006 = vmatpush.msra.mxu0 %v103
    %1007 = vmatpush.msra.mxu0 %v102
    %1008 = vmatpush.msra.mxu0 %v101
    %1009 = vmatmul.f32.gmra.mxu0 %v811
    %v1010 = vpop.f32.mrf.mxu0
    %v1011 = vadd.f32 %v322, %v1010
    %1012 = vdwg.mxu0
    %1013 = vmatpush.msra.mxu0 0.0
    %1014 = vmatpush.msra.mxu0 0.0
    %1015 = vmatpush.msra.mxu0 0.0
    %1016 = vmatpush.msra.mxu0 0.0
    %1017 = vmatpush.msra.mxu0 0.0
    %1018 = vmatpush.msra.mxu0 0.0
    %1019 = vmatpush.msra.mxu0 0.0
    %1020 = vmatpush.msra.mxu0 0.0
    %1021 = vmatpush.msra.mxu0 0.0
    %1022 = vmatpush.msra.mxu0 0.0
    %1023 = vmatpush.msra.mxu0 0.0
    %1024 = vmatpush.msra.mxu0 0.0
    %1025 = vmatpush.msra.mxu0 %v108
    %1026 = vmatpush.msra.mxu0 %v107
    %1027 = vmatpush.msra.mxu0 %v106
    %1028 = vmatpush.msra.mxu0 %v105
    %1029 = vmatmul.f32.gmra.mxu0 %v811
    %v1030 = vpop.f32.mrf.mxu0
    %v1031 = vadd.f32 %v323, %v1030
    %1032 = vdwg.mxu0
    %1033 = vmatpush.msra.mxu0 0.0
    %1034 = vmatpush.msra.mxu0 0.0
    %1035 = vmatpush.msra.mxu0 0.0
    %1036 = vmatpush.msra.mxu0 0.0
    %1037 = vmatpush.msra.mxu0 0.0
    %1038 = vmatpush.msra.mxu0 0.0
    %1039 = vmatpush.msra.mxu0 0.0
    %1040 = vmatpush.msra.mxu0 0.0
    %1041 = vmatpush.msra.mxu0 0.0
    %1042 = vmatpush.msra.mxu0 0.0
    %1043 = vmatpush.msra.mxu0 0.0
    %1044 = vmatpush.msra.mxu0 0.0
    %1045 = vmatpush.msra.mxu0 %v112
    %1046 = vmatpush.msra.mxu0 %v111
    %1047 = vmatpush.msra.mxu0 %v110
    %1048 = vmatpush.msra.mxu0 %v109
    %1049 = vmatmul.f32.gmra.mxu0 %v811
    %v1050 = vpop.f32.mrf.mxu0
    %v1051 = vadd.f32 %v324, %v1050
    %1052 = vdwg.mxu0
    %v1053 = vmul.f32 %v831, 0.35355338
    %v1054 = vmul.f32 %v851, 0.35355338
    %v1055 = vmul.f32 %v871, 0.35355338
    %v1056 = vmul.f32 %v891, 0.35355338
    %v1058 = vsel %vm413, %v1053, 0
    %v1061 = vsel %vm413, %v911, 0
    %1063 = vmatpush.xpose.msra.mxu0 0.0
    %1064 = vmatpush.xpose.msra.mxu0 0.0
    %1065 = vmatpush.xpose.msra.mxu0 0.0
    %1066 = vmatpush.xpose.msra.mxu0 0.0
    %1067 = vmatpush.xpose.msra.mxu0 0.0
    %1068 = vmatpush.xpose.msra.mxu0 0.0
    %1069 = vmatpush.xpose.msra.mxu0 0.0
    %1070 = vmatpush.xpose.msra.mxu0 0.0
    %1071 = vmatpush.xpose.msra.mxu0 0.0
    %1072 = vmatpush.xpose.msra.mxu0 0.0
    %1073 = vmatpush.xpose.msra.mxu0 0.0
    %1074 = vmatpush.xpose.msra.mxu0 0.0
    %1075 = vmatpush.xpose.msra.mxu0 0.0
    %1076 = vmatpush.xpose.msra.mxu0 0.0
    %1077 = vmatpush.xpose.msra.mxu0 0.0
    %1078 = vmatpush.xpose.msra.mxu0 %v1061
    %1079 = vmatmul.f32.gmra.mxu0 %v1058
    %v1080 = vpop.f32.mrf.mxu0
    %v1081 = vadd.f32 0.0, %v1080
    %1082 = vdwg.mxu0
    %v1084 = vsel %vm413, %v1054, 0
    %v1087 = vsel %vm413, %v931, 0
    %1089 = vmatpush.xpose.msra.mxu0 0.0
    %1090 = vmatpush.xpose.msra.mxu0 0.0
    %1091 = vmatpush.xpose.msra.mxu0 0.0
    %1092 = vmatpush.xpose.msra.mxu0 0.0
    %1093 = vmatpush.xpose.msra.mxu0 0.0
    %1094 = vmatpush.xpose.msra.mxu0 0.0
    %1095 = vmatpush.xpose.msra.mxu0 0.0
    %1096 = vmatpush.xpose.msra.mxu0 0.0
    %1097 = vmatpush.xpose.msra.mxu0 0.0
    %1098 = vmatpush.xpose.msra.mxu0 0.0
    %1099 = vmatpush.xpose.msra.mxu0 0.0
    %1100 = vmatpush.xpose.msra.mxu0 0.0
    %1101 = vmatpush.xpose.msra.mxu0 0.0
    %1102 = vmatpush.xpose.msra.mxu0 0.0
    %1103 = vmatpush.xpose.msra.mxu0 0.0
    %1104 = vmatpush.xpose.msra.mxu0 %v1087
    %1105 = vmatmul.f32.gmra.mxu0 %v1084
    %v1106 = vpop.f32.mrf.mxu0
    %v1107 = vadd.f32 0.0, %v1106
    %1108 = vdwg.mxu0
    %v1110 = vsel %vm413, %v1055, 0
    %v1113 = vsel %vm413, %v951, 0
    %1115 = vmatpush.xpose.msra.mxu0 0.0
    %1116 = vmatpush.xpose.msra.mxu0 0.0
    %1117 = vmatpush.xpose.msra.mxu0 0.0
    %1118 = vmatpush.xpose.msra.mxu0 0.0
    %1119 = vmatpush.xpose.msra.mxu0 0.0
    %1120 = vmatpush.xpose.msra.mxu0 0.0
    %1121 = vmatpush.xpose.msra.mxu0 0.0
    %1122 = vmatpush.xpose.msra.mxu0 0.0
    %1123 = vmatpush.xpose.msra.mxu0 0.0
    %1124 = vmatpush.xpose.msra.mxu0 0.0
    %1125 = vmatpush.xpose.msra.mxu0 0.0
    %1126 = vmatpush.xpose.msra.mxu0 0.0
    %1127 = vmatpush.xpose.msra.mxu0 0.0
    %1128 = vmatpush.xpose.msra.mxu0 0.0
    %1129 = vmatpush.xpose.msra.mxu0 0.0
    %1130 = vmatpush.xpose.msra.mxu0 %v1113
    %1131 = vmatmul.f32.gmra.mxu0 %v1110
    %v1132 = vpop.f32.mrf.mxu0
    %v1133 = vadd.f32 0.0, %v1132
    %1134 = vdwg.mxu0
    %v1136 = vsel %vm413, %v1056, 0
    %v1139 = vsel %vm413, %v971, 0
    %1141 = vmatpush.xpose.msra.mxu0 0.0
    %1142 = vmatpush.xpose.msra.mxu0 0.0
    %1143 = vmatpush.xpose.msra.mxu0 0.0
    %1144 = vmatpush.xpose.msra.mxu0 0.0
    %1145 = vmatpush.xpose.msra.mxu0 0.0
    %1146 = vmatpush.xpose.msra.mxu0 0.0
    %1147 = vmatpush.xpose.msra.mxu0 0.0
    %1148 = vmatpush.xpose.msra.mxu0 0.0
    %1149 = vmatpush.xpose.msra.mxu0 0.0
    %1150 = vmatpush.xpose.msra.mxu0 0.0
    %1151 = vmatpush.xpose.msra.mxu0 0.0
    %1152 = vmatpush.xpose.msra.mxu0 0.0
    %1153 = vmatpush.xpose.msra.mxu0 0.0
    %1154 = vmatpush.xpose.msra.mxu0 0.0
    %1155 = vmatpush.xpose.msra.mxu0 0.0
    %1156 = vmatpush.xpose.msra.mxu0 %v1139
    %1157 = vmatmul.f32.gmra.mxu0 %v1136
    %v1158 = vpop.f32.mrf.mxu0
    %v1159 = vadd.f32 0.0, %v1158
    %1160 = vdwg.mxu0
    %v1161 = vsel %vm413, %v1081, -inf
    %1162 = vmax.xlane.f32.xlu0 %v1161
    %v1163 = vpop.xlane.xlu0 %1162
    %v1164 = vsel %vm413, %v1107, -inf
    %1165 = vmax.xlane.f32.xlu0 %v1164
    %v1166 = vpop.xlane.xlu0 %1165
    %v1167 = vsel %vm413, %v1133, -inf
    %1168 = vmax.xlane.f32.xlu0 %v1167
    %v1169 = vpop.xlane.xlu0 %1168
    %v1170 = vsel %vm413, %v1159, -inf
    %1171 = vmax.xlane.f32.xlu0 %v1170
    %v1172 = vpop.xlane.xlu0 %1171
    %v1173 = vsub.f32 %v1081, %v1163
    %v1174 = vsub.f32 %v1107, %v1166
    %v1175 = vsub.f32 %v1133, %v1169
    %v1176 = vsub.f32 %v1159, %v1172
    %v1177 = vmul.f32 %v1173, 1.442695
    %v1178 = vpow.pop %v1177
    %v1179 = vmul.f32 %v1174, 1.442695
    %v1180 = vpow.pop %v1179
    %v1181 = vmul.f32 %v1175, 1.442695
    %v1182 = vpow.pop %v1181
    %v1183 = vmul.f32 %v1176, 1.442695
    %v1184 = vpow.pop %v1183
    %v1185 = vsel %vm413, %v1178, 0.0
    %1186 = vadd.xlane.f32.xlu0 %v1185
    %v1187 = vpop.xlane.xlu0 %1186
    %v1188 = vsel %vm413, %v1180, 0.0
    %1189 = vadd.xlane.f32.xlu0 %v1188
    %v1190 = vpop.xlane.xlu0 %1189
    %v1191 = vsel %vm413, %v1182, 0.0
    %1192 = vadd.xlane.f32.xlu0 %v1191
    %v1193 = vpop.xlane.xlu0 %1192
    %v1194 = vsel %vm413, %v1184, 0.0
    %1195 = vadd.xlane.f32.xlu0 %v1194
    %v1196 = vpop.xlane.xlu0 %1195
    %v1197 = vrcp.pop %v1187
    %v1198 = vmul.f32 %v1187, %v1197
    %v1199 = vsub.f32 1.0, %v1198
    %v1200 = vmul.f32 %v1197, %v1199
    %v1201 = vadd.f32 %v1197, %v1200
    %vm1202 = vweird.f32 %v1187
    %vm1203 = vweird.f32 %v1197
    %vm1204 = vmor %vm1202, %vm1203
    %v1205 = vsel %vm1204, %v1197, %v1201
    %v1206 = vand.u32 2147483647, %v1187
    %vm1207 = vcmp.eq.f32.partialorder %v1206, 8.507059e+37
    %v1208 = vand.u32 %v1187, 2147483648
    %v1209 = vor.u32 1.1754944e-38, %v1208
    %v1210 = vsel %vm1207, %v1209, %v1205
    %v1211 = vmul.f32 %v1178, %v1210
    %v1212 = vrcp.pop %v1190
    %v1213 = vmul.f32 %v1190, %v1212
    %v1214 = vsub.f32 1.0, %v1213
    %v1215 = vmul.f32 %v1212, %v1214
    %v1216 = vadd.f32 %v1212, %v1215
    %vm1217 = vweird.f32 %v1190
    %vm1218 = vweird.f32 %v1212
    %vm1219 = vmor %vm1217, %vm1218
    %v1220 = vsel %vm1219, %v1212, %v1216
    %v1221 = vand.u32 2147483647, %v1190
    %vm1222 = vcmp.eq.f32.partialorder %v1221, 8.507059e+37
    %v1223 = vand.u32 %v1190, 2147483648
    %v1224 = vor.u32 1.1754944e-38, %v1223
    %v1225 = vsel %vm1222, %v1224, %v1220
    %v1226 = vmul.f32 %v1180, %v1225
    %v1227 = vrcp.pop %v1193
    %v1228 = vmul.f32 %v1193, %v1227
    %v1229 = vsub.f32 1.0, %v1228
    %v1230 = vmul.f32 %v1227, %v1229
    %v1231 = vadd.f32 %v1227, %v1230
    %vm1232 = vweird.f32 %v1193
    %vm1233 = vweird.f32 %v1227
    %vm1234 = vmor %vm1232, %vm1233
    %v1235 = vsel %vm1234, %v1227, %v1231
    %v1236 = vand.u32 2147483647, %v1193
    %vm1237 = vcmp.eq.f32.partialorder %v1236, 8.507059e+37
    %v1238 = vand.u32 %v1193, 2147483648
    %v1239 = vor.u32 1.1754944e-38, %v1238
    %v1240 = vsel %vm1237, %v1239, %v1235
    %v1241 = vmul.f32 %v1182, %v1240
    %v1242 = vrcp.pop %v1196
    %v1243 = vmul.f32 %v1196, %v1242
    %v1244 = vsub.f32 1.0, %v1243
    %v1245 = vmul.f32 %v1242, %v1244
    %v1246 = vadd.f32 %v1242, %v1245
    %vm1247 = vweird.f32 %v1196
    %vm1248 = vweird.f32 %v1242
    %vm1249 = vmor %vm1247, %vm1248
    %v1250 = vsel %vm1249, %v1242, %v1246
    %v1251 = vand.u32 2147483647, %v1196
    %vm1252 = vcmp.eq.f32.partialorder %v1251, 8.507059e+37
    %v1253 = vand.u32 %v1196, 2147483648
    %v1254 = vor.u32 1.1754944e-38, %v1253
    %v1255 = vsel %vm1252, %v1254, %v1250
    %v1256 = vmul.f32 %v1184, %v1255
    %v1258 = vsel %vm413, %v1211, 0
    %1260 = vmatpush.msra.mxu0 0.0
    %1261 = vmatpush.msra.mxu0 0.0
    %1262 = vmatpush.msra.mxu0 0.0
    %1263 = vmatpush.msra.mxu0 0.0
    %1264 = vmatpush.msra.mxu0 0.0
    %1265 = vmatpush.msra.mxu0 0.0
    %1266 = vmatpush.msra.mxu0 0.0
    %1267 = vmatpush.msra.mxu0 0.0
    %1268 = vmatpush.msra.mxu0 0.0
    %1269 = vmatpush.msra.mxu0 0.0
    %1270 = vmatpush.msra.mxu0 0.0
    %1271 = vmatpush.msra.mxu0 0.0
    %1272 = vmatpush.msra.mxu0 0.0
    %1273 = vmatpush.msra.mxu0 0.0
    %1274 = vmatpush.msra.mxu0 0.0
    %1275 = vmatpush.msra.mxu0 %v991
    %1276 = vmatmul.f32.gmra.mxu0 %v1258
    %v1277 = vpop.f32.mrf.mxu0
    %v1278 = vadd.f32 0.0, %v1277
    %1279 = vdwg.mxu0
    %v1281 = vsel %vm413, %v1226, 0
    %1283 = vmatpush.msra.mxu0 0.0
    %1284 = vmatpush.msra.mxu0 0.0
    %1285 = vmatpush.msra.mxu0 0.0
    %1286 = vmatpush.msra.mxu0 0.0
    %1287 = vmatpush.msra.mxu0 0.0
    %1288 = vmatpush.msra.mxu0 0.0
    %1289 = vmatpush.msra.mxu0 0.0
    %1290 = vmatpush.msra.mxu0 0.0
    %1291 = vmatpush.msra.mxu0 0.0
    %1292 = vmatpush.msra.mxu0 0.0
    %1293 = vmatpush.msra.mxu0 0.0
    %1294 = vmatpush.msra.mxu0 0.0
    %1295 = vmatpush.msra.mxu0 0.0
    %1296 = vmatpush.msra.mxu0 0.0
    %1297 = vmatpush.msra.mxu0 0.0
    %1298 = vmatpush.msra.mxu0 %v1011
    %1299 = vmatmul.f32.gmra.mxu0 %v1281
    %v1300 = vpop.f32.mrf.mxu0
    %v1301 = vadd.f32 0.0, %v1300
    %1302 = vdwg.mxu0
    %v1304 = vsel %vm413, %v1241, 0
    %1306 = vmatpush.msra.mxu0 0.0
    %1307 = vmatpush.msra.mxu0 0.0
    %1308 = vmatpush.msra.mxu0 0.0
    %1309 = vmatpush.msra.mxu0 0.0
    %1310 = vmatpush.msra.mxu0 0.0
    %1311 = vmatpush.msra.mxu0 0.0
    %1312 = vmatpush.msra.mxu0 0.0
    %1313 = vmatpush.msra.mxu0 0.0
    %1314 = vmatpush.msra.mxu0 0.0
    %1315 = vmatpush.msra.mxu0 0.0
    %1316 = vmatpush.msra.mxu0 0.0
    %1317 = vmatpush.msra.mxu0 0.0
    %1318 = vmatpush.msra.mxu0 0.0
    %1319 = vmatpush.msra.mxu0 0.0
    %1320 = vmatpush.msra.mxu0 0.0
    %1321 = vmatpush.msra.mxu0 %v1031
    %1322 = vmatmul.f32.gmra.mxu0 %v1304
    %v1323 = vpop.f32.mrf.mxu0
    %v1324 = vadd.f32 0.0, %v1323
    %1325 = vdwg.mxu0
    %v1327 = vsel %vm413, %v1256, 0
    %1329 = vmatpush.msra.mxu0 0.0
    %1330 = vmatpush.msra.mxu0 0.0
    %1331 = vmatpush.msra.mxu0 0.0
    %1332 = vmatpush.msra.mxu0 0.0
    %1333 = vmatpush.msra.mxu0 0.0
    %1334 = vmatpush.msra.mxu0 0.0
    %1335 = vmatpush.msra.mxu0 0.0
    %1336 = vmatpush.msra.mxu0 0.0
    %1337 = vmatpush.msra.mxu0 0.0
    %1338 = vmatpush.msra.mxu0 0.0
    %1339 = vmatpush.msra.mxu0 0.0
    %1340 = vmatpush.msra.mxu0 0.0
    %1341 = vmatpush.msra.mxu0 0.0
    %1342 = vmatpush.msra.mxu0 0.0
    %1343 = vmatpush.msra.mxu0 0.0
    %1344 = vmatpush.msra.mxu0 %v1051
    %1345 = vmatmul.f32.gmra.mxu0 %v1327
    %v1346 = vpop.f32.mrf.mxu0
    %v1347 = vadd.f32 0.0, %v1346
    %1348 = vdwg.mxu0
    %v1350 = vsel %vm413, %v1278, 0
    %1352 = vmatpush.msra.mxu0 0.0
    %1353 = vmatpush.msra.mxu0 0.0
    %1354 = vmatpush.msra.mxu0 0.0
    %1355 = vmatpush.msra.mxu0 0.0
    %1356 = vmatpush.msra.mxu0 0.0
    %1357 = vmatpush.msra.mxu0 0.0
    %1358 = vmatpush.msra.mxu0 0.0
    %1359 = vmatpush.msra.mxu0 0.0
    %1360 = vmatpush.msra.mxu0 0.0
    %1361 = vmatpush.msra.mxu0 0.0
    %1362 = vmatpush.msra.mxu0 0.0
    %1363 = vmatpush.msra.mxu0 0.0
    %1364 = vmatpush.msra.mxu0 0.0
    %1365 = vmatpush.msra.mxu0 0.0
    %1366 = vmatpush.msra.mxu0 0.0
    %1367 = vmatpush.msra.mxu0 %v125
    %1368 = vmatmul.f32.gmra.mxu0 %v1350
    %v1369 = vpop.f32.mrf.mxu0
    %v1370 = vadd.f32 0.0, %v1369
    %1371 = vdwg.mxu0
    %v1373 = vsel %vm413, %v1301, 0
    %1375 = vmatpush.msra.mxu0 0.0
    %1376 = vmatpush.msra.mxu0 0.0
    %1377 = vmatpush.msra.mxu0 0.0
    %1378 = vmatpush.msra.mxu0 0.0
    %1379 = vmatpush.msra.mxu0 0.0
    %1380 = vmatpush.msra.mxu0 0.0
    %1381 = vmatpush.msra.mxu0 0.0
    %1382 = vmatpush.msra.mxu0 0.0
    %1383 = vmatpush.msra.mxu0 0.0
    %1384 = vmatpush.msra.mxu0 0.0
    %1385 = vmatpush.msra.mxu0 0.0
    %1386 = vmatpush.msra.mxu0 0.0
    %1387 = vmatpush.msra.mxu0 0.0
    %1388 = vmatpush.msra.mxu0 0.0
    %1389 = vmatpush.msra.mxu0 0.0
    %1390 = vmatpush.msra.mxu0 %v126
    %1391 = vmatmul.f32.gmra.mxu0 %v1373
    %v1392 = vpop.f32.mrf.mxu0
    %v1393 = vadd.f32 0.0, %v1392
    %1394 = vdwg.mxu0
    %v1396 = vsel %vm413, %v1324, 0
    %1398 = vmatpush.msra.mxu0 0.0
    %1399 = vmatpush.msra.mxu0 0.0
    %1400 = vmatpush.msra.mxu0 0.0
    %1401 = vmatpush.msra.mxu0 0.0
    %1402 = vmatpush.msra.mxu0 0.0
    %1403 = vmatpush.msra.mxu0 0.0
    %1404 = vmatpush.msra.mxu0 0.0
    %1405 = vmatpush.msra.mxu0 0.0
    %1406 = vmatpush.msra.mxu0 0.0
    %1407 = vmatpush.msra.mxu0 0.0
    %1408 = vmatpush.msra.mxu0 0.0
    %1409 = vmatpush.msra.mxu0 0.0
    %1410 = vmatpush.msra.mxu0 0.0
    %1411 = vmatpush.msra.mxu0 0.0
    %1412 = vmatpush.msra.mxu0 0.0
    %1413 = vmatpush.msra.mxu0 %v127
    %1414 = vmatmul.f32.gmra.mxu0 %v1396
    %v1415 = vpop.f32.mrf.mxu0
    %v1416 = vadd.f32 0.0, %v1415
    %1417 = vdwg.mxu0
    %v1419 = vsel %vm413, %v1347, 0
    %1421 = vmatpush.msra.mxu0 0.0
    %1422 = vmatpush.msra.mxu0 0.0
    %1423 = vmatpush.msra.mxu0 0.0
    %1424 = vmatpush.msra.mxu0 0.0
    %1425 = vmatpush.msra.mxu0 0.0
    %1426 = vmatpush.msra.mxu0 0.0
    %1427 = vmatpush.msra.mxu0 0.0
    %1428 = vmatpush.msra.mxu0 0.0
    %1429 = vmatpush.msra.mxu0 0.0
    %1430 = vmatpush.msra.mxu0 0.0
    %1431 = vmatpush.msra.mxu0 0.0
    %1432 = vmatpush.msra.mxu0 0.0
    %1433 = vmatpush.msra.mxu0 0.0
    %1434 = vmatpush.msra.mxu0 0.0
    %1435 = vmatpush.msra.mxu0 0.0
    %1436 = vmatpush.msra.mxu0 %v128
    %1437 = vmatmul.f32.gmra.mxu0 %v1419
    %v1438 = vpop.f32.mrf.mxu0
    %v1439 = vadd.f32 0.0, %v1438
    %1440 = vdwg.mxu0
    %v1441 = vsel %vm141, %v1370, 0.0
    %v1442 = vsel %vm141, %v1393, 0.0
    %v1443 = vadd.f32 %v1441, %v1442
    %v1444 = vsel %vm141, %v1416, 0.0
    %v1445 = vadd.f32 %v1443, %v1444
    %v1446 = vsel %vm141, %v1439, 0.0
    %v1447 = vadd.f32 %v1445, %v1446
    %v1448 = vld [vmem:[%s8] sm:$0x1]
    %v1450 = vperm.slane %v1448, 0
    %v1452 = vadd.f32 %v1447, %v1450
    %v1453 = vadd.f32 %v63, %v809
    %v1454 = vadd.f32 %v64, %v1452
    %v1455 = vld [vmem:[%s9] sm:$0x1]
    %v1456 = vld [vmem:[%s10] sm:$0x1]
    %v1457 = vsel %vm141, %v1453, 0.0
    %1458 = vadd.xlane.f32.xlu0 %v1457
    %v1459 = vpop.xlane.xlu0 %1458
    %v1460 = vsel %vm141, %v1454, 0.0
    %1461 = vadd.xlane.f32.xlu0 %v1460
    %v1462 = vpop.xlane.xlu0 %1461
    %v1463 = vrcp.pop 32.0
    %v1464 = vmul.f32 32.0, %v1463
    %v1465 = vsub.f32 1.0, %v1464
    %v1466 = vmul.f32 %v1463, %v1465
    %v1467 = vadd.f32 %v1463, %v1466
    %vm1468 = vweird.f32 %v1463
    %v1469 = vsel %vm1468, %v1463, %v1467
    %v1470 = vmul.f32 %v1459, %v1469
    %v1471 = vmul.f32 %v1462, %v1469
    %v1472 = vsub.f32 %v1453, %v1470
    %v1473 = vsub.f32 %v1454, %v1471
    %v1474 = vmul.f32 %v1472, %v1472
    %v1475 = vmul.f32 %v1473, %v1473
    %v1476 = vsel %vm141, %v1474, 0.0
    %1477 = vadd.xlane.f32.xlu0 %v1476
    %v1478 = vpop.xlane.xlu0 %1477
    %v1479 = vsel %vm141, %v1475, 0.0
    %1480 = vadd.xlane.f32.xlu0 %v1479
    %v1481 = vpop.xlane.xlu0 %1480
    %v1482 = vmul.f32 %v1478, %v1469
    %v1483 = vmul.f32 %v1481, %v1469
    %v1484 = vadd.f32 %v1482, 1e-05
    %v1485 = vadd.f32 %v1483, 1e-05
    %v1486 = vrsqrt.pop %v1484
    %v1487 = vmul.f32 %v1486, %v1484
    %v1488 = vmul.f32 %v1487, %v1486
    %v1489 = vmul.f32 0.5, %v1488
    %v1490 = vsub.f32 1.5, %v1489
    %v1491 = vmul.f32 %v1486, %v1490
    %vm1492 = vweird.f32 %v1484
    %vm1493 = vweird.f32 %v1486
    %vm1494 = vmor %vm1492, %vm1493
    %v1495 = vsel %vm1494, %v1486, %v1491
    %v1496 = vrsqrt.pop %v1485
    %v1497 = vmul.f32 %v1496, %v1485
    %v1498 = vmul.f32 %v1497, %v1496
    %v1499 = vmul.f32 0.5, %v1498
    %v1500 = vsub.f32 1.5, %v1499
    %v1501 = vmul.f32 %v1496, %v1500
    %vm1502 = vweird.f32 %v1485
    %vm1503 = vweird.f32 %v1496
    %vm1504 = vmor %vm1502, %vm1503
    %v1505 = vsel %vm1504, %v1496, %v1501
    %v1506 = vmul.f32 %v1472, %v1495
    %v1507 = vmul.f32 %v1473, %v1505
    %v1509 = vperm.slane %v1455, 0
    %v1511 = vmul.f32 %v1506, %v1509
    %v1512 = vmul.f32 %v1507, %v1509
    %v1514 = vperm.slane %v1456, 0
    %v1516 = vadd.f32 %v1511, %v1514
    %v1517 = vadd.f32 %v1512, %v1514
    %v1518 = vld [vmem:[%s11] sm:$0xff]
    %v1519 = vld [vmem:[%s11 + $0x8] sm:$0xff]
    %v1520 = vld [vmem:[%s11 + $0x10] sm:$0xff]
    %v1521 = vld [vmem:[%s11 + $0x18] sm:$0xff]
    %v1522 = vld [vmem:[%s12] sm:$0x1]
    %v1524 = vperm.slane %v1522, 0
    %v1527 = vsel %vm141, %v1516, 0
    %v1530 = vsel %vm141, %v1517, 0
    %1532 = vmatpush.msra.mxu0 0.0
    %1533 = vmatpush.msra.mxu0 0.0
    %1534 = vmatpush.msra.mxu0 0.0
    %1535 = vmatpush.msra.mxu0 0.0
    %1536 = vmatpush.msra.mxu0 0.0
    %1537 = vmatpush.msra.mxu0 0.0
    %1538 = vmatpush.msra.mxu0 0.0
    %1539 = vmatpush.msra.mxu0 0.0
    %1540 = vmatpush.msra.mxu0 0.0
    %1541 = vmatpush.msra.mxu0 0.0
    %1542 = vmatpush.msra.mxu0 0.0
    %1543 = vmatpush.msra.mxu0 0.0
    %1544 = vmatpush.msra.mxu0 %v1521
    %1545 = vmatpush.msra.mxu0 %v1520
    %1546 = vmatpush.msra.mxu0 %v1519
    %1547 = vmatpush.msra.mxu0 %v1518
    %1548 = vmatmul.f32.gmra.mxu0 %v1527
    %v1549 = vpop.f32.mrf.mxu0
    %v1550 = vadd.f32 %v1524, %v1549
    %1551 = vmatmul.f32.gmra.mxu0 %v1530
    %v1552 = vpop.f32.mrf.mxu0
    %v1553 = vadd.f32 %v1524, %v1552
    %1554 = vdwg.mxu0
    %v1555 = vmax.f32 %v1550, 0.0
    %v1556 = vmax.f32 %v1553, 0.0
    %v1557 = vld [vmem:[%s13] sm:$0xff]
    %v1558 = vld [vmem:[%s13 + $0x8] sm:$0xff]
    %v1559 = vld [vmem:[%s13 + $0x10] sm:$0xff]
    %v1560 = vld [vmem:[%s13 + $0x18] sm:$0xff]
    %v1561 = vld [vmem:[%s13 + $0x20] sm:$0xff]
    %v1562 = vld [vmem:[%s13 + $0x28] sm:$0xff]
    %v1563 = vld [vmem:[%s13 + $0x30] sm:$0xff]
    %v1564 = vld [vmem:[%s13 + $0x38] sm:$0xff]
    %v1565 = vld [vmem:[%s13 + $0x40] sm:$0xff]
    %v1566 = vld [vmem:[%s13 + $0x48] sm:$0xff]
    %v1567 = vld [vmem:[%s13 + $0x50] sm:$0xff]
    %v1568 = vld [vmem:[%s13 + $0x58] sm:$0xff]
    %v1569 = vld [vmem:[%s13 + $0x60] sm:$0xff]
    %v1570 = vld [vmem:[%s13 + $0x68] sm:$0xff]
    %v1571 = vld [vmem:[%s13 + $0x70] sm:$0xff]
    %v1572 = vld [vmem:[%s13 + $0x78] sm:$0xff]
    %v1573 = vld [vmem:[%s14] sm:$0x1]
    %v1575 = vperm.slane %v1573, 0
    %1577 = vmatpush.msra.mxu0 %v1572
    %1578 = vmatpush.msra.mxu0 %v1571
    %1579 = vmatpush.msra.mxu0 %v1570
    %1580 = vmatpush.msra.mxu0 %v1569
    %1581 = vmatpush.msra.mxu0 %v1568
    %1582 = vmatpush.msra.mxu0 %v1567
    %1583 = vmatpush.msra.mxu0 %v1566
    %1584 = vmatpush.msra.mxu0 %v1565
    %1585 = vmatpush.msra.mxu0 %v1564
    %1586 = vmatpush.msra.mxu0 %v1563
    %1587 = vmatpush.msra.mxu0 %v1562
    %1588 = vmatpush.msra.mxu0 %v1561
    %1589 = vmatpush.msra.mxu0 %v1560
    %1590 = vmatpush.msra.mxu0 %v1559
    %1591 = vmatpush.msra.mxu0 %v1558
    %1592 = vmatpush.msra.mxu0 %v1557
    %1593 = vmatmul.f32.gmra.mxu0 %v1555
    %v1594 = vpop.f32.mrf.mxu0
    %v1595 = vadd.f32 %v1575, %v1594
    %1596 = vmatmul.f32.gmra.mxu0 %v1556
    %v1597 = vpop.f32.mrf.mxu0
    %v1598 = vadd.f32 %v1575, %v1597
    %1599 = vdwg.mxu0
    %v1600 = vadd.f32 %v1516, %v1595
    %v1601 = vadd.f32 %v1517, %v1598
    %v1602 = vld [vmem:[%s15] sm:$0x1]
    %v1603 = vld [vmem:[%s16] sm:$0x1]
    %v1604 = vsel %vm141, %v1600, 0.0
    %1605 = vadd.xlane.f32.xlu0 %v1604
    %v1606 = vpop.xlane.xlu0 %1605
    %v1607 = vsel %vm141, %v1601, 0.0
    %1608 = vadd.xlane.f32.xlu0 %v1607
    %v1609 = vpop.xlane.xlu0 %1608
    %v1610 = vmul.f32 %v1606, %v1469
    %v1611 = vmul.f32 %v1609, %v1469
    %v1612 = vsub.f32 %v1600, %v1610
    %v1613 = vsub.f32 %v1601, %v1611
    %v1614 = vmul.f32 %v1612, %v1612
    %v1615 = vmul.f32 %v1613, %v1613
    %v1616 = vsel %vm141, %v1614, 0.0
    %1617 = vadd.xlane.f32.xlu0 %v1616
    %v1618 = vpop.xlane.xlu0 %1617
    %v1619 = vsel %vm141, %v1615, 0.0
    %1620 = vadd.xlane.f32.xlu0 %v1619
    %v1621 = vpop.xlane.xlu0 %1620
    %v1622 = vmul.f32 %v1618, %v1469
    %v1623 = vmul.f32 %v1621, %v1469
    %v1624 = vadd.f32 %v1622, 1e-05
    %v1625 = vadd.f32 %v1623, 1e-05
    %v1626 = vrsqrt.pop %v1624
    %v1627 = vmul.f32 %v1626, %v1624
    %v1628 = vmul.f32 %v1627, %v1626
    %v1629 = vmul.f32 0.5, %v1628
    %v1630 = vsub.f32 1.5, %v1629
    %v1631 = vmul.f32 %v1626, %v1630
    %vm1632 = vweird.f32 %v1624
    %vm1633 = vweird.f32 %v1626
    %vm1634 = vmor %vm1632, %vm1633
    %v1635 = vsel %vm1634, %v1626, %v1631
    %v1636 = vrsqrt.pop %v1625
    %v1637 = vmul.f32 %v1636, %v1625
    %v1638 = vmul.f32 %v1637, %v1636
    %v1639 = vmul.f32 0.5, %v1638
    %v1640 = vsub.f32 1.5, %v1639
    %v1641 = vmul.f32 %v1636, %v1640
    %vm1642 = vweird.f32 %v1625
    %vm1643 = vweird.f32 %v1636
    %vm1644 = vmor %vm1642, %vm1643
    %v1645 = vsel %vm1644, %v1636, %v1641
    %v1646 = vmul.f32 %v1612, %v1635
    %v1647 = vmul.f32 %v1613, %v1645
    %v1649 = vperm.slane %v1602, 0
    %v1651 = vmul.f32 %v1646, %v1649
    %v1652 = vmul.f32 %v1647, %v1649
    %v1654 = vperm.slane %v1603, 0
    %v1656 = vadd.f32 %v1651, %v1654
    %v1657 = vadd.f32 %v1652, %v1654
    %s1658 = scalar_lea.vmem %s1, 128
    %v1659 = vld [vmem:[%s1658] sm:$0xff]
    %v1660 = vld [vmem:[%s1658 + $0x8] sm:$0xff]
    %v1661 = vld [vmem:[%s1658 + $0x10] sm:$0xff]
    %v1662 = vld [vmem:[%s1658 + $0x18] sm:$0xff]
    %v1663 = vld [vmem:[%s1658 + $0x20] sm:$0xff]
    %v1664 = vld [vmem:[%s1658 + $0x28] sm:$0xff]
    %v1665 = vld [vmem:[%s1658 + $0x30] sm:$0xff]
    %v1666 = vld [vmem:[%s1658 + $0x38] sm:$0xff]
    %v1667 = vld [vmem:[%s1658 + $0x40] sm:$0xff]
    %v1668 = vld [vmem:[%s1658 + $0x48] sm:$0xff]
    %v1669 = vld [vmem:[%s1658 + $0x50] sm:$0xff]
    %v1670 = vld [vmem:[%s1658 + $0x58] sm:$0xff]
    %v1671 = vld [vmem:[%s1658 + $0x60] sm:$0xff]
    %v1672 = vld [vmem:[%s1658 + $0x68] sm:$0xff]
    %v1673 = vld [vmem:[%s1658 + $0x70] sm:$0xff]
    %v1674 = vld [vmem:[%s1658 + $0x78] sm:$0xff]
    %s1675 = scalar_lea.vmem %s2, 128
    %v1676 = vld [vmem:[%s1675] sm:$0xff]
    %v1677 = vld [vmem:[%s1675 + $0x8] sm:$0xff]
    %v1678 = vld [vmem:[%s1675 + $0x10] sm:$0xff]
    %v1679 = vld [vmem:[%s1675 + $0x18] sm:$0xff]
    %v1680 = vld [vmem:[%s1675 + $0x20] sm:$0xff]
    %v1681 = vld [vmem:[%s1675 + $0x28] sm:$0xff]
    %v1682 = vld [vmem:[%s1675 + $0x30] sm:$0xff]
    %v1683 = vld [vmem:[%s1675 + $0x38] sm:$0xff]
    %v1684 = vld [vmem:[%s1675 + $0x40] sm:$0xff]
    %v1685 = vld [vmem:[%s1675 + $0x48] sm:$0xff]
    %v1686 = vld [vmem:[%s1675 + $0x50] sm:$0xff]
    %v1687 = vld [vmem:[%s1675 + $0x58] sm:$0xff]
    %v1688 = vld [vmem:[%s1675 + $0x60] sm:$0xff]
    %v1689 = vld [vmem:[%s1675 + $0x68] sm:$0xff]
    %v1690 = vld [vmem:[%s1675 + $0x70] sm:$0xff]
    %v1691 = vld [vmem:[%s1675 + $0x78] sm:$0xff]
    %s1692 = scalar_lea.vmem %s3, 128
    %v1693 = vld [vmem:[%s1692] sm:$0xff]
    %v1694 = vld [vmem:[%s1692 + $0x8] sm:$0xff]
    %v1695 = vld [vmem:[%s1692 + $0x10] sm:$0xff]
    %v1696 = vld [vmem:[%s1692 + $0x18] sm:$0xff]
    %v1697 = vld [vmem:[%s1692 + $0x20] sm:$0xff]
    %v1698 = vld [vmem:[%s1692 + $0x28] sm:$0xff]
    %v1699 = vld [vmem:[%s1692 + $0x30] sm:$0xff]
    %v1700 = vld [vmem:[%s1692 + $0x38] sm:$0xff]
    %v1701 = vld [vmem:[%s1692 + $0x40] sm:$0xff]
    %v1702 = vld [vmem:[%s1692 + $0x48] sm:$0xff]
    %v1703 = vld [vmem:[%s1692 + $0x50] sm:$0xff]
    %v1704 = vld [vmem:[%s1692 + $0x58] sm:$0xff]
    %v1705 = vld [vmem:[%s1692 + $0x60] sm:$0xff]
    %v1706 = vld [vmem:[%s1692 + $0x68] sm:$0xff]
    %v1707 = vld [vmem:[%s1692 + $0x70] sm:$0xff]
    %v1708 = vld [vmem:[%s1692 + $0x78] sm:$0xff]
    %s1709 = scalar_lea.vmem %s4, 4
    %v1710 = vld [vmem:[%s1709] sm:$0x1]
    %v1711 = vld [vmem:[%s1709 + $0x1] sm:$0x1]
    %v1712 = vld [vmem:[%s1709 + $0x2] sm:$0x1]
    %v1713 = vld [vmem:[%s1709 + $0x3] sm:$0x1]
    %s1714 = scalar_lea.vmem %s5, 4
    %v1715 = vld [vmem:[%s1714] sm:$0x1]
    %v1716 = vld [vmem:[%s1714 + $0x1] sm:$0x1]
    %v1717 = vld [vmem:[%s1714 + $0x2] sm:$0x1]
    %v1718 = vld [vmem:[%s1714 + $0x3] sm:$0x1]
    %s1719 = scalar_lea.vmem %s6, 4
    %v1720 = vld [vmem:[%s1719] sm:$0x1]
    %v1721 = vld [vmem:[%s1719 + $0x1] sm:$0x1]
    %v1722 = vld [vmem:[%s1719 + $0x2] sm:$0x1]
    %v1723 = vld [vmem:[%s1719 + $0x3] sm:$0x1]
    %s1724 = scalar_lea.vmem %s7, 32
    %v1725 = vld [vmem:[%s1724] sm:$0xff]
    %v1726 = vld [vmem:[%s1724 + $0x8] sm:$0xff]
    %v1727 = vld [vmem:[%s1724 + $0x10] sm:$0xff]
    %v1728 = vld [vmem:[%s1724 + $0x18] sm:$0xff]
    %v1733 = vperm.slane %v1710, 0
    %v1734 = vperm.slane %v1711, 0
    %v1735 = vperm.slane %v1712, 0
    %v1736 = vperm.slane %v1713, 0
    %v1742 = vsel %vm141, %v1656, 0
    %1744 = vmatpush.msra.mxu0 0.0
    %1745 = vmatpush.msra.mxu0 0.0
    %1746 = vmatpush.msra.mxu0 0.0
    %1747 = vmatpush.msra.mxu0 0.0
    %1748 = vmatpush.msra.mxu0 0.0
    %1749 = vmatpush.msra.mxu0 0.0
    %1750 = vmatpush.msra.mxu0 0.0
    %1751 = vmatpush.msra.mxu0 0.0
    %1752 = vmatpush.msra.mxu0 0.0
    %1753 = vmatpush.msra.mxu0 0.0
    %1754 = vmatpush.msra.mxu0 0.0
    %1755 = vmatpush.msra.mxu0 0.0
    %1756 = vmatpush.msra.mxu0 %v1662
    %1757 = vmatpush.msra.mxu0 %v1661
    %1758 = vmatpush.msra.mxu0 %v1660
    %1759 = vmatpush.msra.mxu0 %v1659
    %1760 = vmatmul.f32.gmra.mxu0 %v1742
    %v1761 = vpop.f32.mrf.mxu0
    %v1762 = vadd.f32 %v1733, %v1761
    %1763 = vdwg.mxu0
    %1764 = vmatpush.msra.mxu0 0.0
    %1765 = vmatpush.msra.mxu0 0.0
    %1766 = vmatpush.msra.mxu0 0.0
    %1767 = vmatpush.msra.mxu0 0.0
    %1768 = vmatpush.msra.mxu0 0.0
    %1769 = vmatpush.msra.mxu0 0.0
    %1770 = vmatpush.msra.mxu0 0.0
    %1771 = vmatpush.msra.mxu0 0.0
    %1772 = vmatpush.msra.mxu0 0.0
    %1773 = vmatpush.msra.mxu0 0.0
    %1774 = vmatpush.msra.mxu0 0.0
    %1775 = vmatpush.msra.mxu0 0.0
    %1776 = vmatpush.msra.mxu0 %v1666
    %1777 = vmatpush.msra.mxu0 %v1665
    %1778 = vmatpush.msra.mxu0 %v1664
    %1779 = vmatpush.msra.mxu0 %v1663
    %1780 = vmatmul.f32.gmra.mxu0 %v1742
    %v1781 = vpop.f32.mrf.mxu0
    %v1782 = vadd.f32 %v1734, %v1781
    %1783 = vdwg.mxu0
    %1784 = vmatpush.msra.mxu0 0.0
    %1785 = vmatpush.msra.mxu0 0.0
    %1786 = vmatpush.msra.mxu0 0.0
    %1787 = vmatpush.msra.mxu0 0.0
    %1788 = vmatpush.msra.mxu0 0.0
    %1789 = vmatpush.msra.mxu0 0.0
    %1790 = vmatpush.msra.mxu0 0.0
    %1791 = vmatpush.msra.mxu0 0.0
    %1792 = vmatpush.msra.mxu0 0.0
    %1793 = vmatpush.msra.mxu0 0.0
    %1794 = vmatpush.msra.mxu0 0.0
    %1795 = vmatpush.msra.mxu0 0.0
    %1796 = vmatpush.msra.mxu0 %v1670
    %1797 = vmatpush.msra.mxu0 %v1669
    %1798 = vmatpush.msra.mxu0 %v1668
    %1799 = vmatpush.msra.mxu0 %v1667
    %1800 = vmatmul.f32.gmra.mxu0 %v1742
    %v1801 = vpop.f32.mrf.mxu0
    %v1802 = vadd.f32 %v1735, %v1801
    %1803 = vdwg.mxu0
    %1804 = vmatpush.msra.mxu0 0.0
    %1805 = vmatpush.msra.mxu0 0.0
    %1806 = vmatpush.msra.mxu0 0.0
    %1807 = vmatpush.msra.mxu0 0.0
    %1808 = vmatpush.msra.mxu0 0.0
    %1809 = vmatpush.msra.mxu0 0.0
    %1810 = vmatpush.msra.mxu0 0.0
    %1811 = vmatpush.msra.mxu0 0.0
    %1812 = vmatpush.msra.mxu0 0.0
    %1813 = vmatpush.msra.mxu0 0.0
    %1814 = vmatpush.msra.mxu0 0.0
    %1815 = vmatpush.msra.mxu0 0.0
    %1816 = vmatpush.msra.mxu0 %v1674
    %1817 = vmatpush.msra.mxu0 %v1673
    %1818 = vmatpush.msra.mxu0 %v1672
    %1819 = vmatpush.msra.mxu0 %v1671
    %1820 = vmatmul.f32.gmra.mxu0 %v1742
    %v1821 = vpop.f32.mrf.mxu0
    %v1822 = vadd.f32 %v1736, %v1821
    %1823 = vdwg.mxu0
    %v1828 = vperm.slane %v1715, 0
    %v1829 = vperm.slane %v1716, 0
    %v1830 = vperm.slane %v1717, 0
    %v1831 = vperm.slane %v1718, 0
    %1836 = vmatpush.msra.mxu0 0.0
    %1837 = vmatpush.msra.mxu0 0.0
    %1838 = vmatpush.msra.mxu0 0.0
    %1839 = vmatpush.msra.mxu0 0.0
    %1840 = vmatpush.msra.mxu0 0.0
    %1841 = vmatpush.msra.mxu0 0.0
    %1842 = vmatpush.msra.mxu0 0.0
    %1843 = vmatpush.msra.mxu0 0.0
    %1844 = vmatpush.msra.mxu0 0.0
    %1845 = vmatpush.msra.mxu0 0.0
    %1846 = vmatpush.msra.mxu0 0.0
    %1847 = vmatpush.msra.mxu0 0.0
    %1848 = vmatpush.msra.mxu0 %v1679
    %1849 = vmatpush.msra.mxu0 %v1678
    %1850 = vmatpush.msra.mxu0 %v1677
    %1851 = vmatpush.msra.mxu0 %v1676
    %1852 = vmatmul.f32.gmra.mxu0 %v1742
    %v1853 = vpop.f32.mrf.mxu0
    %v1854 = vadd.f32 %v1828, %v1853
    %1855 = vdwg.mxu0
    %1856 = vmatpush.msra.mxu0 0.0
    %1857 = vmatpush.msra.mxu0 0.0
    %1858 = vmatpush.msra.mxu0 0.0
    %1859 = vmatpush.msra.mxu0 0.0
    %1860 = vmatpush.msra.mxu0 0.0
    %1861 = vmatpush.msra.mxu0 0.0
    %1862 = vmatpush.msra.mxu0 0.0
    %1863 = vmatpush.msra.mxu0 0.0
    %1864 = vmatpush.msra.mxu0 0.0
    %1865 = vmatpush.msra.mxu0 0.0
    %1866 = vmatpush.msra.mxu0 0.0
    %1867 = vmatpush.msra.mxu0 0.0
    %1868 = vmatpush.msra.mxu0 %v1683
    %1869 = vmatpush.msra.mxu0 %v1682
    %1870 = vmatpush.msra.mxu0 %v1681
    %1871 = vmatpush.msra.mxu0 %v1680
    %1872 = vmatmul.f32.gmra.mxu0 %v1742
    %v1873 = vpop.f32.mrf.mxu0
    %v1874 = vadd.f32 %v1829, %v1873
    %1875 = vdwg.mxu0
    %1876 = vmatpush.msra.mxu0 0.0
    %1877 = vmatpush.msra.mxu0 0.0
    %1878 = vmatpush.msra.mxu0 0.0
    %1879 = vmatpush.msra.mxu0 0.0
    %1880 = vmatpush.msra.mxu0 0.0
    %1881 = vmatpush.msra.mxu0 0.0
    %1882 = vmatpush.msra.mxu0 0.0
    %1883 = vmatpush.msra.mxu0 0.0
    %1884 = vmatpush.msra.mxu0 0.0
    %1885 = vmatpush.msra.mxu0 0.0
    %1886 = vmatpush.msra.mxu0 0.0
    %1887 = vmatpush.msra.mxu0 0.0
    %1888 = vmatpush.msra.mxu0 %v1687
    %1889 = vmatpush.msra.mxu0 %v1686
    %1890 = vmatpush.msra.mxu0 %v1685
    %1891 = vmatpush.msra.mxu0 %v1684
    %1892 = vmatmul.f32.gmra.mxu0 %v1742
    %v1893 = vpop.f32.mrf.mxu0
    %v1894 = vadd.f32 %v1830, %v1893
    %1895 = vdwg.mxu0
    %1896 = vmatpush.msra.mxu0 0.0
    %1897 = vmatpush.msra.mxu0 0.0
    %1898 = vmatpush.msra.mxu0 0.0
    %1899 = vmatpush.msra.mxu0 0.0
    %1900 = vmatpush.msra.mxu0 0.0
    %1901 = vmatpush.msra.mxu0 0.0
    %1902 = vmatpush.msra.mxu0 0.0
    %1903 = vmatpush.msra.mxu0 0.0
    %1904 = vmatpush.msra.mxu0 0.0
    %1905 = vmatpush.msra.mxu0 0.0
    %1906 = vmatpush.msra.mxu0 0.0
    %1907 = vmatpush.msra.mxu0 0.0
    %1908 = vmatpush.msra.mxu0 %v1691
    %1909 = vmatpush.msra.mxu0 %v1690
    %1910 = vmatpush.msra.mxu0 %v1689
    %1911 = vmatpush.msra.mxu0 %v1688
    %1912 = vmatmul.f32.gmra.mxu0 %v1742
    %v1913 = vpop.f32.mrf.mxu0
    %v1914 = vadd.f32 %v1831, %v1913
    %1915 = vdwg.mxu0
    %v1920 = vperm.slane %v1720, 0
    %v1921 = vperm.slane %v1721, 0
    %v1922 = vperm.slane %v1722, 0
    %v1923 = vperm.slane %v1723, 0
    %1928 = vmatpush.msra.mxu0 0.0
    %1929 = vmatpush.msra.mxu0 0.0
    %1930 = vmatpush.msra.mxu0 0.0
    %1931 = vmatpush.msra.mxu0 0.0
    %1932 = vmatpush.msra.mxu0 0.0
    %1933 = vmatpush.msra.mxu0 0.0
    %1934 = vmatpush.msra.mxu0 0.0
    %1935 = vmatpush.msra.mxu0 0.0
    %1936 = vmatpush.msra.mxu0 0.0
    %1937 = vmatpush.msra.mxu0 0.0
    %1938 = vmatpush.msra.mxu0 0.0
    %1939 = vmatpush.msra.mxu0 0.0
    %1940 = vmatpush.msra.mxu0 %v1696
    %1941 = vmatpush.msra.mxu0 %v1695
    %1942 = vmatpush.msra.mxu0 %v1694
    %1943 = vmatpush.msra.mxu0 %v1693
    %1944 = vmatmul.f32.gmra.mxu0 %v1742
    %v1945 = vpop.f32.mrf.mxu0
    %v1946 = vadd.f32 %v1920, %v1945
    %1947 = vdwg.mxu0
    %1948 = vmatpush.msra.mxu0 0.0
    %1949 = vmatpush.msra.mxu0 0.0
    %1950 = vmatpush.msra.mxu0 0.0
    %1951 = vmatpush.msra.mxu0 0.0
    %1952 = vmatpush.msra.mxu0 0.0
    %1953 = vmatpush.msra.mxu0 0.0
    %1954 = vmatpush.msra.mxu0 0.0
    %1955 = vmatpush.msra.mxu0 0.0
    %1956 = vmatpush.msra.mxu0 0.0
    %1957 = vmatpush.msra.mxu0 0.0
    %1958 = vmatpush.msra.mxu0 0.0
    %1959 = vmatpush.msra.mxu0 0.0
    %1960 = vmatpush.msra.mxu0 %v1700
    %1961 = vmatpush.msra.mxu0 %v1699
    %1962 = vmatpush.msra.mxu0 %v1698
    %1963 = vmatpush.msra.mxu0 %v1697
    %1964 = vmatmul.f32.gmra.mxu0 %v1742
    %v1965 = vpop.f32.mrf.mxu0
    %v1966 = vadd.f32 %v1921, %v1965
    %1967 = vdwg.mxu0
    %1968 = vmatpush.msra.mxu0 0.0
    %1969 = vmatpush.msra.mxu0 0.0
    %1970 = vmatpush.msra.mxu0 0.0
    %1971 = vmatpush.msra.mxu0 0.0
    %1972 = vmatpush.msra.mxu0 0.0
    %1973 = vmatpush.msra.mxu0 0.0
    %1974 = vmatpush.msra.mxu0 0.0
    %1975 = vmatpush.msra.mxu0 0.0
    %1976 = vmatpush.msra.mxu0 0.0
    %1977 = vmatpush.msra.mxu0 0.0
    %1978 = vmatpush.msra.mxu0 0.0
    %1979 = vmatpush.msra.mxu0 0.0
    %1980 = vmatpush.msra.mxu0 %v1704
    %1981 = vmatpush.msra.mxu0 %v1703
    %1982 = vmatpush.msra.mxu0 %v1702
    %1983 = vmatpush.msra.mxu0 %v1701
    %1984 = vmatmul.f32.gmra.mxu0 %v1742
    %v1985 = vpop.f32.mrf.mxu0
    %v1986 = vadd.f32 %v1922, %v1985
    %1987 = vdwg.mxu0
    %1988 = vmatpush.msra.mxu0 0.0
    %1989 = vmatpush.msra.mxu0 0.0
    %1990 = vmatpush.msra.mxu0 0.0
    %1991 = vmatpush.msra.mxu0 0.0
    %1992 = vmatpush.msra.mxu0 0.0
    %1993 = vmatpush.msra.mxu0 0.0
    %1994 = vmatpush.msra.mxu0 0.0
    %1995 = vmatpush.msra.mxu0 0.0
    %1996 = vmatpush.msra.mxu0 0.0
    %1997 = vmatpush.msra.mxu0 0.0
    %1998 = vmatpush.msra.mxu0 0.0
    %1999 = vmatpush.msra.mxu0 0.0
    %2000 = vmatpush.msra.mxu0 %v1708
    %2001 = vmatpush.msra.mxu0 %v1707
    %2002 = vmatpush.msra.mxu0 %v1706
    %2003 = vmatpush.msra.mxu0 %v1705
    %2004 = vmatmul.f32.gmra.mxu0 %v1742
    %v2005 = vpop.f32.mrf.mxu0
    %v2006 = vadd.f32 %v1923, %v2005
    %2007 = vdwg.mxu0
    %v2008 = vmul.f32 %v1762, 0.35355338
    %v2009 = vmul.f32 %v1782, 0.35355338
    %v2010 = vmul.f32 %v1802, 0.35355338
    %v2011 = vmul.f32 %v1822, 0.35355338
    %v2013 = vsel %vm413, %v2008, 0
    %v2016 = vsel %vm413, %v1854, 0
    %2018 = vmatpush.xpose.msra.mxu0 0.0
    %2019 = vmatpush.xpose.msra.mxu0 0.0
    %2020 = vmatpush.xpose.msra.mxu0 0.0
    %2021 = vmatpush.xpose.msra.mxu0 0.0
    %2022 = vmatpush.xpose.msra.mxu0 0.0
    %2023 = vmatpush.xpose.msra.mxu0 0.0
    %2024 = vmatpush.xpose.msra.mxu0 0.0
    %2025 = vmatpush.xpose.msra.mxu0 0.0
    %2026 = vmatpush.xpose.msra.mxu0 0.0
    %2027 = vmatpush.xpose.msra.mxu0 0.0
    %2028 = vmatpush.xpose.msra.mxu0 0.0
    %2029 = vmatpush.xpose.msra.mxu0 0.0
    %2030 = vmatpush.xpose.msra.mxu0 0.0
    %2031 = vmatpush.xpose.msra.mxu0 0.0
    %2032 = vmatpush.xpose.msra.mxu0 0.0
    %2033 = vmatpush.xpose.msra.mxu0 %v2016
    %2034 = vmatmul.f32.gmra.mxu0 %v2013
    %v2035 = vpop.f32.mrf.mxu0
    %v2036 = vadd.f32 0.0, %v2035
    %2037 = vdwg.mxu0
    %v2039 = vsel %vm413, %v2009, 0
    %v2042 = vsel %vm413, %v1874, 0
    %2044 = vmatpush.xpose.msra.mxu0 0.0
    %2045 = vmatpush.xpose.msra.mxu0 0.0
    %2046 = vmatpush.xpose.msra.mxu0 0.0
    %2047 = vmatpush.xpose.msra.mxu0 0.0
    %2048 = vmatpush.xpose.msra.mxu0 0.0
    %2049 = vmatpush.xpose.msra.mxu0 0.0
    %2050 = vmatpush.xpose.msra.mxu0 0.0
    %2051 = vmatpush.xpose.msra.mxu0 0.0
    %2052 = vmatpush.xpose.msra.mxu0 0.0
    %2053 = vmatpush.xpose.msra.mxu0 0.0
    %2054 = vmatpush.xpose.msra.mxu0 0.0
    %2055 = vmatpush.xpose.msra.mxu0 0.0
    %2056 = vmatpush.xpose.msra.mxu0 0.0
    %2057 = vmatpush.xpose.msra.mxu0 0.0
    %2058 = vmatpush.xpose.msra.mxu0 0.0
    %2059 = vmatpush.xpose.msra.mxu0 %v2042
    %2060 = vmatmul.f32.gmra.mxu0 %v2039
    %v2061 = vpop.f32.mrf.mxu0
    %v2062 = vadd.f32 0.0, %v2061
    %2063 = vdwg.mxu0
    %v2065 = vsel %vm413, %v2010, 0
    %v2068 = vsel %vm413, %v1894, 0
    %2070 = vmatpush.xpose.msra.mxu0 0.0
    %2071 = vmatpush.xpose.msra.mxu0 0.0
    %2072 = vmatpush.xpose.msra.mxu0 0.0
    %2073 = vmatpush.xpose.msra.mxu0 0.0
    %2074 = vmatpush.xpose.msra.mxu0 0.0
    %2075 = vmatpush.xpose.msra.mxu0 0.0
    %2076 = vmatpush.xpose.msra.mxu0 0.0
    %2077 = vmatpush.xpose.msra.mxu0 0.0
    %2078 = vmatpush.xpose.msra.mxu0 0.0
    %2079 = vmatpush.xpose.msra.mxu0 0.0
    %2080 = vmatpush.xpose.msra.mxu0 0.0
    %2081 = vmatpush.xpose.msra.mxu0 0.0
    %2082 = vmatpush.xpose.msra.mxu0 0.0
    %2083 = vmatpush.xpose.msra.mxu0 0.0
    %2084 = vmatpush.xpose.msra.mxu0 0.0
    %2085 = vmatpush.xpose.msra.mxu0 %v2068
    %2086 = vmatmul.f32.gmra.mxu0 %v2065
    %v2087 = vpop.f32.mrf.mxu0
    %v2088 = vadd.f32 0.0, %v2087
    %2089 = vdwg.mxu0
    %v2091 = vsel %vm413, %v2011, 0
    %v2094 = vsel %vm413, %v1914, 0
    %2096 = vmatpush.xpose.msra.mxu0 0.0
    %2097 = vmatpush.xpose.msra.mxu0 0.0
    %2098 = vmatpush.xpose.msra.mxu0 0.0
    %2099 = vmatpush.xpose.msra.mxu0 0.0
    %2100 = vmatpush.xpose.msra.mxu0 0.0
    %2101 = vmatpush.xpose.msra.mxu0 0.0
    %2102 = vmatpush.xpose.msra.mxu0 0.0
    %2103 = vmatpush.xpose.msra.mxu0 0.0
    %2104 = vmatpush.xpose.msra.mxu0 0.0
    %2105 = vmatpush.xpose.msra.mxu0 0.0
    %2106 = vmatpush.xpose.msra.mxu0 0.0
    %2107 = vmatpush.xpose.msra.mxu0 0.0
    %2108 = vmatpush.xpose.msra.mxu0 0.0
    %2109 = vmatpush.xpose.msra.mxu0 0.0
    %2110 = vmatpush.xpose.msra.mxu0 0.0
    %2111 = vmatpush.xpose.msra.mxu0 %v2094
    %2112 = vmatmul.f32.gmra.mxu0 %v2091
    %v2113 = vpop.f32.mrf.mxu0
    %v2114 = vadd.f32 0.0, %v2113
    %2115 = vdwg.mxu0
    %v2116 = vsel %vm413, %v2036, -inf
    %2117 = vmax.xlane.f32.xlu0 %v2116
    %v2118 = vpop.xlane.xlu0 %2117
    %v2119 = vsel %vm413, %v2062, -inf
    %2120 = vmax.xlane.f32.xlu0 %v2119
    %v2121 = vpop.xlane.xlu0 %2120
    %v2122 = vsel %vm413, %v2088, -inf
    %2123 = vmax.xlane.f32.xlu0 %v2122
    %v2124 = vpop.xlane.xlu0 %2123
    %v2125 = vsel %vm413, %v2114, -inf
    %2126 = vmax.xlane.f32.xlu0 %v2125
    %v2127 = vpop.xlane.xlu0 %2126
    %v2128 = vsub.f32 %v2036, %v2118
    %v2129 = vsub.f32 %v2062, %v2121
    %v2130 = vsub.f32 %v2088, %v2124
    %v2131 = vsub.f32 %v2114, %v2127
    %v2132 = vmul.f32 %v2128, 1.442695
    %v2133 = vpow.pop %v2132
    %v2134 = vmul.f32 %v2129, 1.442695
    %v2135 = vpow.pop %v2134
    %v2136 = vmul.f32 %v2130, 1.442695
    %v2137 = vpow.pop %v2136
    %v2138 = vmul.f32 %v2131, 1.442695
    %v2139 = vpow.pop %v2138
    %v2140 = vsel %vm413, %v2133, 0.0
    %2141 = vadd.xlane.f32.xlu0 %v2140
    %v2142 = vpop.xlane.xlu0 %2141
    %v2143 = vsel %vm413, %v2135, 0.0
    %2144 = vadd.xlane.f32.xlu0 %v2143
    %v2145 = vpop.xlane.xlu0 %2144
    %v2146 = vsel %vm413, %v2137, 0.0
    %2147 = vadd.xlane.f32.xlu0 %v2146
    %v2148 = vpop.xlane.xlu0 %2147
    %v2149 = vsel %vm413, %v2139, 0.0
    %2150 = vadd.xlane.f32.xlu0 %v2149
    %v2151 = vpop.xlane.xlu0 %2150
    %v2152 = vrcp.pop %v2142
    %v2153 = vmul.f32 %v2142, %v2152
    %v2154 = vsub.f32 1.0, %v2153
    %v2155 = vmul.f32 %v2152, %v2154
    %v2156 = vadd.f32 %v2152, %v2155
    %vm2157 = vweird.f32 %v2142
    %vm2158 = vweird.f32 %v2152
    %vm2159 = vmor %vm2157, %vm2158
    %v2160 = vsel %vm2159, %v2152, %v2156
    %v2161 = vand.u32 2147483647, %v2142
    %vm2162 = vcmp.eq.f32.partialorder %v2161, 8.507059e+37
    %v2163 = vand.u32 %v2142, 2147483648
    %v2164 = vor.u32 1.1754944e-38, %v2163
    %v2165 = vsel %vm2162, %v2164, %v2160
    %v2166 = vmul.f32 %v2133, %v2165
    %v2167 = vrcp.pop %v2145
    %v2168 = vmul.f32 %v2145, %v2167
    %v2169 = vsub.f32 1.0, %v2168
    %v2170 = vmul.f32 %v2167, %v2169
    %v2171 = vadd.f32 %v2167, %v2170
    %vm2172 = vweird.f32 %v2145
    %vm2173 = vweird.f32 %v2167
    %vm2174 = vmor %vm2172, %vm2173
    %v2175 = vsel %vm2174, %v2167, %v2171
    %v2176 = vand.u32 2147483647, %v2145
    %vm2177 = vcmp.eq.f32.partialorder %v2176, 8.507059e+37
    %v2178 = vand.u32 %v2145, 2147483648
    %v2179 = vor.u32 1.1754944e-38, %v2178
    %v2180 = vsel %vm2177, %v2179, %v2175
    %v2181 = vmul.f32 %v2135, %v2180
    %v2182 = vrcp.pop %v2148
    %v2183 = vmul.f32 %v2148, %v2182
    %v2184 = vsub.f32 1.0, %v2183
    %v2185 = vmul.f32 %v2182, %v2184
    %v2186 = vadd.f32 %v2182, %v2185
    %vm2187 = vweird.f32 %v2148
    %vm2188 = vweird.f32 %v2182
    %vm2189 = vmor %vm2187, %vm2188
    %v2190 = vsel %vm2189, %v2182, %v2186
    %v2191 = vand.u32 2147483647, %v2148
    %vm2192 = vcmp.eq.f32.partialorder %v2191, 8.507059e+37
    %v2193 = vand.u32 %v2148, 2147483648
    %v2194 = vor.u32 1.1754944e-38, %v2193
    %v2195 = vsel %vm2192, %v2194, %v2190
    %v2196 = vmul.f32 %v2137, %v2195
    %v2197 = vrcp.pop %v2151
    %v2198 = vmul.f32 %v2151, %v2197
    %v2199 = vsub.f32 1.0, %v2198
    %v2200 = vmul.f32 %v2197, %v2199
    %v2201 = vadd.f32 %v2197, %v2200
    %vm2202 = vweird.f32 %v2151
    %vm2203 = vweird.f32 %v2197
    %vm2204 = vmor %vm2202, %vm2203
    %v2205 = vsel %vm2204, %v2197, %v2201
    %v2206 = vand.u32 2147483647, %v2151
    %vm2207 = vcmp.eq.f32.partialorder %v2206, 8.507059e+37
    %v2208 = vand.u32 %v2151, 2147483648
    %v2209 = vor.u32 1.1754944e-38, %v2208
    %v2210 = vsel %vm2207, %v2209, %v2205
    %v2211 = vmul.f32 %v2139, %v2210
    %v2213 = vsel %vm413, %v2166, 0
    %2215 = vmatpush.msra.mxu0 0.0
    %2216 = vmatpush.msra.mxu0 0.0
    %2217 = vmatpush.msra.mxu0 0.0
    %2218 = vmatpush.msra.mxu0 0.0
    %2219 = vmatpush.msra.mxu0 0.0
    %2220 = vmatpush.msra.mxu0 0.0
    %2221 = vmatpush.msra.mxu0 0.0
    %2222 = vmatpush.msra.mxu0 0.0
    %2223 = vmatpush.msra.mxu0 0.0
    %2224 = vmatpush.msra.mxu0 0.0
    %2225 = vmatpush.msra.mxu0 0.0
    %2226 = vmatpush.msra.mxu0 0.0
    %2227 = vmatpush.msra.mxu0 0.0
    %2228 = vmatpush.msra.mxu0 0.0
    %2229 = vmatpush.msra.mxu0 0.0
    %2230 = vmatpush.msra.mxu0 %v1946
    %2231 = vmatmul.f32.gmra.mxu0 %v2213
    %v2232 = vpop.f32.mrf.mxu0
    %v2233 = vadd.f32 0.0, %v2232
    %2234 = vdwg.mxu0
    %v2236 = vsel %vm413, %v2181, 0
    %2238 = vmatpush.msra.mxu0 0.0
    %2239 = vmatpush.msra.mxu0 0.0
    %2240 = vmatpush.msra.mxu0 0.0
    %2241 = vmatpush.msra.mxu0 0.0
    %2242 = vmatpush.msra.mxu0 0.0
    %2243 = vmatpush.msra.mxu0 0.0
    %2244 = vmatpush.msra.mxu0 0.0
    %2245 = vmatpush.msra.mxu0 0.0
    %2246 = vmatpush.msra.mxu0 0.0
    %2247 = vmatpush.msra.mxu0 0.0
    %2248 = vmatpush.msra.mxu0 0.0
    %2249 = vmatpush.msra.mxu0 0.0
    %2250 = vmatpush.msra.mxu0 0.0
    %2251 = vmatpush.msra.mxu0 0.0
    %2252 = vmatpush.msra.mxu0 0.0
    %2253 = vmatpush.msra.mxu0 %v1966
    %2254 = vmatmul.f32.gmra.mxu0 %v2236
    %v2255 = vpop.f32.mrf.mxu0
    %v2256 = vadd.f32 0.0, %v2255
    %2257 = vdwg.mxu0
    %v2259 = vsel %vm413, %v2196, 0
    %2261 = vmatpush.msra.mxu0 0.0
    %2262 = vmatpush.msra.mxu0 0.0
    %2263 = vmatpush.msra.mxu0 0.0
    %2264 = vmatpush.msra.mxu0 0.0
    %2265 = vmatpush.msra.mxu0 0.0
    %2266 = vmatpush.msra.mxu0 0.0
    %2267 = vmatpush.msra.mxu0 0.0
    %2268 = vmatpush.msra.mxu0 0.0
    %2269 = vmatpush.msra.mxu0 0.0
    %2270 = vmatpush.msra.mxu0 0.0
    %2271 = vmatpush.msra.mxu0 0.0
    %2272 = vmatpush.msra.mxu0 0.0
    %2273 = vmatpush.msra.mxu0 0.0
    %2274 = vmatpush.msra.mxu0 0.0
    %2275 = vmatpush.msra.mxu0 0.0
    %2276 = vmatpush.msra.mxu0 %v1986
    %2277 = vmatmul.f32.gmra.mxu0 %v2259
    %v2278 = vpop.f32.mrf.mxu0
    %v2279 = vadd.f32 0.0, %v2278
    %2280 = vdwg.mxu0
    %v2282 = vsel %vm413, %v2211, 0
    %2284 = vmatpush.msra.mxu0 0.0
    %2285 = vmatpush.msra.mxu0 0.0
    %2286 = vmatpush.msra.mxu0 0.0
    %2287 = vmatpush.msra.mxu0 0.0
    %2288 = vmatpush.msra.mxu0 0.0
    %2289 = vmatpush.msra.mxu0 0.0
    %2290 = vmatpush.msra.mxu0 0.0
    %2291 = vmatpush.msra.mxu0 0.0
    %2292 = vmatpush.msra.mxu0 0.0
    %2293 = vmatpush.msra.mxu0 0.0
    %2294 = vmatpush.msra.mxu0 0.0
    %2295 = vmatpush.msra.mxu0 0.0
    %2296 = vmatpush.msra.mxu0 0.0
    %2297 = vmatpush.msra.mxu0 0.0
    %2298 = vmatpush.msra.mxu0 0.0
    %2299 = vmatpush.msra.mxu0 %v2006
    %2300 = vmatmul.f32.gmra.mxu0 %v2282
    %v2301 = vpop.f32.mrf.mxu0
    %v2302 = vadd.f32 0.0, %v2301
    %2303 = vdwg.mxu0
    %v2305 = vsel %vm413, %v2233, 0
    %2307 = vmatpush.msra.mxu0 0.0
    %2308 = vmatpush.msra.mxu0 0.0
    %2309 = vmatpush.msra.mxu0 0.0
    %2310 = vmatpush.msra.mxu0 0.0
    %2311 = vmatpush.msra.mxu0 0.0
    %2312 = vmatpush.msra.mxu0 0.0
    %2313 = vmatpush.msra.mxu0 0.0
    %2314 = vmatpush.msra.mxu0 0.0
    %2315 = vmatpush.msra.mxu0 0.0
    %2316 = vmatpush.msra.mxu0 0.0
    %2317 = vmatpush.msra.mxu0 0.0
    %2318 = vmatpush.msra.mxu0 0.0
    %2319 = vmatpush.msra.mxu0 0.0
    %2320 = vmatpush.msra.mxu0 0.0
    %2321 = vmatpush.msra.mxu0 0.0
    %2322 = vmatpush.msra.mxu0 %v1725
    %2323 = vmatmul.f32.gmra.mxu0 %v2305
    %v2324 = vpop.f32.mrf.mxu0
    %v2325 = vadd.f32 0.0, %v2324
    %2326 = vdwg.mxu0
    %v2328 = vsel %vm413, %v2256, 0
    %2330 = vmatpush.msra.mxu0 0.0
    %2331 = vmatpush.msra.mxu0 0.0
    %2332 = vmatpush.msra.mxu0 0.0
    %2333 = vmatpush.msra.mxu0 0.0
    %2334 = vmatpush.msra.mxu0 0.0
    %2335 = vmatpush.msra.mxu0 0.0
    %2336 = vmatpush.msra.mxu0 0.0
    %2337 = vmatpush.msra.mxu0 0.0
    %2338 = vmatpush.msra.mxu0 0.0
    %2339 = vmatpush.msra.mxu0 0.0
    %2340 = vmatpush.msra.mxu0 0.0
    %2341 = vmatpush.msra.mxu0 0.0
    %2342 = vmatpush.msra.mxu0 0.0
    %2343 = vmatpush.msra.mxu0 0.0
    %2344 = vmatpush.msra.mxu0 0.0
    %2345 = vmatpush.msra.mxu0 %v1726
    %2346 = vmatmul.f32.gmra.mxu0 %v2328
    %v2347 = vpop.f32.mrf.mxu0
    %v2348 = vadd.f32 0.0, %v2347
    %2349 = vdwg.mxu0
    %v2351 = vsel %vm413, %v2279, 0
    %2353 = vmatpush.msra.mxu0 0.0
    %2354 = vmatpush.msra.mxu0 0.0
    %2355 = vmatpush.msra.mxu0 0.0
    %2356 = vmatpush.msra.mxu0 0.0
    %2357 = vmatpush.msra.mxu0 0.0
    %2358 = vmatpush.msra.mxu0 0.0
    %2359 = vmatpush.msra.mxu0 0.0
    %2360 = vmatpush.msra.mxu0 0.0
    %2361 = vmatpush.msra.mxu0 0.0
    %2362 = vmatpush.msra.mxu0 0.0
    %2363 = vmatpush.msra.mxu0 0.0
    %2364 = vmatpush.msra.mxu0 0.0
    %2365 = vmatpush.msra.mxu0 0.0
    %2366 = vmatpush.msra.mxu0 0.0
    %2367 = vmatpush.msra.mxu0 0.0
    %2368 = vmatpush.msra.mxu0 %v1727
    %2369 = vmatmul.f32.gmra.mxu0 %v2351
    %v2370 = vpop.f32.mrf.mxu0
    %v2371 = vadd.f32 0.0, %v2370
    %2372 = vdwg.mxu0
    %v2374 = vsel %vm413, %v2302, 0
    %2376 = vmatpush.msra.mxu0 0.0
    %2377 = vmatpush.msra.mxu0 0.0
    %2378 = vmatpush.msra.mxu0 0.0
    %2379 = vmatpush.msra.mxu0 0.0
    %2380 = vmatpush.msra.mxu0 0.0
    %2381 = vmatpush.msra.mxu0 0.0
    %2382 = vmatpush.msra.mxu0 0.0
    %2383 = vmatpush.msra.mxu0 0.0
    %2384 = vmatpush.msra.mxu0 0.0
    %2385 = vmatpush.msra.mxu0 0.0
    %2386 = vmatpush.msra.mxu0 0.0
    %2387 = vmatpush.msra.mxu0 0.0
    %2388 = vmatpush.msra.mxu0 0.0
    %2389 = vmatpush.msra.mxu0 0.0
    %2390 = vmatpush.msra.mxu0 0.0
    %2391 = vmatpush.msra.mxu0 %v1728
    %2392 = vmatmul.f32.gmra.mxu0 %v2374
    %v2393 = vpop.f32.mrf.mxu0
    %v2394 = vadd.f32 0.0, %v2393
    %2395 = vdwg.mxu0
    %v2396 = vsel %vm141, %v2325, 0.0
    %v2397 = vsel %vm141, %v2348, 0.0
    %v2398 = vadd.f32 %v2396, %v2397
    %v2399 = vsel %vm141, %v2371, 0.0
    %v2400 = vadd.f32 %v2398, %v2399
    %v2401 = vsel %vm141, %v2394, 0.0
    %v2402 = vadd.f32 %v2400, %v2401
    %s2403 = scalar_lea.vmem %s8, 1
    %v2404 = vld [vmem:[%s2403] sm:$0x1]
    %v2406 = vperm.slane %v2404, 0
    %v2408 = vadd.f32 %v2402, %v2406
    %v2410 = vsel %vm141, %v1657, 0
    %2412 = vmatpush.msra.mxu0 0.0
    %2413 = vmatpush.msra.mxu0 0.0
    %2414 = vmatpush.msra.mxu0 0.0
    %2415 = vmatpush.msra.mxu0 0.0
    %2416 = vmatpush.msra.mxu0 0.0
    %2417 = vmatpush.msra.mxu0 0.0
    %2418 = vmatpush.msra.mxu0 0.0
    %2419 = vmatpush.msra.mxu0 0.0
    %2420 = vmatpush.msra.mxu0 0.0
    %2421 = vmatpush.msra.mxu0 0.0
    %2422 = vmatpush.msra.mxu0 0.0
    %2423 = vmatpush.msra.mxu0 0.0
    %2424 = vmatpush.msra.mxu0 %v1662
    %2425 = vmatpush.msra.mxu0 %v1661
    %2426 = vmatpush.msra.mxu0 %v1660
    %2427 = vmatpush.msra.mxu0 %v1659
    %2428 = vmatmul.f32.gmra.mxu0 %v2410
    %v2429 = vpop.f32.mrf.mxu0
    %v2430 = vadd.f32 %v1733, %v2429
    %2431 = vdwg.mxu0
    %2432 = vmatpush.msra.mxu0 0.0
    %2433 = vmatpush.msra.mxu0 0.0
    %2434 = vmatpush.msra.mxu0 0.0
    %2435 = vmatpush.msra.mxu0 0.0
    %2436 = vmatpush.msra.mxu0 0.0
    %2437 = vmatpush.msra.mxu0 0.0
    %2438 = vmatpush.msra.mxu0 0.0
    %2439 = vmatpush.msra.mxu0 0.0
    %2440 = vmatpush.msra.mxu0 0.0
    %2441 = vmatpush.msra.mxu0 0.0
    %2442 = vmatpush.msra.mxu0 0.0
    %2443 = vmatpush.msra.mxu0 0.0
    %2444 = vmatpush.msra.mxu0 %v1666
    %2445 = vmatpush.msra.mxu0 %v1665
    %2446 = vmatpush.msra.mxu0 %v1664
    %2447 = vmatpush.msra.mxu0 %v1663
    %2448 = vmatmul.f32.gmra.mxu0 %v2410
    %v2449 = vpop.f32.mrf.mxu0
    %v2450 = vadd.f32 %v1734, %v2449
    %2451 = vdwg.mxu0
    %2452 = vmatpush.msra.mxu0 0.0
    %2453 = vmatpush.msra.mxu0 0.0
    %2454 = vmatpush.msra.mxu0 0.0
    %2455 = vmatpush.msra.mxu0 0.0
    %2456 = vmatpush.msra.mxu0 0.0
    %2457 = vmatpush.msra.mxu0 0.0
    %2458 = vmatpush.msra.mxu0 0.0
    %2459 = vmatpush.msra.mxu0 0.0
    %2460 = vmatpush.msra.mxu0 0.0
    %2461 = vmatpush.msra.mxu0 0.0
    %2462 = vmatpush.msra.mxu0 0.0
    %2463 = vmatpush.msra.mxu0 0.0
    %2464 = vmatpush.msra.mxu0 %v1670
    %2465 = vmatpush.msra.mxu0 %v1669
    %2466 = vmatpush.msra.mxu0 %v1668
    %2467 = vmatpush.msra.mxu0 %v1667
    %2468 = vmatmul.f32.gmra.mxu0 %v2410
    %v2469 = vpop.f32.mrf.mxu0
    %v2470 = vadd.f32 %v1735, %v2469
    %2471 = vdwg.mxu0
    %2472 = vmatpush.msra.mxu0 0.0
    %2473 = vmatpush.msra.mxu0 0.0
    %2474 = vmatpush.msra.mxu0 0.0
    %2475 = vmatpush.msra.mxu0 0.0
    %2476 = vmatpush.msra.mxu0 0.0
    %2477 = vmatpush.msra.mxu0 0.0
    %2478 = vmatpush.msra.mxu0 0.0
    %2479 = vmatpush.msra.mxu0 0.0
    %2480 = vmatpush.msra.mxu0 0.0
    %2481 = vmatpush.msra.mxu0 0.0
    %2482 = vmatpush.msra.mxu0 0.0
    %2483 = vmatpush.msra.mxu0 0.0
    %2484 = vmatpush.msra.mxu0 %v1674
    %2485 = vmatpush.msra.mxu0 %v1673
    %2486 = vmatpush.msra.mxu0 %v1672
    %2487 = vmatpush.msra.mxu0 %v1671
    %2488 = vmatmul.f32.gmra.mxu0 %v2410
    %v2489 = vpop.f32.mrf.mxu0
    %v2490 = vadd.f32 %v1736, %v2489
    %2491 = vdwg.mxu0
    %2492 = vmatpush.msra.mxu0 0.0
    %2493 = vmatpush.msra.mxu0 0.0
    %2494 = vmatpush.msra.mxu0 0.0
    %2495 = vmatpush.msra.mxu0 0.0
    %2496 = vmatpush.msra.mxu0 0.0
    %2497 = vmatpush.msra.mxu0 0.0
    %2498 = vmatpush.msra.mxu0 0.0
    %2499 = vmatpush.msra.mxu0 0.0
    %2500 = vmatpush.msra.mxu0 0.0
    %2501 = vmatpush.msra.mxu0 0.0
    %2502 = vmatpush.msra.mxu0 0.0
    %2503 = vmatpush.msra.mxu0 0.0
    %2504 = vmatpush.msra.mxu0 %v1679
    %2505 = vmatpush.msra.mxu0 %v1678
    %2506 = vmatpush.msra.mxu0 %v1677
    %2507 = vmatpush.msra.mxu0 %v1676
    %2508 = vmatmul.f32.gmra.mxu0 %v2410
    %v2509 = vpop.f32.mrf.mxu0
    %v2510 = vadd.f32 %v1828, %v2509
    %2511 = vdwg.mxu0
    %2512 = vmatpush.msra.mxu0 0.0
    %2513 = vmatpush.msra.mxu0 0.0
    %2514 = vmatpush.msra.mxu0 0.0
    %2515 = vmatpush.msra.mxu0 0.0
    %2516 = vmatpush.msra.mxu0 0.0
    %2517 = vmatpush.msra.mxu0 0.0
    %2518 = vmatpush.msra.mxu0 0.0
    %2519 = vmatpush.msra.mxu0 0.0
    %2520 = vmatpush.msra.mxu0 0.0
    %2521 = vmatpush.msra.mxu0 0.0
    %2522 = vmatpush.msra.mxu0 0.0
    %2523 = vmatpush.msra.mxu0 0.0
    %2524 = vmatpush.msra.mxu0 %v1683
    %2525 = vmatpush.msra.mxu0 %v1682
    %2526 = vmatpush.msra.mxu0 %v1681
    %2527 = vmatpush.msra.mxu0 %v1680
    %2528 = vmatmul.f32.gmra.mxu0 %v2410
    %v2529 = vpop.f32.mrf.mxu0
    %v2530 = vadd.f32 %v1829, %v2529
    %2531 = vdwg.mxu0
    %2532 = vmatpush.msra.mxu0 0.0
    %2533 = vmatpush.msra.mxu0 0.0
    %2534 = vmatpush.msra.mxu0 0.0
    %2535 = vmatpush.msra.mxu0 0.0
    %2536 = vmatpush.msra.mxu0 0.0
    %2537 = vmatpush.msra.mxu0 0.0
    %2538 = vmatpush.msra.mxu0 0.0
    %2539 = vmatpush.msra.mxu0 0.0
    %2540 = vmatpush.msra.mxu0 0.0
    %2541 = vmatpush.msra.mxu0 0.0
    %2542 = vmatpush.msra.mxu0 0.0
    %2543 = vmatpush.msra.mxu0 0.0
    %2544 = vmatpush.msra.mxu0 %v1687
    %2545 = vmatpush.msra.mxu0 %v1686
    %2546 = vmatpush.msra.mxu0 %v1685
    %2547 = vmatpush.msra.mxu0 %v1684
    %2548 = vmatmul.f32.gmra.mxu0 %v2410
    %v2549 = vpop.f32.mrf.mxu0
    %v2550 = vadd.f32 %v1830, %v2549
    %2551 = vdwg.mxu0
    %2552 = vmatpush.msra.mxu0 0.0
    %2553 = vmatpush.msra.mxu0 0.0
    %2554 = vmatpush.msra.mxu0 0.0
    %2555 = vmatpush.msra.mxu0 0.0
    %2556 = vmatpush.msra.mxu0 0.0
    %2557 = vmatpush.msra.mxu0 0.0
    %2558 = vmatpush.msra.mxu0 0.0
    %2559 = vmatpush.msra.mxu0 0.0
    %2560 = vmatpush.msra.mxu0 0.0
    %2561 = vmatpush.msra.mxu0 0.0
    %2562 = vmatpush.msra.mxu0 0.0
    %2563 = vmatpush.msra.mxu0 0.0
    %2564 = vmatpush.msra.mxu0 %v1691
    %2565 = vmatpush.msra.mxu0 %v1690
    %2566 = vmatpush.msra.mxu0 %v1689
    %2567 = vmatpush.msra.mxu0 %v1688
    %2568 = vmatmul.f32.gmra.mxu0 %v2410
    %v2569 = vpop.f32.mrf.mxu0
    %v2570 = vadd.f32 %v1831, %v2569
    %2571 = vdwg.mxu0
    %2572 = vmatpush.msra.mxu0 0.0
    %2573 = vmatpush.msra.mxu0 0.0
    %2574 = vmatpush.msra.mxu0 0.0
    %2575 = vmatpush.msra.mxu0 0.0
    %2576 = vmatpush.msra.mxu0 0.0
    %2577 = vmatpush.msra.mxu0 0.0
    %2578 = vmatpush.msra.mxu0 0.0
    %2579 = vmatpush.msra.mxu0 0.0
    %2580 = vmatpush.msra.mxu0 0.0
    %2581 = vmatpush.msra.mxu0 0.0
    %2582 = vmatpush.msra.mxu0 0.0
    %2583 = vmatpush.msra.mxu0 0.0
    %2584 = vmatpush.msra.mxu0 %v1696
    %2585 = vmatpush.msra.mxu0 %v1695
    %2586 = vmatpush.msra.mxu0 %v1694
    %2587 = vmatpush.msra.mxu0 %v1693
    %2588 = vmatmul.f32.gmra.mxu0 %v2410
    %v2589 = vpop.f32.mrf.mxu0
    %v2590 = vadd.f32 %v1920, %v2589
    %2591 = vdwg.mxu0
    %2592 = vmatpush.msra.mxu0 0.0
    %2593 = vmatpush.msra.mxu0 0.0
    %2594 = vmatpush.msra.mxu0 0.0
    %2595 = vmatpush.msra.mxu0 0.0
    %2596 = vmatpush.msra.mxu0 0.0
    %2597 = vmatpush.msra.mxu0 0.0
    %2598 = vmatpush.msra.mxu0 0.0
    %2599 = vmatpush.msra.mxu0 0.0
    %2600 = vmatpush.msra.mxu0 0.0
    %2601 = vmatpush.msra.mxu0 0.0
    %2602 = vmatpush.msra.mxu0 0.0
    %2603 = vmatpush.msra.mxu0 0.0
    %2604 = vmatpush.msra.mxu0 %v1700
    %2605 = vmatpush.msra.mxu0 %v1699
    %2606 = vmatpush.msra.mxu0 %v1698
    %2607 = vmatpush.msra.mxu0 %v1697
    %2608 = vmatmul.f32.gmra.mxu0 %v2410
    %v2609 = vpop.f32.mrf.mxu0
    %v2610 = vadd.f32 %v1921, %v2609
    %2611 = vdwg.mxu0
    %2612 = vmatpush.msra.mxu0 0.0
    %2613 = vmatpush.msra.mxu0 0.0
    %2614 = vmatpush.msra.mxu0 0.0
    %2615 = vmatpush.msra.mxu0 0.0
    %2616 = vmatpush.msra.mxu0 0.0
    %2617 = vmatpush.msra.mxu0 0.0
    %2618 = vmatpush.msra.mxu0 0.0
    %2619 = vmatpush.msra.mxu0 0.0
    %2620 = vmatpush.msra.mxu0 0.0
    %2621 = vmatpush.msra.mxu0 0.0
    %2622 = vmatpush.msra.mxu0 0.0
    %2623 = vmatpush.msra.mxu0 0.0
    %2624 = vmatpush.msra.mxu0 %v1704
    %2625 = vmatpush.msra.mxu0 %v1703
    %2626 = vmatpush.msra.mxu0 %v1702
    %2627 = vmatpush.msra.mxu0 %v1701
    %2628 = vmatmul.f32.gmra.mxu0 %v2410
    %v2629 = vpop.f32.mrf.mxu0
    %v2630 = vadd.f32 %v1922, %v2629
    %2631 = vdwg.mxu0
    %2632 = vmatpush.msra.mxu0 0.0
    %2633 = vmatpush.msra.mxu0 0.0
    %2634 = vmatpush.msra.mxu0 0.0
    %2635 = vmatpush.msra.mxu0 0.0
    %2636 = vmatpush.msra.mxu0 0.0
    %2637 = vmatpush.msra.mxu0 0.0
    %2638 = vmatpush.msra.mxu0 0.0
    %2639 = vmatpush.msra.mxu0 0.0
    %2640 = vmatpush.msra.mxu0 0.0
    %2641 = vmatpush.msra.mxu0 0.0
    %2642 = vmatpush.msra.mxu0 0.0
    %2643 = vmatpush.msra.mxu0 0.0
    %2644 = vmatpush.msra.mxu0 %v1708
    %2645 = vmatpush.msra.mxu0 %v1707
    %2646 = vmatpush.msra.mxu0 %v1706
    %2647 = vmatpush.msra.mxu0 %v1705
    %2648 = vmatmul.f32.gmra.mxu0 %v2410
    %v2649 = vpop.f32.mrf.mxu0
    %v2650 = vadd.f32 %v1923, %v2649
    %2651 = vdwg.mxu0
    %v2652 = vmul.f32 %v2430, 0.35355338
    %v2653 = vmul.f32 %v2450, 0.35355338
    %v2654 = vmul.f32 %v2470, 0.35355338
    %v2655 = vmul.f32 %v2490, 0.35355338
    %v2657 = vsel %vm413, %v2652, 0
    %v2660 = vsel %vm413, %v2510, 0
    %2662 = vmatpush.xpose.msra.mxu0 0.0
    %2663 = vmatpush.xpose.msra.mxu0 0.0
    %2664 = vmatpush.xpose.msra.mxu0 0.0
    %2665 = vmatpush.xpose.msra.mxu0 0.0
    %2666 = vmatpush.xpose.msra.mxu0 0.0
    %2667 = vmatpush.xpose.msra.mxu0 0.0
    %2668 = vmatpush.xpose.msra.mxu0 0.0
    %2669 = vmatpush.xpose.msra.mxu0 0.0
    %2670 = vmatpush.xpose.msra.mxu0 0.0
    %2671 = vmatpush.xpose.msra.mxu0 0.0
    %2672 = vmatpush.xpose.msra.mxu0 0.0
    %2673 = vmatpush.xpose.msra.mxu0 0.0
    %2674 = vmatpush.xpose.msra.mxu0 0.0
    %2675 = vmatpush.xpose.msra.mxu0 0.0
    %2676 = vmatpush.xpose.msra.mxu0 0.0
    %2677 = vmatpush.xpose.msra.mxu0 %v2660
    %2678 = vmatmul.f32.gmra.mxu0 %v2657
    %v2679 = vpop.f32.mrf.mxu0
    %v2680 = vadd.f32 0.0, %v2679
    %2681 = vdwg.mxu0
    %v2683 = vsel %vm413, %v2653, 0
    %v2686 = vsel %vm413, %v2530, 0
    %2688 = vmatpush.xpose.msra.mxu0 0.0
    %2689 = vmatpush.xpose.msra.mxu0 0.0
    %2690 = vmatpush.xpose.msra.mxu0 0.0
    %2691 = vmatpush.xpose.msra.mxu0 0.0
    %2692 = vmatpush.xpose.msra.mxu0 0.0
    %2693 = vmatpush.xpose.msra.mxu0 0.0
    %2694 = vmatpush.xpose.msra.mxu0 0.0
    %2695 = vmatpush.xpose.msra.mxu0 0.0
    %2696 = vmatpush.xpose.msra.mxu0 0.0
    %2697 = vmatpush.xpose.msra.mxu0 0.0
    %2698 = vmatpush.xpose.msra.mxu0 0.0
    %2699 = vmatpush.xpose.msra.mxu0 0.0
    %2700 = vmatpush.xpose.msra.mxu0 0.0
    %2701 = vmatpush.xpose.msra.mxu0 0.0
    %2702 = vmatpush.xpose.msra.mxu0 0.0
    %2703 = vmatpush.xpose.msra.mxu0 %v2686
    %2704 = vmatmul.f32.gmra.mxu0 %v2683
    %v2705 = vpop.f32.mrf.mxu0
    %v2706 = vadd.f32 0.0, %v2705
    %2707 = vdwg.mxu0
    %v2709 = vsel %vm413, %v2654, 0
    %v2712 = vsel %vm413, %v2550, 0
    %2714 = vmatpush.xpose.msra.mxu0 0.0
    %2715 = vmatpush.xpose.msra.mxu0 0.0
    %2716 = vmatpush.xpose.msra.mxu0 0.0
    %2717 = vmatpush.xpose.msra.mxu0 0.0
    %2718 = vmatpush.xpose.msra.mxu0 0.0
    %2719 = vmatpush.xpose.msra.mxu0 0.0
    %2720 = vmatpush.xpose.msra.mxu0 0.0
    %2721 = vmatpush.xpose.msra.mxu0 0.0
    %2722 = vmatpush.xpose.msra.mxu0 0.0
    %2723 = vmatpush.xpose.msra.mxu0 0.0
    %2724 = vmatpush.xpose.msra.mxu0 0.0
    %2725 = vmatpush.xpose.msra.mxu0 0.0
    %2726 = vmatpush.xpose.msra.mxu0 0.0
    %2727 = vmatpush.xpose.msra.mxu0 0.0
    %2728 = vmatpush.xpose.msra.mxu0 0.0
    %2729 = vmatpush.xpose.msra.mxu0 %v2712
    %2730 = vmatmul.f32.gmra.mxu0 %v2709
    %v2731 = vpop.f32.mrf.mxu0
    %v2732 = vadd.f32 0.0, %v2731
    %2733 = vdwg.mxu0
    %v2735 = vsel %vm413, %v2655, 0
    %v2738 = vsel %vm413, %v2570, 0
    %2740 = vmatpush.xpose.msra.mxu0 0.0
    %2741 = vmatpush.xpose.msra.mxu0 0.0
    %2742 = vmatpush.xpose.msra.mxu0 0.0
    %2743 = vmatpush.xpose.msra.mxu0 0.0
    %2744 = vmatpush.xpose.msra.mxu0 0.0
    %2745 = vmatpush.xpose.msra.mxu0 0.0
    %2746 = vmatpush.xpose.msra.mxu0 0.0
    %2747 = vmatpush.xpose.msra.mxu0 0.0
    %2748 = vmatpush.xpose.msra.mxu0 0.0
    %2749 = vmatpush.xpose.msra.mxu0 0.0
    %2750 = vmatpush.xpose.msra.mxu0 0.0
    %2751 = vmatpush.xpose.msra.mxu0 0.0
    %2752 = vmatpush.xpose.msra.mxu0 0.0
    %2753 = vmatpush.xpose.msra.mxu0 0.0
    %2754 = vmatpush.xpose.msra.mxu0 0.0
    %2755 = vmatpush.xpose.msra.mxu0 %v2738
    %2756 = vmatmul.f32.gmra.mxu0 %v2735
    %v2757 = vpop.f32.mrf.mxu0
    %v2758 = vadd.f32 0.0, %v2757
    %2759 = vdwg.mxu0
    %v2760 = vsel %vm413, %v2680, -inf
    %2761 = vmax.xlane.f32.xlu0 %v2760
    %v2762 = vpop.xlane.xlu0 %2761
    %v2763 = vsel %vm413, %v2706, -inf
    %2764 = vmax.xlane.f32.xlu0 %v2763
    %v2765 = vpop.xlane.xlu0 %2764
    %v2766 = vsel %vm413, %v2732, -inf
    %2767 = vmax.xlane.f32.xlu0 %v2766
    %v2768 = vpop.xlane.xlu0 %2767
    %v2769 = vsel %vm413, %v2758, -inf
    %2770 = vmax.xlane.f32.xlu0 %v2769
    %v2771 = vpop.xlane.xlu0 %2770
    %v2772 = vsub.f32 %v2680, %v2762
    %v2773 = vsub.f32 %v2706, %v2765
    %v2774 = vsub.f32 %v2732, %v2768
    %v2775 = vsub.f32 %v2758, %v2771
    %v2776 = vmul.f32 %v2772, 1.442695
    %v2777 = vpow.pop %v2776
    %v2778 = vmul.f32 %v2773, 1.442695
    %v2779 = vpow.pop %v2778
    %v2780 = vmul.f32 %v2774, 1.442695
    %v2781 = vpow.pop %v2780
    %v2782 = vmul.f32 %v2775, 1.442695
    %v2783 = vpow.pop %v2782
    %v2784 = vsel %vm413, %v2777, 0.0
    %2785 = vadd.xlane.f32.xlu0 %v2784
    %v2786 = vpop.xlane.xlu0 %2785
    %v2787 = vsel %vm413, %v2779, 0.0
    %2788 = vadd.xlane.f32.xlu0 %v2787
    %v2789 = vpop.xlane.xlu0 %2788
    %v2790 = vsel %vm413, %v2781, 0.0
    %2791 = vadd.xlane.f32.xlu0 %v2790
    %v2792 = vpop.xlane.xlu0 %2791
    %v2793 = vsel %vm413, %v2783, 0.0
    %2794 = vadd.xlane.f32.xlu0 %v2793
    %v2795 = vpop.xlane.xlu0 %2794
    %v2796 = vrcp.pop %v2786
    %v2797 = vmul.f32 %v2786, %v2796
    %v2798 = vsub.f32 1.0, %v2797
    %v2799 = vmul.f32 %v2796, %v2798
    %v2800 = vadd.f32 %v2796, %v2799
    %vm2801 = vweird.f32 %v2786
    %vm2802 = vweird.f32 %v2796
    %vm2803 = vmor %vm2801, %vm2802
    %v2804 = vsel %vm2803, %v2796, %v2800
    %v2805 = vand.u32 2147483647, %v2786
    %vm2806 = vcmp.eq.f32.partialorder %v2805, 8.507059e+37
    %v2807 = vand.u32 %v2786, 2147483648
    %v2808 = vor.u32 1.1754944e-38, %v2807
    %v2809 = vsel %vm2806, %v2808, %v2804
    %v2810 = vmul.f32 %v2777, %v2809
    %v2811 = vrcp.pop %v2789
    %v2812 = vmul.f32 %v2789, %v2811
    %v2813 = vsub.f32 1.0, %v2812
    %v2814 = vmul.f32 %v2811, %v2813
    %v2815 = vadd.f32 %v2811, %v2814
    %vm2816 = vweird.f32 %v2789
    %vm2817 = vweird.f32 %v2811
    %vm2818 = vmor %vm2816, %vm2817
    %v2819 = vsel %vm2818, %v2811, %v2815
    %v2820 = vand.u32 2147483647, %v2789
    %vm2821 = vcmp.eq.f32.partialorder %v2820, 8.507059e+37
    %v2822 = vand.u32 %v2789, 2147483648
    %v2823 = vor.u32 1.1754944e-38, %v2822
    %v2824 = vsel %vm2821, %v2823, %v2819
    %v2825 = vmul.f32 %v2779, %v2824
    %v2826 = vrcp.pop %v2792
    %v2827 = vmul.f32 %v2792, %v2826
    %v2828 = vsub.f32 1.0, %v2827
    %v2829 = vmul.f32 %v2826, %v2828
    %v2830 = vadd.f32 %v2826, %v2829
    %vm2831 = vweird.f32 %v2792
    %vm2832 = vweird.f32 %v2826
    %vm2833 = vmor %vm2831, %vm2832
    %v2834 = vsel %vm2833, %v2826, %v2830
    %v2835 = vand.u32 2147483647, %v2792
    %vm2836 = vcmp.eq.f32.partialorder %v2835, 8.507059e+37
    %v2837 = vand.u32 %v2792, 2147483648
    %v2838 = vor.u32 1.1754944e-38, %v2837
    %v2839 = vsel %vm2836, %v2838, %v2834
    %v2840 = vmul.f32 %v2781, %v2839
    %v2841 = vrcp.pop %v2795
    %v2842 = vmul.f32 %v2795, %v2841
    %v2843 = vsub.f32 1.0, %v2842
    %v2844 = vmul.f32 %v2841, %v2843
    %v2845 = vadd.f32 %v2841, %v2844
    %vm2846 = vweird.f32 %v2795
    %vm2847 = vweird.f32 %v2841
    %vm2848 = vmor %vm2846, %vm2847
    %v2849 = vsel %vm2848, %v2841, %v2845
    %v2850 = vand.u32 2147483647, %v2795
    %vm2851 = vcmp.eq.f32.partialorder %v2850, 8.507059e+37
    %v2852 = vand.u32 %v2795, 2147483648
    %v2853 = vor.u32 1.1754944e-38, %v2852
    %v2854 = vsel %vm2851, %v2853, %v2849
    %v2855 = vmul.f32 %v2783, %v2854
    %v2857 = vsel %vm413, %v2810, 0
    %2859 = vmatpush.msra.mxu0 0.0
    %2860 = vmatpush.msra.mxu0 0.0
    %2861 = vmatpush.msra.mxu0 0.0
    %2862 = vmatpush.msra.mxu0 0.0
    %2863 = vmatpush.msra.mxu0 0.0
    %2864 = vmatpush.msra.mxu0 0.0
    %2865 = vmatpush.msra.mxu0 0.0
    %2866 = vmatpush.msra.mxu0 0.0
    %2867 = vmatpush.msra.mxu0 0.0
    %2868 = vmatpush.msra.mxu0 0.0
    %2869 = vmatpush.msra.mxu0 0.0
    %2870 = vmatpush.msra.mxu0 0.0
    %2871 = vmatpush.msra.mxu0 0.0
    %2872 = vmatpush.msra.mxu0 0.0
    %2873 = vmatpush.msra.mxu0 0.0
    %2874 = vmatpush.msra.mxu0 %v2590
    %2875 = vmatmul.f32.gmra.mxu0 %v2857
    %v2876 = vpop.f32.mrf.mxu0
    %v2877 = vadd.f32 0.0, %v2876
    %2878 = vdwg.mxu0
    %v2880 = vsel %vm413, %v2825, 0
    %2882 = vmatpush.msra.mxu0 0.0
    %2883 = vmatpush.msra.mxu0 0.0
    %2884 = vmatpush.msra.mxu0 0.0
    %2885 = vmatpush.msra.mxu0 0.0
    %2886 = vmatpush.msra.mxu0 0.0
    %2887 = vmatpush.msra.mxu0 0.0
    %2888 = vmatpush.msra.mxu0 0.0
    %2889 = vmatpush.msra.mxu0 0.0
    %2890 = vmatpush.msra.mxu0 0.0
    %2891 = vmatpush.msra.mxu0 0.0
    %2892 = vmatpush.msra.mxu0 0.0
    %2893 = vmatpush.msra.mxu0 0.0
    %2894 = vmatpush.msra.mxu0 0.0
    %2895 = vmatpush.msra.mxu0 0.0
    %2896 = vmatpush.msra.mxu0 0.0
    %2897 = vmatpush.msra.mxu0 %v2610
    %2898 = vmatmul.f32.gmra.mxu0 %v2880
    %v2899 = vpop.f32.mrf.mxu0
    %v2900 = vadd.f32 0.0, %v2899
    %2901 = vdwg.mxu0
    %v2903 = vsel %vm413, %v2840, 0
    %2905 = vmatpush.msra.mxu0 0.0
    %2906 = vmatpush.msra.mxu0 0.0
    %2907 = vmatpush.msra.mxu0 0.0
    %2908 = vmatpush.msra.mxu0 0.0
    %2909 = vmatpush.msra.mxu0 0.0
    %2910 = vmatpush.msra.mxu0 0.0
    %2911 = vmatpush.msra.mxu0 0.0
    %2912 = vmatpush.msra.mxu0 0.0
    %2913 = vmatpush.msra.mxu0 0.0
    %2914 = vmatpush.msra.mxu0 0.0
    %2915 = vmatpush.msra.mxu0 0.0
    %2916 = vmatpush.msra.mxu0 0.0
    %2917 = vmatpush.msra.mxu0 0.0
    %2918 = vmatpush.msra.mxu0 0.0
    %2919 = vmatpush.msra.mxu0 0.0
    %2920 = vmatpush.msra.mxu0 %v2630
    %2921 = vmatmul.f32.gmra.mxu0 %v2903
    %v2922 = vpop.f32.mrf.mxu0
    %v2923 = vadd.f32 0.0, %v2922
    %2924 = vdwg.mxu0
    %v2926 = vsel %vm413, %v2855, 0
    %2928 = vmatpush.msra.mxu0 0.0
    %2929 = vmatpush.msra.mxu0 0.0
    %2930 = vmatpush.msra.mxu0 0.0
    %2931 = vmatpush.msra.mxu0 0.0
    %2932 = vmatpush.msra.mxu0 0.0
    %2933 = vmatpush.msra.mxu0 0.0
    %2934 = vmatpush.msra.mxu0 0.0
    %2935 = vmatpush.msra.mxu0 0.0
    %2936 = vmatpush.msra.mxu0 0.0
    %2937 = vmatpush.msra.mxu0 0.0
    %2938 = vmatpush.msra.mxu0 0.0
    %2939 = vmatpush.msra.mxu0 0.0
    %2940 = vmatpush.msra.mxu0 0.0
    %2941 = vmatpush.msra.mxu0 0.0
    %2942 = vmatpush.msra.mxu0 0.0
    %2943 = vmatpush.msra.mxu0 %v2650
    %2944 = vmatmul.f32.gmra.mxu0 %v2926
    %v2945 = vpop.f32.mrf.mxu0
    %v2946 = vadd.f32 0.0, %v2945
    %2947 = vdwg.mxu0
    %v2949 = vsel %vm413, %v2877, 0
    %2951 = vmatpush.msra.mxu0 0.0
    %2952 = vmatpush.msra.mxu0 0.0
    %2953 = vmatpush.msra.mxu0 0.0
    %2954 = vmatpush.msra.mxu0 0.0
    %2955 = vmatpush.msra.mxu0 0.0
    %2956 = vmatpush.msra.mxu0 0.0
    %2957 = vmatpush.msra.mxu0 0.0
    %2958 = vmatpush.msra.mxu0 0.0
    %2959 = vmatpush.msra.mxu0 0.0
    %2960 = vmatpush.msra.mxu0 0.0
    %2961 = vmatpush.msra.mxu0 0.0
    %2962 = vmatpush.msra.mxu0 0.0
    %2963 = vmatpush.msra.mxu0 0.0
    %2964 = vmatpush.msra.mxu0 0.0
    %2965 = vmatpush.msra.mxu0 0.0
    %2966 = vmatpush.msra.mxu0 %v1725
    %2967 = vmatmul.f32.gmra.mxu0 %v2949
    %v2968 = vpop.f32.mrf.mxu0
    %v2969 = vadd.f32 0.0, %v2968
    %2970 = vdwg.mxu0
    %v2972 = vsel %vm413, %v2900, 0
    %2974 = vmatpush.msra.mxu0 0.0
    %2975 = vmatpush.msra.mxu0 0.0
    %2976 = vmatpush.msra.mxu0 0.0
    %2977 = vmatpush.msra.mxu0 0.0
    %2978 = vmatpush.msra.mxu0 0.0
    %2979 = vmatpush.msra.mxu0 0.0
    %2980 = vmatpush.msra.mxu0 0.0
    %2981 = vmatpush.msra.mxu0 0.0
    %2982 = vmatpush.msra.mxu0 0.0
    %2983 = vmatpush.msra.mxu0 0.0
    %2984 = vmatpush.msra.mxu0 0.0
    %2985 = vmatpush.msra.mxu0 0.0
    %2986 = vmatpush.msra.mxu0 0.0
    %2987 = vmatpush.msra.mxu0 0.0
    %2988 = vmatpush.msra.mxu0 0.0
    %2989 = vmatpush.msra.mxu0 %v1726
    %2990 = vmatmul.f32.gmra.mxu0 %v2972
    %v2991 = vpop.f32.mrf.mxu0
    %v2992 = vadd.f32 0.0, %v2991
    %2993 = vdwg.mxu0
    %v2995 = vsel %vm413, %v2923, 0
    %2997 = vmatpush.msra.mxu0 0.0
    %2998 = vmatpush.msra.mxu0 0.0
    %2999 = vmatpush.msra.mxu0 0.0
    %3000 = vmatpush.msra.mxu0 0.0
    %3001 = vmatpush.msra.mxu0 0.0
    %3002 = vmatpush.msra.mxu0 0.0
    %3003 = vmatpush.msra.mxu0 0.0
    %3004 = vmatpush.msra.mxu0 0.0
    %3005 = vmatpush.msra.mxu0 0.0
    %3006 = vmatpush.msra.mxu0 0.0
    %3007 = vmatpush.msra.mxu0 0.0
    %3008 = vmatpush.msra.mxu0 0.0
    %3009 = vmatpush.msra.mxu0 0.0
    %3010 = vmatpush.msra.mxu0 0.0
    %3011 = vmatpush.msra.mxu0 0.0
    %3012 = vmatpush.msra.mxu0 %v1727
    %3013 = vmatmul.f32.gmra.mxu0 %v2995
    %v3014 = vpop.f32.mrf.mxu0
    %v3015 = vadd.f32 0.0, %v3014
    %3016 = vdwg.mxu0
    %v3018 = vsel %vm413, %v2946, 0
    %3020 = vmatpush.msra.mxu0 0.0
    %3021 = vmatpush.msra.mxu0 0.0
    %3022 = vmatpush.msra.mxu0 0.0
    %3023 = vmatpush.msra.mxu0 0.0
    %3024 = vmatpush.msra.mxu0 0.0
    %3025 = vmatpush.msra.mxu0 0.0
    %3026 = vmatpush.msra.mxu0 0.0
    %3027 = vmatpush.msra.mxu0 0.0
    %3028 = vmatpush.msra.mxu0 0.0
    %3029 = vmatpush.msra.mxu0 0.0
    %3030 = vmatpush.msra.mxu0 0.0
    %3031 = vmatpush.msra.mxu0 0.0
    %3032 = vmatpush.msra.mxu0 0.0
    %3033 = vmatpush.msra.mxu0 0.0
    %3034 = vmatpush.msra.mxu0 0.0
    %3035 = vmatpush.msra.mxu0 %v1728
    %3036 = vmatmul.f32.gmra.mxu0 %v3018
    %v3037 = vpop.f32.mrf.mxu0
    %v3038 = vadd.f32 0.0, %v3037
    %3039 = vdwg.mxu0
    %v3040 = vsel %vm141, %v2969, 0.0
    %v3041 = vsel %vm141, %v2992, 0.0
    %v3042 = vadd.f32 %v3040, %v3041
    %v3043 = vsel %vm141, %v3015, 0.0
    %v3044 = vadd.f32 %v3042, %v3043
    %v3045 = vsel %vm141, %v3038, 0.0
    %v3046 = vadd.f32 %v3044, %v3045
    %v3047 = vld [vmem:[%s2403] sm:$0x1]
    %v3049 = vperm.slane %v3047, 0
    %v3051 = vadd.f32 %v3046, %v3049
    %v3052 = vadd.f32 %v1656, %v2408
    %v3053 = vadd.f32 %v1657, %v3051
    %s3054 = scalar_lea.vmem %s9, 1
    %v3055 = vld [vmem:[%s3054] sm:$0x1]
    %s3056 = scalar_lea.vmem %s10, 1
    %v3057 = vld [vmem:[%s3056] sm:$0x1]
    %v3058 = vsel %vm141, %v3052, 0.0
    %3059 = vadd.xlane.f32.xlu0 %v3058
    %v3060 = vpop.xlane.xlu0 %3059
    %v3061 = vsel %vm141, %v3053, 0.0
    %3062 = vadd.xlane.f32.xlu0 %v3061
    %v3063 = vpop.xlane.xlu0 %3062
    %v3064 = vmul.f32 %v3060, %v1469
    %v3065 = vmul.f32 %v3063, %v1469
    %v3066 = vsub.f32 %v3052, %v3064
    %v3067 = vsub.f32 %v3053, %v3065
    %v3068 = vmul.f32 %v3066, %v3066
    %v3069 = vmul.f32 %v3067, %v3067
    %v3070 = vsel %vm141, %v3068, 0.0
    %3071 = vadd.xlane.f32.xlu0 %v3070
    %v3072 = vpop.xlane.xlu0 %3071
    %v3073 = vsel %vm141, %v3069, 0.0
    %3074 = vadd.xlane.f32.xlu0 %v3073
    %v3075 = vpop.xlane.xlu0 %3074
    %v3076 = vmul.f32 %v3072, %v1469
    %v3077 = vmul.f32 %v3075, %v1469
    %v3078 = vadd.f32 %v3076, 1e-05
    %v3079 = vadd.f32 %v3077, 1e-05
    %v3080 = vrsqrt.pop %v3078
    %v3081 = vmul.f32 %v3080, %v3078
    %v3082 = vmul.f32 %v3081, %v3080
    %v3083 = vmul.f32 0.5, %v3082
    %v3084 = vsub.f32 1.5, %v3083
    %v3085 = vmul.f32 %v3080, %v3084
    %vm3086 = vweird.f32 %v3078
    %vm3087 = vweird.f32 %v3080
    %vm3088 = vmor %vm3086, %vm3087
    %v3089 = vsel %vm3088, %v3080, %v3085
    %v3090 = vrsqrt.pop %v3079
    %v3091 = vmul.f32 %v3090, %v3079
    %v3092 = vmul.f32 %v3091, %v3090
    %v3093 = vmul.f32 0.5, %v3092
    %v3094 = vsub.f32 1.5, %v3093
    %v3095 = vmul.f32 %v3090, %v3094
    %vm3096 = vweird.f32 %v3079
    %vm3097 = vweird.f32 %v3090
    %vm3098 = vmor %vm3096, %vm3097
    %v3099 = vsel %vm3098, %v3090, %v3095
    %v3100 = vmul.f32 %v3066, %v3089
    %v3101 = vmul.f32 %v3067, %v3099
    %v3103 = vperm.slane %v3055, 0
    %v3105 = vmul.f32 %v3100, %v3103
    %v3106 = vmul.f32 %v3101, %v3103
    %v3108 = vperm.slane %v3057, 0
    %v3110 = vadd.f32 %v3105, %v3108
    %v3111 = vadd.f32 %v3106, %v3108
    %s3112 = scalar_lea.vmem %s11, 32
    %v3113 = vld [vmem:[%s3112] sm:$0xff]
    %v3114 = vld [vmem:[%s3112 + $0x8] sm:$0xff]
    %v3115 = vld [vmem:[%s3112 + $0x10] sm:$0xff]
    %v3116 = vld [vmem:[%s3112 + $0x18] sm:$0xff]
    %s3117 = scalar_lea.vmem %s12, 1
    %v3118 = vld [vmem:[%s3117] sm:$0x1]
    %v3120 = vperm.slane %v3118, 0
    %v3123 = vsel %vm141, %v3110, 0
    %v3126 = vsel %vm141, %v3111, 0
    %3128 = vmatpush.msra.mxu0 0.0
    %3129 = vmatpush.msra.mxu0 0.0
    %3130 = vmatpush.msra.mxu0 0.0
    %3131 = vmatpush.msra.mxu0 0.0
    %3132 = vmatpush.msra.mxu0 0.0
    %3133 = vmatpush.msra.mxu0 0.0
    %3134 = vmatpush.msra.mxu0 0.0
    %3135 = vmatpush.msra.mxu0 0.0
    %3136 = vmatpush.msra.mxu0 0.0
    %3137 = vmatpush.msra.mxu0 0.0
    %3138 = vmatpush.msra.mxu0 0.0
    %3139 = vmatpush.msra.mxu0 0.0
    %3140 = vmatpush.msra.mxu0 %v3116
    %3141 = vmatpush.msra.mxu0 %v3115
    %3142 = vmatpush.msra.mxu0 %v3114
    %3143 = vmatpush.msra.mxu0 %v3113
    %3144 = vmatmul.f32.gmra.mxu0 %v3123
    %v3145 = vpop.f32.mrf.mxu0
    %v3146 = vadd.f32 %v3120, %v3145
    %3147 = vmatmul.f32.gmra.mxu0 %v3126
    %v3148 = vpop.f32.mrf.mxu0
    %v3149 = vadd.f32 %v3120, %v3148
    %3150 = vdwg.mxu0
    %v3151 = vmax.f32 %v3146, 0.0
    %v3152 = vmax.f32 %v3149, 0.0
    %s3153 = scalar_lea.vmem %s13, 128
    %v3154 = vld [vmem:[%s3153] sm:$0xff]
    %v3155 = vld [vmem:[%s3153 + $0x8] sm:$0xff]
    %v3156 = vld [vmem:[%s3153 + $0x10] sm:$0xff]
    %v3157 = vld [vmem:[%s3153 + $0x18] sm:$0xff]
    %v3158 = vld [vmem:[%s3153 + $0x20] sm:$0xff]
    %v3159 = vld [vmem:[%s3153 + $0x28] sm:$0xff]
    %v3160 = vld [vmem:[%s3153 + $0x30] sm:$0xff]
    %v3161 = vld [vmem:[%s3153 + $0x38] sm:$0xff]
    %v3162 = vld [vmem:[%s3153 + $0x40] sm:$0xff]
    %v3163 = vld [vmem:[%s3153 + $0x48] sm:$0xff]
    %v3164 = vld [vmem:[%s3153 + $0x50] sm:$0xff]
    %v3165 = vld [vmem:[%s3153 + $0x58] sm:$0xff]
    %v3166 = vld [vmem:[%s3153 + $0x60] sm:$0xff]
    %v3167 = vld [vmem:[%s3153 + $0x68] sm:$0xff]
    %v3168 = vld [vmem:[%s3153 + $0x70] sm:$0xff]
    %v3169 = vld [vmem:[%s3153 + $0x78] sm:$0xff]
    %s3170 = scalar_lea.vmem %s14, 1
    %v3171 = vld [vmem:[%s3170] sm:$0x1]
    %v3173 = vperm.slane %v3171, 0
    %3175 = vmatpush.msra.mxu0 %v3169
    %3176 = vmatpush.msra.mxu0 %v3168
    %3177 = vmatpush.msra.mxu0 %v3167
    %3178 = vmatpush.msra.mxu0 %v3166
    %3179 = vmatpush.msra.mxu0 %v3165
    %3180 = vmatpush.msra.mxu0 %v3164
    %3181 = vmatpush.msra.mxu0 %v3163
    %3182 = vmatpush.msra.mxu0 %v3162
    %3183 = vmatpush.msra.mxu0 %v3161
    %3184 = vmatpush.msra.mxu0 %v3160
    %3185 = vmatpush.msra.mxu0 %v3159
    %3186 = vmatpush.msra.mxu0 %v3158
    %3187 = vmatpush.msra.mxu0 %v3157
    %3188 = vmatpush.msra.mxu0 %v3156
    %3189 = vmatpush.msra.mxu0 %v3155
    %3190 = vmatpush.msra.mxu0 %v3154
    %3191 = vmatmul.f32.gmra.mxu0 %v3151
    %v3192 = vpop.f32.mrf.mxu0
    %v3193 = vadd.f32 %v3173, %v3192
    %3194 = vmatmul.f32.gmra.mxu0 %v3152
    %v3195 = vpop.f32.mrf.mxu0
    %v3196 = vadd.f32 %v3173, %v3195
    %3197 = vdwg.mxu0
    %v3198 = vadd.f32 %v3110, %v3193
    %v3199 = vadd.f32 %v3111, %v3196
    %s3200 = scalar_lea.vmem %s15, 1
    %v3201 = vld [vmem:[%s3200] sm:$0x1]
    %s3202 = scalar_lea.vmem %s16, 1
    %v3203 = vld [vmem:[%s3202] sm:$0x1]
    %v3204 = vsel %vm141, %v3198, 0.0
    %3205 = vadd.xlane.f32.xlu0 %v3204
    %v3206 = vpop.xlane.xlu0 %3205
    %v3207 = vsel %vm141, %v3199, 0.0
    %3208 = vadd.xlane.f32.xlu0 %v3207
    %v3209 = vpop.xlane.xlu0 %3208
    %v3210 = vmul.f32 %v3206, %v1469
    %v3211 = vmul.f32 %v3209, %v1469
    %v3212 = vsub.f32 %v3198, %v3210
    %v3213 = vsub.f32 %v3199, %v3211
    %v3214 = vmul.f32 %v3212, %v3212
    %v3215 = vmul.f32 %v3213, %v3213
    %v3216 = vsel %vm141, %v3214, 0.0
    %3217 = vadd.xlane.f32.xlu0 %v3216
    %v3218 = vpop.xlane.xlu0 %3217
    %v3219 = vsel %vm141, %v3215, 0.0
    %3220 = vadd.xlane.f32.xlu0 %v3219
    %v3221 = vpop.xlane.xlu0 %3220
    %v3222 = vmul.f32 %v3218, %v1469
    %v3223 = vmul.f32 %v3221, %v1469
    %v3224 = vadd.f32 %v3222, 1e-05
    %v3225 = vadd.f32 %v3223, 1e-05
    %v3226 = vrsqrt.pop %v3224
    %v3227 = vmul.f32 %v3226, %v3224
    %v3228 = vmul.f32 %v3227, %v3226
    %v3229 = vmul.f32 0.5, %v3228
    %v3230 = vsub.f32 1.5, %v3229
    %v3231 = vmul.f32 %v3226, %v3230
    %vm3232 = vweird.f32 %v3224
    %vm3233 = vweird.f32 %v3226
    %vm3234 = vmor %vm3232, %vm3233
    %v3235 = vsel %vm3234, %v3226, %v3231
    %v3236 = vrsqrt.pop %v3225
    %v3237 = vmul.f32 %v3236, %v3225
    %v3238 = vmul.f32 %v3237, %v3236
    %v3239 = vmul.f32 0.5, %v3238
    %v3240 = vsub.f32 1.5, %v3239
    %v3241 = vmul.f32 %v3236, %v3240
    %vm3242 = vweird.f32 %v3225
    %vm3243 = vweird.f32 %v3236
    %vm3244 = vmor %vm3242, %vm3243
    %v3245 = vsel %vm3244, %v3236, %v3241
    %v3246 = vmul.f32 %v3212, %v3235
    %v3247 = vmul.f32 %v3213, %v3245
    %v3249 = vperm.slane %v3201, 0
    %v3251 = vmul.f32 %v3246, %v3249
    %v3252 = vmul.f32 %v3247, %v3249
    %v3254 = vperm.slane %v3203, 0
    %v3256 = vadd.f32 %v3251, %v3254
    %v3257 = vadd.f32 %v3252, %v3254
    %v3259 = vrot.slane %v3256, 7
    %v3262 = vrot.slane %v3257, 6
    %vm3264 = vcmask 1040384
    %v3265 = vsel %vm3264, %v3259, %v3262
    %v3266 = vld [vmem:[%s17] sm:$0xff]
    %v3267 = vld [vmem:[%s17 + $0x8] sm:$0xff]
    %v3268 = vld [vmem:[%s17 + $0x10] sm:$0xff]
    %v3269 = vld [vmem:[%s17 + $0x18] sm:$0xff]
    %v3270 = vld [vmem:[%s18] sm:$0x1]
    %v3272 = vperm.slane %v3270, 0
    %v3275 = vsel %vm141, %v3265, 0
    %3277 = vmatpush.msra.mxu0 0.0
    %3278 = vmatpush.msra.mxu0 0.0
    %3279 = vmatpush.msra.mxu0 0.0
    %3280 = vmatpush.msra.mxu0 0.0
    %3281 = vmatpush.msra.mxu0 0.0
    %3282 = vmatpush.msra.mxu0 0.0
    %3283 = vmatpush.msra.mxu0 0.0
    %3284 = vmatpush.msra.mxu0 0.0
    %3285 = vmatpush.msra.mxu0 0.0
    %3286 = vmatpush.msra.mxu0 0.0
    %3287 = vmatpush.msra.mxu0 0.0
    %3288 = vmatpush.msra.mxu0 0.0
    %3289 = vmatpush.msra.mxu0 %v3269
    %3290 = vmatpush.msra.mxu0 %v3268
    %3291 = vmatpush.msra.mxu0 %v3267
    %3292 = vmatpush.msra.mxu0 %v3266
    %3293 = vmatmul.f32.gmra.mxu0 %v3275
    %v3294 = vpop.f32.mrf.mxu0
    %v3295 = vadd.f32 %v3272, %v3294
    %3296 = vdwg.mxu0
    %vm3297 = vcmask 58368
    %3298 = vst.msk [vmem:[#allocation2] sm:$0x3] %vm3297, %v3295
    // Predicated region
    $region78: #{forward_pallas.1} parent=1 // pred_check
      _
    $region79: #{forward_pallas.1} parent=1 // pred_check_branch
      %3300 = sbr.rel (0) target = $region81
    $region80: #{forward_pallas.1} parent=1 // pred_region
      %3302 = vsyncadd [#allocation3], 0
      %s3304 = sshll.u32 [#allocation2], 4
      %s3305 = int_to_ptr.vmem [resolvable:$true] %s3304
      %s3306 = sshll.u32 %s19, 4
      %s3307 = int_to_ptr.hbm [resolvable:$true] %s3306
      %3309 = dma.vmem_to_hbm [thread:$0]  %s3305, 32, %s3307, [#allocation3]
    $region81: #{forward_pallas.1} parent=1 // pred_fallthru
      _
    // Predicated region
    $region82: #{forward_pallas.1} parent=1 // pred_check
      _
    $region83: #{forward_pallas.1} parent=1 // pred_check_branch
      %3311 = sbr.rel (0) target = $region85
    $region84: #{forward_pallas.1} parent=1 // pred_region
      %3313 = dma.done [#allocation3], 32
    $region85: #{forward_pallas.1} parent=1 // pred_fallthru
      _
    %3314 = vsyncpa [#allocation3], 1

</llo_original>
